<compile_context>
chip_gen: v5e
topology: v5e:2x2
jax: 0.10.0
libtpu: 0.0.40
codegen_flags: <defaults>
</compile_context>

<pallas_src>
import jax
import jax.numpy as jnp
import numpy as np
from jax.experimental import pallas as pl
from jax.experimental.pallas import tpu as pltpu

# ----------------------------- hyper parameters -----------------------------
B = 2     # batch_size (documents)
S = 4     # max_sent_length
W = 8     # max_word_length
E = 32    # word2vec embedding dim
HW = 16   # word_hidden_size
HS = 16   # sent_hidden_size
C = 5     # num_classes
V = 50    # vocab size

BP = 8          # padded batch = one full sublane group (fill with real docs in prod)
GI_HALF = 128   # lane offset of the backward-direction half in fused gi tensors
assert 6 * HW <= GI_HALF and 6 * HS <= GI_HALF

# --------------------------- packed-parameter layout -------------------------
PACK_COLS = 2 * GI_HALF   # 256 lanes; widest packed tensor (w_ih_sent)

_PACK_LAYOUT = (
    ("w_hh_word", (2 * HW, 6 * HW)),
    ("b_hh_word", (1, 6 * HW)),
    ("w_att_w",   (2 * HW, 2 * HW)),
    ("w_att_b",   (1, 2 * HW)),
    ("w_ctx",     (1, 2 * HW)),
    ("sel_w",     (BP, W * BP)),
    ("w_ih_sent", (2 * HW, 2 * GI_HALF)),
    ("b_ih_sent", (1, 2 * GI_HALF)),
    ("w_hh_sent", (2 * HS, 6 * HS)),
    ("b_hh_sent", (1, 6 * HS)),
    ("s_att_w",   (2 * HS, 2 * HS)),
    ("s_att_b",   (1, 2 * HS)),
    ("s_ctx",     (1, 2 * HS)),
    ("sel_s",     (BP, S * BP)),
    ("fc_w",      (2 * HS, C)),
    ("fc_b",      (1, C)),
)


def _build_offsets(layout):
    offs, row = {}, 0
    for name, (r, c) in layout:
        offs[name] = (row, r, c)
        row += ((r + 7) // 8) * 8          # 8-row (sublane) aligned blocks
    return offs, row


_OFFSETS, _PACK_ROWS = _build_offsets(_PACK_LAYOUT)


# --------------------------- in-kernel helper math ---------------------------
def _bigru_fused(gi_f_src, f_col, gi_b_src, b_col, base_row,
                 h0_cat, w_hh_bd, b_hh, t_len, hidden):
    """Bidirectional GRU as ONE interleaved scan with block-diagonal recurrent weights.

    Gate lane layout everywhere: [r_f r_b | z_f z_b | n_f n_b] (each block `hidden`
    wide).  gi_*_src rows are ordered t*BP + b and already include b_ih; the forward
    half is read at time k, the backward half at time t_len-1-k, so a single matmul
    gh = h_cat @ w_hh_bd advances both directions.  Returns
    (feats (t_len*BP, 2*hidden) rows t*BP+b = [h_f_t | h_b_t], final h_cat).
    """
    G = 6 * hidden
    H2 = 2 * hidden
    h = h0_cat
    f_states = [None] * t_len
    b_states = [None] * t_len
    for k in range(t_len):
        rf = base_row + k * BP
        rb = base_row + (t_len - 1 - k) * BP
        gi = (gi_f_src[rf:rf + BP, f_col:f_col + G]
              + gi_b_src[rb:rb + BP, b_col:b_col + G])                  # (BP, 6H)
        gh = jnp.dot(h, w_hh_bd, preferred_element_type=jnp.float32) + b_hh
        rz = jax.nn.sigmoid(gi[:, :2 * H2] + gh[:, :2 * H2])            # [r_f r_b z_f z_b]
        r = rz[:, :H2]
        z = rz[:, H2:]
        n = jnp.tanh(gi[:, 2 * H2:] + r * gh[:, 2 * H2:])
        h = (1.0 - z) * n + z * h
        f_states[k] = h[:, :hidden]
        b_states[t_len - 1 - k] = h[:, hidden:]
    rows = [jnp.concatenate([f_states[t], b_states[t]], axis=-1) for t in range(t_len)]
    return jnp.concatenate(rows, axis=0), h                             # (T*BP, 2H)


def _attention_fused(feats, att_w, att_b, ctx, sel):
    """HAN attention, vectorized over the time axis.

    feats: (T*BP, 2H) rows t*BP + b;  sel: (BP, T*BP) with sel[b, t*BP+b] = 1.
    u = tanh(F @ W + b); score = tanh(<u, ctx>); softmax over T per batch row;
    the weighted time-sum and its denominator are one selection matmul.
    """
    u = jnp.tanh(jnp.dot(feats, att_w, preferred_element_type=jnp.float32) + att_b)
    sc = jnp.tanh(jnp.sum(u * ctx, axis=-1, keepdims=True))             # (T*BP, 1)
    # Global max-shift: scores are tanh-bounded; per-group softmax is invariant to it.
    e = jnp.exp(sc - jnp.max(sc, keepdims=True))                        # (T*BP, 1)
    weighted = jnp.concatenate([e * feats, e], axis=-1)                 # (T*BP, 2H+1)
    red = jnp.dot(sel, weighted, preferred_element_type=jnp.float32)    # (BP, 2H+1)
    return red[:, :-1] / red[:, -1:]                                    # exact normalize


# ------------------------------- Pallas kernel -------------------------------
def han_kernel(g_ref, p_ref, out_ref):
    # g_ref: (S*W*BP, 256) precomposed word-GRU gate inputs (fwd half lanes 0:96,
    #        bwd half lanes 128:224), rows ordered s*W*BP + w*BP + b.
    # p_ref: (272, 256) packed parameter buffer; static slices below are free.
    def P(name):
        off, r, c = _OFFSETS[name]
        return p_ref[off:off + r, 0:c]

    # --- word level: BiGRU over words (hidden carried across sentences) + attention
    w_hh_w = P("w_hh_word")
    b_hh_w = P("b_hh_word")
    w_att_w = P("w_att_w")
    w_att_b = P("w_att_b")
    w_ctx = P("w_ctx")
    sel_w = P("sel_w")

    h_w = jnp.zeros((BP, 2 * HW), jnp.float32)
    sent_vecs = []
    for s in range(S):                                   # inherently sequential (carry)
        base = s * W * BP
        feats, h_w = _bigru_fused(g_ref, 0, g_ref, GI_HALF, base,
                                  h_w, w_hh_w, b_hh_w, W, HW)
        sent_vecs.append(_attention_fused(feats, w_att_w, w_att_b, w_ctx, sel_w))

    # --- sentence level: one fused input-projection matmul, then the serial BiGRU
    sv = jnp.concatenate(sent_vecs, axis=0)                              # (S*BP, 2*HW)
    gi_sent = (jnp.dot(sv, P("w_ih_sent"), preferred_element_type=jnp.float32)
               + P("b_ih_sent"))                                         # (S*BP, 256)
    h_s = jnp.zeros((BP, 2 * HS), jnp.float32)
    sfeats, _ = _bigru_fused(gi_sent, 0, gi_sent, GI_HALF, 0,
                             h_s, P("w_hh_sent"), P("b_hh_sent"), S, HS)
    doc = _attention_fused(sfeats, P("s_att_w"), P("s_att_b"), P("s_ctx"), P("sel_s"))

    out_ref[...] = (jnp.dot(doc, P("fc_w"), preferred_element_type=jnp.float32)
                    + P("fc_b"))


# ---------------------- one-time parameter fusion / packing ------------------
def _fuse_hh_blockdiag(whh_f, bhh_f, whh_b, bhh_b, hidden):
    """Per-gate (3,H,H)/(3,H) fwd+bwd -> block-diag (2H,6H) and (1,6H) bias in
    lane layout [r_f r_b | z_f z_b | n_f n_b]."""
    H = hidden
    w = np.zeros((2 * H, 6 * H), np.float32)
    b = np.zeros((1, 6 * H), np.float32)
    for g in range(3):                                   # gate order r, z, n
        w[0:H, (2 * g) * H:(2 * g + 1) * H] = np.asarray(whh_f[g], np.float32)
        w[H:, (2 * g + 1) * H:(2 * g + 2) * H] = np.asarray(whh_b[g], np.float32)
        b[0, (2 * g) * H:(2 * g + 1) * H] = np.asarray(bhh_f[g], np.float32)
        b[0, (2 * g + 1) * H:(2 * g + 2) * H] = np.asarray(bhh_b[g], np.float32)
    return w, b


def _fuse_ih_split(wih_f, bih_f, wih_b, bih_b, in_dim, hidden):
    """Per-gate input projections -> (in, 2*GI_HALF) weight and (1, 2*GI_HALF) bias.
    Lanes 0:6H carry the forward-direction gates (bwd sub-lanes zero), lanes
    GI_HALF:GI_HALF+6H the backward ones, both in [r_f r_b | z_f z_b | n_f n_b]
    layout, so fwd_half[t] + bwd_half[T-1-t] is directly the fused per-step gi."""
    H = hidden
    w = np.zeros((in_dim, 2 * GI_HALF), np.float32)
    b = np.zeros((1, 2 * GI_HALF), np.float32)
    for g in range(3):
        w[:, (2 * g) * H:(2 * g + 1) * H] = np.asarray(wih_f[g], np.float32)
        b[0, (2 * g) * H:(2 * g + 1) * H] = np.asarray(bih_f[g], np.float32)
        w[:, GI_HALF + (2 * g + 1) * H:GI_HALF + (2 * g + 2) * H] = \
            np.asarray(wih_b[g], np.float32)
        b[0, GI_HALF + (2 * g + 1) * H:GI_HALF + (2 * g + 2) * H] = \
            np.asarray(bih_b[g], np.float32)
    return w, b


def prepare_params(params):
    """Runs ONCE per checkpoint (hoisted off the forward path): gate fusion,
    embedding/input-projection precomposition, and packing into one buffer."""
    w_hh_word, b_hh_word = _fuse_hh_blockdiag(params["whh_wf"], params["bhh_wf"],
                                              params["whh_wb"], params["bhh_wb"], HW)
    w_ih_word, b_ih_word = _fuse_ih_split(params["wih_wf"], params["bih_wf"],
                                          params["wih_wb"], params["bih_wb"], E, HW)
    # Precompose embedding with the word input projection: table[v] already holds the
    # per-token gate inputs (incl. b_ih) -> the kernel's first matmul disappears.
    emb = np.asarray(params["emb"], np.float32)
    table = emb @ w_ih_word + b_ih_word                                  # (V, 256)

    w_hh_sent, b_hh_sent = _fuse_hh_blockdiag(params["whh_sf"], params["bhh_sf"],
                                              params["whh_sb"], params["bhh_sb"], HS)
    w_ih_sent, b_ih_sent = _fuse_ih_split(params["wih_sf"], params["bih_sf"],
                                          params["wih_sb"], params["bih_sb"], 2 * HW, HS)

    # 0/1 selection matrices (sel[b, t*BP + b] = 1): turn the attention-weighted
    # time reduction and its softmax denominator into single MXU matmuls.
    sel_w = np.tile(np.eye(BP, dtype=np.float32), (1, W))
    sel_s = np.tile(np.eye(BP, dtype=np.float32), (1, S))

    tensors = {
        "w_hh_word": w_hh_word, "b_hh_word": b_hh_word,
        "w_att_w": params["w_att_w"], "w_att_b": params["w_att_b"],
        "w_ctx": params["w_ctx"], "sel_w": sel_w,
        "w_ih_sent": w_ih_sent, "b_ih_sent": b_ih_sent,
        "w_hh_sent": w_hh_sent, "b_hh_sent": b_hh_sent,
        "s_att_w": params["s_att_w"], "s_att_b": params["s_att_b"],
        "s_ctx": params["s_ctx"], "sel_s": sel_s,
        "fc_w": params["fc_w"], "fc_b": params["fc_b"],
    }
    packed = np.zeros((_PACK_ROWS, PACK_COLS), np.float32)
    for name, arr in tensors.items():
        off, r, c = _OFFSETS[name]
        packed[off:off + r, :c] = np.asarray(arr, np.float32).reshape(r, c)
    return jnp.asarray(table), jnp.asarray(packed)


def init_params(key):
    ks = jax.random.split(key, 25)

    def rn(k, shape, scale=0.1):
        return jax.random.normal(k, shape, dtype=jnp.float32) * scale

    return dict(
        emb=rn(ks[0], (V, E), 0.3),
        wih_wf=rn(ks[1], (3, E, HW)), whh_wf=rn(ks[2], (3, HW, HW)),
        bih_wf=rn(ks[3], (3, HW)), bhh_wf=rn(ks[4], (3, HW)),
        wih_wb=rn(ks[5], (3, E, HW)), whh_wb=rn(ks[6], (3, HW, HW)),
        bih_wb=rn(ks[7], (3, HW)), bhh_wb=rn(ks[8], (3, HW)),
        w_att_w=rn(ks[9], (2 * HW, 2 * HW)), w_att_b=rn(ks[10], (1, 2 * HW)),
        w_ctx=rn(ks[11], (1, 2 * HW)),
        wih_sf=rn(ks[12], (3, 2 * HW, HS)), whh_sf=rn(ks[13], (3, HS, HS)),
        bih_sf=rn(ks[14], (3, HS)), bhh_sf=rn(ks[15], (3, HS)),
        wih_sb=rn(ks[16], (3, 2 * HW, HS)), whh_sb=rn(ks[17], (3, HS, HS)),
        bih_sb=rn(ks[18], (3, HS)), bhh_sb=rn(ks[19], (3, HS)),
        s_att_w=rn(ks[20], (2 * HS, 2 * HS)), s_att_b=rn(ks[21], (1, 2 * HS)),
        s_ctx=rn(ks[22], (1, 2 * HS)),
        fc_w=rn(ks[23], (2 * HS, C)), fc_b=rn(ks[24], (1, C)),
    )


# --------------------------------- forward -----------------------------------
@jax.jit
def hier_att_net(tokens, table, packed):
    """tokens: (B, S, W) int32 word ids -> logits (B, C)."""
    # Pad the batch (sublane) dim to BP=8; pad rows compute bounded garbage and are
    # dropped at the end.  In production, fill the pad with additional documents.
    tok = tokens if B == BP else jnp.concatenate(
        [tokens, jnp.zeros((BP - B, S, W), tokens.dtype)], axis=0)
    # Row order s*W*BP + w*BP + b: every timestep is one aligned (8, lanes) tile.
    idx = jnp.transpose(tok, (1, 2, 0)).reshape(S * W * BP)
    # TODO(synk): the embedding gather could move in-kernel (ids via scalar prefetch
    # + jnp.take on the VMEM table) to remove this last piece of XLA glue.
    g = jnp.take(table, idx, axis=0)                      # (S*W*BP, 256) fused gi

    logits = pl.pallas_call(
        han_kernel,
        out_shape=jax.ShapeDtypeStruct((BP, C), jnp.float32),
        grid=(1,),                                        # whole (tiny) doc in one shot
        in_specs=[pl.BlockSpec((S * W * BP, 2 * GI_HALF), lambda i: (0, 0)),
                  pl.BlockSpec((_PACK_ROWS, PACK_COLS), lambda i: (0, 0))],
        out_specs=pl.BlockSpec((BP, C), lambda i: (0, 0)),
        compiler_params=pltpu.CompilerParams(
            dimension_semantics=("arbitrary",)),
    )(g, packed)
    return logits[:B]


# ------------------------------- pure-JAX reference --------------------------
def _gru_cell_ref(x_t, h, wih, whh, bih, bhh):
    gi_r = jnp.dot(x_t, wih[0]) + bih[0:1]
    gi_z = jnp.dot(x_t, wih[1]) + bih[1:2]
    gi_n = jnp.dot(x_t, wih[2]) + bih[2:3]
    gh_r = jnp.dot(h, whh[0]) + bhh[0:1]
    gh_z = jnp.dot(h, whh[1]) + bhh[1:2]
    gh_n = jnp.dot(h, whh[2]) + bhh[2:3]
    r = jax.nn.sigmoid(gi_r + gh_r)
    z = jax.nn.sigmoid(gi_z + gh_z)
    n = jnp.tanh(gi_n + r * gh_n)
    return (1.0 - z) * n + z * h


def _bigru_ref(xs, h0_f, h0_b, pf, pb):
    t_len = len(xs)
    hf = h0_f
    f_states = []
    for t in range(t_len):
        hf = _gru_cell_ref(xs[t], hf, *pf)
        f_states.append(hf)
    hb = h0_b
    b_states = [None] * t_len
    for t in range(t_len - 1, -1, -1):
        hb = _gru_cell_ref(xs[t], hb, *pb)
        b_states[t] = hb
    outs = [jnp.concatenate([f_states[t], b_states[t]], axis=-1) for t in range(t_len)]
    return outs, hf, hb


def _attention_ref(outs, att_w, att_b, ctx):
    scores = []
    for f in outs:
        u = jnp.tanh(jnp.dot(f, att_w) + att_b)
        scores.append(jnp.tanh(jnp.sum(u * ctx, axis=-1, keepdims=True)))
    sc = jnp.concatenate(scores, axis=-1)
    sc = sc - jnp.max(sc, axis=-1, keepdims=True)
    e = jnp.exp(sc)
    alpha = e / jnp.sum(e, axis=-1, keepdims=True)
    acc = jnp.zeros_like(outs[0])
    for t, f in enumerate(outs):
        acc = acc + alpha[:, t:t + 1] * f
    return acc


def reference(tokens, params):
    x_perm = jnp.transpose(tokens, (1, 2, 0))
    x_emb = params["emb"][x_perm].astype(jnp.float32)          # (S, W, B, E)
    hwf = jnp.zeros((B, HW), jnp.float32)
    hwb = jnp.zeros((B, HW), jnp.float32)
    pf = (params["wih_wf"], params["whh_wf"], params["bih_wf"], params["bhh_wf"])
    pb = (params["wih_wb"], params["whh_wb"], params["bih_wb"], params["bhh_wb"])
    sent_vecs = []
    for si in range(S):
        xs = [x_emb[si, t] for t in range(W)]
        outs, hwf, hwb = _bigru_ref(xs, hwf, hwb, pf, pb)
        sent_vecs.append(_attention_ref(outs, params["w_att_w"],
                                        params["w_att_b"], params["w_ctx"]))
    pf2 = (params["wih_sf"], params["whh_sf"], params["bih_sf"], params["bhh_sf"])
    pb2 = (params["wih_sb"], params["whh_sb"], params["bih_sb"], params["bhh_sb"])
    zh = jnp.zeros((B, HS), jnp.float32)
    outs2, _, _ = _bigru_ref(sent_vecs, zh, zh, pf2, pb2)
    doc = _attention_ref(outs2, params["s_att_w"], params["s_att_b"], params["s_ctx"])
    return jnp.dot(doc, params["fc_w"]) + params["fc_b"]


# ----------------------------------- main ------------------------------------
if __name__ == "__main__":
    key = jax.random.PRNGKey(0)
    k_tok, k_par = jax.random.split(key)
    tokens = jax.random.randint(k_tok, (B, S, W), 0, V, dtype=jnp.int32)
    params = init_params(k_par)
    table, packed = prepare_params(params)        # once, off the per-call path

    out = jax.block_until_ready(hier_att_net(tokens, table, packed))
    ref = reference(tokens, params)

    # Tolerance covers f32/MXU matmul rounding differences between the in-kernel path
    # (exact-precomposed table, fused block-diagonal matmuls) and the plain-XLA
    # reference; real bugs would be orders of magnitude larger.
    np.testing.assert_allclose(np.asarray(out), np.asarray(ref), rtol=5e-3, atol=5e-3)
    assert out.shape == (B, C)
    print("KERNEL_OK")
</pallas_src>

<mosaic_0001>
module attributes {stable_mosaic.version = 11 : i64} {
  func.func @han_kernel(%arg0: i32, %arg1: memref<256x256xf32, #tpu.memory_space<vmem>>, %arg2: memref<272x256xf32, #tpu.memory_space<vmem>>, %arg3: memref<8x5xf32, #tpu.memory_space<vmem>>) attributes {dimension_semantics = [#tpu.dimension_semantics<arbitrary>], iteration_bounds = array<i64: 1>, scalar_prefetch = 0 : i64, scratch_operands = 0 : i64, tpu.core_type = #tpu.core_type<tc>, window_params = [{pipeline_mode = #tpu.pipeline_mode<synchronous>, transform_indices = @transform_0, window_bounds = array<i64: 256, 256>}, {pipeline_mode = #tpu.pipeline_mode<synchronous>, transform_indices = @transform_1, window_bounds = array<i64: 272, 256>}, {pipeline_mode = #tpu.pipeline_mode<synchronous>, transform_indices = @transform_2, window_bounds = array<i64: 8, 5>}]} {
    %c0 = arith.constant 0 : index
    %c0_0 = arith.constant 0 : index
    %0 = vector.load %arg2[%c0, %c0_0] : memref<272x256xf32, #tpu.memory_space<vmem>>, vector<32x96xf32>
    %c32 = arith.constant 32 : index
    %c0_1 = arith.constant 0 : index
    %1 = vector.load %arg2[%c32, %c0_1] : memref<272x256xf32, #tpu.memory_space<vmem>>, vector<1x96xf32>
    %c40 = arith.constant 40 : index
    %c0_2 = arith.constant 0 : index
    %2 = vector.load %arg2[%c40, %c0_2] : memref<272x256xf32, #tpu.memory_space<vmem>>, vector<32x32xf32>
    %c72 = arith.constant 72 : index
    %c0_3 = arith.constant 0 : index
    %3 = vector.load %arg2[%c72, %c0_3] : memref<272x256xf32, #tpu.memory_space<vmem>>, vector<1x32xf32>
    %c80 = arith.constant 80 : index
    %c0_4 = arith.constant 0 : index
    %4 = vector.load %arg2[%c80, %c0_4] : memref<272x256xf32, #tpu.memory_space<vmem>>, vector<1x32xf32>
    %c88 = arith.constant 88 : index
    %c0_5 = arith.constant 0 : index
    %5 = vector.load %arg2[%c88, %c0_5] : memref<272x256xf32, #tpu.memory_space<vmem>>, vector<8x64xf32>
    %cst = arith.constant 0.000000e+00 : f32
    %6 = vector.broadcast %cst : f32 to vector<8x32xf32>
    %c0_6 = arith.constant 0 : index
    %c0_7 = arith.constant 0 : index
    %7 = vector.load %arg1[%c0_6, %c0_7] : memref<256x256xf32, #tpu.memory_space<vmem>>, vector<8x96xf32>
    %c56 = arith.constant 56 : index
    %c128 = arith.constant 128 : index
    %8 = vector.load %arg1[%c56, %c128] : memref<256x256xf32, #tpu.memory_space<vmem>>, vector<8x96xf32>
    %9 = arith.addf %7, %8 : vector<8x96xf32>
    %cst_8 = arith.constant dense<0.000000e+00> : vector<8x96xf32>
    %10 = tpu.matmul %6, %0, %cst_8 {dimension_numbers = #tpu.dot_dimension_numbers<[1], [0], [0], [1], [0, 0, 1, 1], [], []>} : vector<8x32xf32>, vector<32x96xf32>, vector<8x96xf32> -> vector<8x96xf32>
    %11 = vector.broadcast %1 : vector<1x96xf32> to vector<8x96xf32>
    %12 = arith.addf %10, %11 : vector<8x96xf32>
    %13 = vector.extract_strided_slice %9 {offsets = [0, 0], sizes = [8, 64], strides = [1, 1]} : vector<8x96xf32> to vector<8x64xf32>
    %14 = vector.extract_strided_slice %12 {offsets = [0, 0], sizes = [8, 64], strides = [1, 1]} : vector<8x96xf32> to vector<8x64xf32>
    %15 = arith.addf %13, %14 : vector<8x64xf32>
    %16 = arith.negf %15 : vector<8x64xf32>
    %17 = math.exp %16 : vector<8x64xf32>
    %cst_9 = arith.constant 1.000000e+00 : f32
    %18 = vector.broadcast %cst_9 : f32 to vector<8x64xf32>
    %19 = arith.addf %18, %17 : vector<8x64xf32>
    %20 = arith.divf %18, %19 : vector<8x64xf32>
    %21 = vector.extract_strided_slice %20 {offsets = [0, 0], sizes = [8, 32], strides = [1, 1]} : vector<8x64xf32> to vector<8x32xf32>
    %22 = vector.extract_strided_slice %20 {offsets = [0, 32], sizes = [8, 32], strides = [1, 1]} : vector<8x64xf32> to vector<8x32xf32>
    %23 = vector.extract_strided_slice %9 {offsets = [0, 64], sizes = [8, 32], strides = [1, 1]} : vector<8x96xf32> to vector<8x32xf32>
    %24 = vector.extract_strided_slice %12 {offsets = [0, 64], sizes = [8, 32], strides = [1, 1]} : vector<8x96xf32> to vector<8x32xf32>
    %25 = arith.mulf %21, %24 : vector<8x32xf32>
    %26 = arith.addf %23, %25 : vector<8x32xf32>
    %27 = math.tanh %26 : vector<8x32xf32>
    %cst_10 = arith.constant 1.000000e+00 : f32
    %28 = vector.broadcast %cst_10 : f32 to vector<8x32xf32>
    %29 = arith.subf %28, %22 : vector<8x32xf32>
    %30 = arith.mulf %29, %27 : vector<8x32xf32>
    %31 = arith.mulf %22, %6 : vector<8x32xf32>
    %32 = arith.addf %30, %31 : vector<8x32xf32>
    %33 = vector.extract_strided_slice %32 {offsets = [0, 0], sizes = [8, 16], strides = [1, 1]} : vector<8x32xf32> to vector<8x16xf32>
    %34 = vector.extract_strided_slice %32 {offsets = [0, 16], sizes = [8, 16], strides = [1, 1]} : vector<8x32xf32> to vector<8x16xf32>
    %c8 = arith.constant 8 : index
    %c0_11 = arith.constant 0 : index
    %35 = vector.load %arg1[%c8, %c0_11] : memref<256x256xf32, #tpu.memory_space<vmem>>, vector<8x96xf32>
    %c48 = arith.constant 48 : index
    %c128_12 = arith.constant 128 : index
    %36 = vector.load %arg1[%c48, %c128_12] : memref<256x256xf32, #tpu.memory_space<vmem>>, vector<8x96xf32>
    %37 = arith.addf %35, %36 : vector<8x96xf32>
    %cst_13 = arith.constant dense<0.000000e+00> : vector<8x96xf32>
    %38 = tpu.matmul %32, %0, %cst_13 {dimension_numbers = #tpu.dot_dimension_numbers<[1], [0], [0], [1], [0, 0, 1, 1], [], []>} : vector<8x32xf32>, vector<32x96xf32>, vector<8x96xf32> -> vector<8x96xf32>
    %39 = vector.broadcast %1 : vector<1x96xf32> to vector<8x96xf32>
    %40 = arith.addf %38, %39 : vector<8x96xf32>
    %41 = vector.extract_strided_slice %37 {offsets = [0, 0], sizes = [8, 64], strides = [1, 1]} : vector<8x96xf32> to vector<8x64xf32>
    %42 = vector.extract_strided_slice %40 {offsets = [0, 0], sizes = [8, 64], strides = [1, 1]} : vector<8x96xf32> to vector<8x64xf32>
    %43 = arith.addf %41, %42 : vector<8x64xf32>
    %44 = arith.negf %43 : vector<8x64xf32>
    %45 = math.exp %44 : vector<8x64xf32>
    %cst_14 = arith.constant 1.000000e+00 : f32
    %46 = vector.broadcast %cst_14 : f32 to vector<8x64xf32>
    %47 = arith.addf %46, %45 : vector<8x64xf32>
    %48 = arith.divf %46, %47 : vector<8x64xf32>
    %49 = vector.extract_strided_slice %48 {offsets = [0, 0], sizes = [8, 32], strides = [1, 1]} : vector<8x64xf32> to vector<8x32xf32>
    %50 = vector.extract_strided_slice %48 {offsets = [0, 32], sizes = [8, 32], strides = [1, 1]} : vector<8x64xf32> to vector<8x32xf32>
    %51 = vector.extract_strided_slice %37 {offsets = [0, 64], sizes = [8, 32], strides = [1, 1]} : vector<8x96xf32> to vector<8x32xf32>
    %52 = vector.extract_strided_slice %40 {offsets = [0, 64], sizes = [8, 32], strides = [1, 1]} : vector<8x96xf32> to vector<8x32xf32>
    %53 = arith.mulf %49, %52 : vector<8x32xf32>
    %54 = arith.addf %51, %53 : vector<8x32xf32>
    %55 = math.tanh %54 : vector<8x32xf32>
    %cst_15 = arith.constant 1.000000e+00 : f32
    %56 = vector.broadcast %cst_15 : f32 to vector<8x32xf32>
    %57 = arith.subf %56, %50 : vector<8x32xf32>
    %58 = arith.mulf %57, %55 : vector<8x32xf32>
    %59 = arith.mulf %50, %32 : vector<8x32xf32>
    %60 = arith.addf %58, %59 : vector<8x32xf32>
    %61 = vector.extract_strided_slice %60 {offsets = [0, 0], sizes = [8, 16], strides = [1, 1]} : vector<8x32xf32> to vector<8x16xf32>
    %62 = vector.extract_strided_slice %60 {offsets = [0, 16], sizes = [8, 16], strides = [1, 1]} : vector<8x32xf32> to vector<8x16xf32>
    %c16 = arith.constant 16 : index
    %c0_16 = arith.constant 0 : index
    %63 = vector.load %arg1[%c16, %c0_16] : memref<256x256xf32, #tpu.memory_space<vmem>>, vector<8x96xf32>
    %c40_17 = arith.constant 40 : index
    %c128_18 = arith.constant 128 : index
    %64 = vector.load %arg1[%c40_17, %c128_18] : memref<256x256xf32, #tpu.memory_space<vmem>>, vector<8x96xf32>
    %65 = arith.addf %63, %64 : vector<8x96xf32>
    %cst_19 = arith.constant dense<0.000000e+00> : vector<8x96xf32>
    %66 = tpu.matmul %60, %0, %cst_19 {dimension_numbers = #tpu.dot_dimension_numbers<[1], [0], [0], [1], [0, 0, 1, 1], [], []>} : vector<8x32xf32>, vector<32x96xf32>, vector<8x96xf32> -> vector<8x96xf32>
    %67 = vector.broadcast %1 : vector<1x96xf32> to vector<8x96xf32>
    %68 = arith.addf %66, %67 : vector<8x96xf32>
    %69 = vector.extract_strided_slice %65 {offsets = [0, 0], sizes = [8, 64], strides = [1, 1]} : vector<8x96xf32> to vector<8x64xf32>
    %70 = vector.extract_strided_slice %68 {offsets = [0, 0], sizes = [8, 64], strides = [1, 1]} : vector<8x96xf32> to vector<8x64xf32>
    %71 = arith.addf %69, %70 : vector<8x64xf32>
    %72 = arith.negf %71 : vector<8x64xf32>
    %73 = math.exp %72 : vector<8x64xf32>
    %cst_20 = arith.constant 1.000000e+00 : f32
    %74 = vector.broadcast %cst_20 : f32 to vector<8x64xf32>
    %75 = arith.addf %74, %73 : vector<8x64xf32>
    %76 = arith.divf %74, %75 : vector<8x64xf32>
    %77 = vector.extract_strided_slice %76 {offsets = [0, 0], sizes = [8, 32], strides = [1, 1]} : vector<8x64xf32> to vector<8x32xf32>
    %78 = vector.extract_strided_slice %76 {offsets = [0, 32], sizes = [8, 32], strides = [1, 1]} : vector<8x64xf32> to vector<8x32xf32>
    %79 = vector.extract_strided_slice %65 {offsets = [0, 64], sizes = [8, 32], strides = [1, 1]} : vector<8x96xf32> to vector<8x32xf32>
    %80 = vector.extract_strided_slice %68 {offsets = [0, 64], sizes = [8, 32], strides = [1, 1]} : vector<8x96xf32> to vector<8x32xf32>
    %81 = arith.mulf %77, %80 : vector<8x32xf32>
    %82 = arith.addf %79, %81 : vector<8x32xf32>
    %83 = math.tanh %82 : vector<8x32xf32>
    %cst_21 = arith.constant 1.000000e+00 : f32
    %84 = vector.broadcast %cst_21 : f32 to vector<8x32xf32>
    %85 = arith.subf %84, %78 : vector<8x32xf32>
    %86 = arith.mulf %85, %83 : vector<8x32xf32>
    %87 = arith.mulf %78, %60 : vector<8x32xf32>
    %88 = arith.addf %86, %87 : vector<8x32xf32>
    %89 = vector.extract_strided_slice %88 {offsets = [0, 0], sizes = [8, 16], strides = [1, 1]} : vector<8x32xf32> to vector<8x16xf32>
    %90 = vector.extract_strided_slice %88 {offsets = [0, 16], sizes = [8, 16], strides = [1, 1]} : vector<8x32xf32> to vector<8x16xf32>
    %c24 = arith.constant 24 : index
    %c0_22 = arith.constant 0 : index
    %91 = vector.load %arg1[%c24, %c0_22] : memref<256x256xf32, #tpu.memory_space<vmem>>, vector<8x96xf32>
    %c32_23 = arith.constant 32 : index
    %c128_24 = arith.constant 128 : index
    %92 = vector.load %arg1[%c32_23, %c128_24] : memref<256x256xf32, #tpu.memory_space<vmem>>, vector<8x96xf32>
    %93 = arith.addf %91, %92 : vector<8x96xf32>
    %cst_25 = arith.constant dense<0.000000e+00> : vector<8x96xf32>
    %94 = tpu.matmul %88, %0, %cst_25 {dimension_numbers = #tpu.dot_dimension_numbers<[1], [0], [0], [1], [0, 0, 1, 1], [], []>} : vector<8x32xf32>, vector<32x96xf32>, vector<8x96xf32> -> vector<8x96xf32>
    %95 = vector.broadcast %1 : vector<1x96xf32> to vector<8x96xf32>
    %96 = arith.addf %94, %95 : vector<8x96xf32>
    %97 = vector.extract_strided_slice %93 {offsets = [0, 0], sizes = [8, 64], strides = [1, 1]} : vector<8x96xf32> to vector<8x64xf32>
    %98 = vector.extract_strided_slice %96 {offsets = [0, 0], sizes = [8, 64], strides = [1, 1]} : vector<8x96xf32> to vector<8x64xf32>
    %99 = arith.addf %97, %98 : vector<8x64xf32>
    %100 = arith.negf %99 : vector<8x64xf32>
    %101 = math.exp %100 : vector<8x64xf32>
    %cst_26 = arith.constant 1.000000e+00 : f32
    %102 = vector.broadcast %cst_26 : f32 to vector<8x64xf32>
    %103 = arith.addf %102, %101 : vector<8x64xf32>
    %104 = arith.divf %102, %103 : vector<8x64xf32>
    %105 = vector.extract_strided_slice %104 {offsets = [0, 0], sizes = [8, 32], strides = [1, 1]} : vector<8x64xf32> to vector<8x32xf32>
    %106 = vector.extract_strided_slice %104 {offsets = [0, 32], sizes = [8, 32], strides = [1, 1]} : vector<8x64xf32> to vector<8x32xf32>
    %107 = vector.extract_strided_slice %93 {offsets = [0, 64], sizes = [8, 32], strides = [1, 1]} : vector<8x96xf32> to vector<8x32xf32>
    %108 = vector.extract_strided_slice %96 {offsets = [0, 64], sizes = [8, 32], strides = [1, 1]} : vector<8x96xf32> to vector<8x32xf32>
    %109 = arith.mulf %105, %108 : vector<8x32xf32>
    %110 = arith.addf %107, %109 : vector<8x32xf32>
    %111 = math.tanh %110 : vector<8x32xf32>
    %cst_27 = arith.constant 1.000000e+00 : f32
    %112 = vector.broadcast %cst_27 : f32 to vector<8x32xf32>
    %113 = arith.subf %112, %106 : vector<8x32xf32>
    %114 = arith.mulf %113, %111 : vector<8x32xf32>
    %115 = arith.mulf %106, %88 : vector<8x32xf32>
    %116 = arith.addf %114, %115 : vector<8x32xf32>
    %117 = vector.extract_strided_slice %116 {offsets = [0, 0], sizes = [8, 16], strides = [1, 1]} : vector<8x32xf32> to vector<8x16xf32>
    %118 = vector.extract_strided_slice %116 {offsets = [0, 16], sizes = [8, 16], strides = [1, 1]} : vector<8x32xf32> to vector<8x16xf32>
    %c32_28 = arith.constant 32 : index
    %c0_29 = arith.constant 0 : index
    %119 = vector.load %arg1[%c32_28, %c0_29] : memref<256x256xf32, #tpu.memory_space<vmem>>, vector<8x96xf32>
    %c24_30 = arith.constant 24 : index
    %c128_31 = arith.constant 128 : index
    %120 = vector.load %arg1[%c24_30, %c128_31] : memref<256x256xf32, #tpu.memory_space<vmem>>, vector<8x96xf32>
    %121 = arith.addf %119, %120 : vector<8x96xf32>
    %cst_32 = arith.constant dense<0.000000e+00> : vector<8x96xf32>
    %122 = tpu.matmul %116, %0, %cst_32 {dimension_numbers = #tpu.dot_dimension_numbers<[1], [0], [0], [1], [0, 0, 1, 1], [], []>} : vector<8x32xf32>, vector<32x96xf32>, vector<8x96xf32> -> vector<8x96xf32>
    %123 = vector.broadcast %1 : vector<1x96xf32> to vector<8x96xf32>
    %124 = arith.addf %122, %123 : vector<8x96xf32>
    %125 = vector.extract_strided_slice %121 {offsets = [0, 0], sizes = [8, 64], strides = [1, 1]} : vector<8x96xf32> to vector<8x64xf32>
    %126 = vector.extract_strided_slice %124 {offsets = [0, 0], sizes = [8, 64], strides = [1, 1]} : vector<8x96xf32> to vector<8x64xf32>
    %127 = arith.addf %125, %126 : vector<8x64xf32>
    %128 = arith.negf %127 : vector<8x64xf32>
    %129 = math.exp %128 : vector<8x64xf32>
    %cst_33 = arith.constant 1.000000e+00 : f32
    %130 = vector.broadcast %cst_33 : f32 to vector<8x64xf32>
    %131 = arith.addf %130, %129 : vector<8x64xf32>
    %132 = arith.divf %130, %131 : vector<8x64xf32>
    %133 = vector.extract_strided_slice %132 {offsets = [0, 0], sizes = [8, 32], strides = [1, 1]} : vector<8x64xf32> to vector<8x32xf32>
    %134 = vector.extract_strided_slice %132 {offsets = [0, 32], sizes = [8, 32], strides = [1, 1]} : vector<8x64xf32> to vector<8x32xf32>
    %135 = vector.extract_strided_slice %121 {offsets = [0, 64], sizes = [8, 32], strides = [1, 1]} : vector<8x96xf32> to vector<8x32xf32>
    %136 = vector.extract_strided_slice %124 {offsets = [0, 64], sizes = [8, 32], strides = [1, 1]} : vector<8x96xf32> to vector<8x32xf32>
    %137 = arith.mulf %133, %136 : vector<8x32xf32>
    %138 = arith.addf %135, %137 : vector<8x32xf32>
    %139 = math.tanh %138 : vector<8x32xf32>
    %cst_34 = arith.constant 1.000000e+00 : f32
    %140 = vector.broadcast %cst_34 : f32 to vector<8x32xf32>
    %141 = arith.subf %140, %134 : vector<8x32xf32>
    %142 = arith.mulf %141, %139 : vector<8x32xf32>
    %143 = arith.mulf %134, %116 : vector<8x32xf32>
    %144 = arith.addf %142, %143 : vector<8x32xf32>
    %145 = vector.extract_strided_slice %144 {offsets = [0, 0], sizes = [8, 16], strides = [1, 1]} : vector<8x32xf32> to vector<8x16xf32>
    %146 = vector.extract_strided_slice %144 {offsets = [0, 16], sizes = [8, 16], strides = [1, 1]} : vector<8x32xf32> to vector<8x16xf32>
    %c40_35 = arith.constant 40 : index
    %c0_36 = arith.constant 0 : index
    %147 = vector.load %arg1[%c40_35, %c0_36] : memref<256x256xf32, #tpu.memory_space<vmem>>, vector<8x96xf32>
    %c16_37 = arith.constant 16 : index
    %c128_38 = arith.constant 128 : index
    %148 = vector.load %arg1[%c16_37, %c128_38] : memref<256x256xf32, #tpu.memory_space<vmem>>, vector<8x96xf32>
    %149 = arith.addf %147, %148 : vector<8x96xf32>
    %cst_39 = arith.constant dense<0.000000e+00> : vector<8x96xf32>
    %150 = tpu.matmul %144, %0, %cst_39 {dimension_numbers = #tpu.dot_dimension_numbers<[1], [0], [0], [1], [0, 0, 1, 1], [], []>} : vector<8x32xf32>, vector<32x96xf32>, vector<8x96xf32> -> vector<8x96xf32>
    %151 = vector.broadcast %1 : vector<1x96xf32> to vector<8x96xf32>
    %152 = arith.addf %150, %151 : vector<8x96xf32>
    %153 = vector.extract_strided_slice %149 {offsets = [0, 0], sizes = [8, 64], strides = [1, 1]} : vector<8x96xf32> to vector<8x64xf32>
    %154 = vector.extract_strided_slice %152 {offsets = [0, 0], sizes = [8, 64], strides = [1, 1]} : vector<8x96xf32> to vector<8x64xf32>
    %155 = arith.addf %153, %154 : vector<8x64xf32>
    %156 = arith.negf %155 : vector<8x64xf32>
    %157 = math.exp %156 : vector<8x64xf32>
    %cst_40 = arith.constant 1.000000e+00 : f32
    %158 = vector.broadcast %cst_40 : f32 to vector<8x64xf32>
    %159 = arith.addf %158, %157 : vector<8x64xf32>
    %160 = arith.divf %158, %159 : vector<8x64xf32>
    %161 = vector.extract_strided_slice %160 {offsets = [0, 0], sizes = [8, 32], strides = [1, 1]} : vector<8x64xf32> to vector<8x32xf32>
    %162 = vector.extract_strided_slice %160 {offsets = [0, 32], sizes = [8, 32], strides = [1, 1]} : vector<8x64xf32> to vector<8x32xf32>
    %163 = vector.extract_strided_slice %149 {offsets = [0, 64], sizes = [8, 32], strides = [1, 1]} : vector<8x96xf32> to vector<8x32xf32>
    %164 = vector.extract_strided_slice %152 {offsets = [0, 64], sizes = [8, 32], strides = [1, 1]} : vector<8x96xf32> to vector<8x32xf32>
    %165 = arith.mulf %161, %164 : vector<8x32xf32>
    %166 = arith.addf %163, %165 : vector<8x32xf32>
    %167 = math.tanh %166 : vector<8x32xf32>
    %cst_41 = arith.constant 1.000000e+00 : f32
    %168 = vector.broadcast %cst_41 : f32 to vector<8x32xf32>
    %169 = arith.subf %168, %162 : vector<8x32xf32>
    %170 = arith.mulf %169, %167 : vector<8x32xf32>
    %171 = arith.mulf %162, %144 : vector<8x32xf32>
    %172 = arith.addf %170, %171 : vector<8x32xf32>
    %173 = vector.extract_strided_slice %172 {offsets = [0, 0], sizes = [8, 16], strides = [1, 1]} : vector<8x32xf32> to vector<8x16xf32>
    %174 = vector.extract_strided_slice %172 {offsets = [0, 16], sizes = [8, 16], strides = [1, 1]} : vector<8x32xf32> to vector<8x16xf32>
    %c48_42 = arith.constant 48 : index
    %c0_43 = arith.constant 0 : index
    %175 = vector.load %arg1[%c48_42, %c0_43] : memref<256x256xf32, #tpu.memory_space<vmem>>, vector<8x96xf32>
    %c8_44 = arith.constant 8 : index
    %c128_45 = arith.constant 128 : index
    %176 = vector.load %arg1[%c8_44, %c128_45] : memref<256x256xf32, #tpu.memory_space<vmem>>, vector<8x96xf32>
    %177 = arith.addf %175, %176 : vector<8x96xf32>
    %cst_46 = arith.constant dense<0.000000e+00> : vector<8x96xf32>
    %178 = tpu.matmul %172, %0, %cst_46 {dimension_numbers = #tpu.dot_dimension_numbers<[1], [0], [0], [1], [0, 0, 1, 1], [], []>} : vector<8x32xf32>, vector<32x96xf32>, vector<8x96xf32> -> vector<8x96xf32>
    %179 = vector.broadcast %1 : vector<1x96xf32> to vector<8x96xf32>
    %180 = arith.addf %178, %179 : vector<8x96xf32>
    %181 = vector.extract_strided_slice %177 {offsets = [0, 0], sizes = [8, 64], strides = [1, 1]} : vector<8x96xf32> to vector<8x64xf32>
    %182 = vector.extract_strided_slice %180 {offsets = [0, 0], sizes = [8, 64], strides = [1, 1]} : vector<8x96xf32> to vector<8x64xf32>
    %183 = arith.addf %181, %182 : vector<8x64xf32>
    %184 = arith.negf %183 : vector<8x64xf32>
    %185 = math.exp %184 : vector<8x64xf32>
    %cst_47 = arith.constant 1.000000e+00 : f32
    %186 = vector.broadcast %cst_47 : f32 to vector<8x64xf32>
    %187 = arith.addf %186, %185 : vector<8x64xf32>
    %188 = arith.divf %186, %187 : vector<8x64xf32>
    %189 = vector.extract_strided_slice %188 {offsets = [0, 0], sizes = [8, 32], strides = [1, 1]} : vector<8x64xf32> to vector<8x32xf32>
    %190 = vector.extract_strided_slice %188 {offsets = [0, 32], sizes = [8, 32], strides = [1, 1]} : vector<8x64xf32> to vector<8x32xf32>
    %191 = vector.extract_strided_slice %177 {offsets = [0, 64], sizes = [8, 32], strides = [1, 1]} : vector<8x96xf32> to vector<8x32xf32>
    %192 = vector.extract_strided_slice %180 {offsets = [0, 64], sizes = [8, 32], strides = [1, 1]} : vector<8x96xf32> to vector<8x32xf32>
    %193 = arith.mulf %189, %192 : vector<8x32xf32>
    %194 = arith.addf %191, %193 : vector<8x32xf32>
    %195 = math.tanh %194 : vector<8x32xf32>
    %cst_48 = arith.constant 1.000000e+00 : f32
    %196 = vector.broadcast %cst_48 : f32 to vector<8x32xf32>
    %197 = arith.subf %196, %190 : vector<8x32xf32>
    %198 = arith.mulf %197, %195 : vector<8x32xf32>
    %199 = arith.mulf %190, %172 : vector<8x32xf32>
    %200 = arith.addf %198, %199 : vector<8x32xf32>
    %201 = vector.extract_strided_slice %200 {offsets = [0, 0], sizes = [8, 16], strides = [1, 1]} : vector<8x32xf32> to vector<8x16xf32>
    %202 = vector.extract_strided_slice %200 {offsets = [0, 16], sizes = [8, 16], strides = [1, 1]} : vector<8x32xf32> to vector<8x16xf32>
    %c56_49 = arith.constant 56 : index
    %c0_50 = arith.constant 0 : index
    %203 = vector.load %arg1[%c56_49, %c0_50] : memref<256x256xf32, #tpu.memory_space<vmem>>, vector<8x96xf32>
    %c0_51 = arith.constant 0 : index
    %c128_52 = arith.constant 128 : index
    %204 = vector.load %arg1[%c0_51, %c128_52] : memref<256x256xf32, #tpu.memory_space<vmem>>, vector<8x96xf32>
    %205 = arith.addf %203, %204 : vector<8x96xf32>
    %cst_53 = arith.constant dense<0.000000e+00> : vector<8x96xf32>
    %206 = tpu.matmul %200, %0, %cst_53 {dimension_numbers = #tpu.dot_dimension_numbers<[1], [0], [0], [1], [0, 0, 1, 1], [], []>} : vector<8x32xf32>, vector<32x96xf32>, vector<8x96xf32> -> vector<8x96xf32>
    %207 = vector.broadcast %1 : vector<1x96xf32> to vector<8x96xf32>
    %208 = arith.addf %206, %207 : vector<8x96xf32>
    %209 = vector.extract_strided_slice %205 {offsets = [0, 0], sizes = [8, 64], strides = [1, 1]} : vector<8x96xf32> to vector<8x64xf32>
    %210 = vector.extract_strided_slice %208 {offsets = [0, 0], sizes = [8, 64], strides = [1, 1]} : vector<8x96xf32> to vector<8x64xf32>
    %211 = arith.addf %209, %210 : vector<8x64xf32>
    %212 = arith.negf %211 : vector<8x64xf32>
    %213 = math.exp %212 : vector<8x64xf32>
    %cst_54 = arith.constant 1.000000e+00 : f32
    %214 = vector.broadcast %cst_54 : f32 to vector<8x64xf32>
    %215 = arith.addf %214, %213 : vector<8x64xf32>
    %216 = arith.divf %214, %215 : vector<8x64xf32>
    %217 = vector.extract_strided_slice %216 {offsets = [0, 0], sizes = [8, 32], strides = [1, 1]} : vector<8x64xf32> to vector<8x32xf32>
    %218 = vector.extract_strided_slice %216 {offsets = [0, 32], sizes = [8, 32], strides = [1, 1]} : vector<8x64xf32> to vector<8x32xf32>
    %219 = vector.extract_strided_slice %205 {offsets = [0, 64], sizes = [8, 32], strides = [1, 1]} : vector<8x96xf32> to vector<8x32xf32>
    %220 = vector.extract_strided_slice %208 {offsets = [0, 64], sizes = [8, 32], strides = [1, 1]} : vector<8x96xf32> to vector<8x32xf32>
    %221 = arith.mulf %217, %220 : vector<8x32xf32>
    %222 = arith.addf %219, %221 : vector<8x32xf32>
    %223 = math.tanh %222 : vector<8x32xf32>
    %cst_55 = arith.constant 1.000000e+00 : f32
    %224 = vector.broadcast %cst_55 : f32 to vector<8x32xf32>
    %225 = arith.subf %224, %218 : vector<8x32xf32>
    %226 = arith.mulf %225, %223 : vector<8x32xf32>
    %227 = arith.mulf %218, %200 : vector<8x32xf32>
    %228 = arith.addf %226, %227 : vector<8x32xf32>
    %229 = vector.extract_strided_slice %228 {offsets = [0, 0], sizes = [8, 16], strides = [1, 1]} : vector<8x32xf32> to vector<8x16xf32>
    %230 = vector.extract_strided_slice %228 {offsets = [0, 16], sizes = [8, 16], strides = [1, 1]} : vector<8x32xf32> to vector<8x16xf32>
    %231 = tpu.concatenate %33, %230 in 1 : vector<8x16xf32>, vector<8x16xf32> -> vector<8x32xf32>
    %232 = tpu.concatenate %61, %202 in 1 : vector<8x16xf32>, vector<8x16xf32> -> vector<8x32xf32>
    %233 = tpu.concatenate %89, %174 in 1 : vector<8x16xf32>, vector<8x16xf32> -> vector<8x32xf32>
    %234 = tpu.concatenate %117, %146 in 1 : vector<8x16xf32>, vector<8x16xf32> -> vector<8x32xf32>
    %235 = tpu.concatenate %145, %118 in 1 : vector<8x16xf32>, vector<8x16xf32> -> vector<8x32xf32>
    %236 = tpu.concatenate %173, %90 in 1 : vector<8x16xf32>, vector<8x16xf32> -> vector<8x32xf32>
    %237 = tpu.concatenate %201, %62 in 1 : vector<8x16xf32>, vector<8x16xf32> -> vector<8x32xf32>
    %238 = tpu.concatenate %229, %34 in 1 : vector<8x16xf32>, vector<8x16xf32> -> vector<8x32xf32>
    %239 = tpu.concatenate %231, %232, %233, %234, %235, %236, %237, %238 in 0 : vector<8x32xf32>, vector<8x32xf32>, vector<8x32xf32>, vector<8x32xf32>, vector<8x32xf32>, vector<8x32xf32>, vector<8x32xf32>, vector<8x32xf32> -> vector<64x32xf32>
    %cst_56 = arith.constant dense<0.000000e+00> : vector<64x32xf32>
    %240 = tpu.matmul %239, %2, %cst_56 {dimension_numbers = #tpu.dot_dimension_numbers<[1], [0], [0], [1], [0, 0, 1, 1], [], []>} : vector<64x32xf32>, vector<32x32xf32>, vector<64x32xf32> -> vector<64x32xf32>
    %241 = vector.broadcast %3 : vector<1x32xf32> to vector<64x32xf32>
    %242 = arith.addf %240, %241 : vector<64x32xf32>
    %243 = math.tanh %242 : vector<64x32xf32>
    %244 = vector.broadcast %4 : vector<1x32xf32> to vector<64x32xf32>
    %245 = arith.mulf %243, %244 : vector<64x32xf32>
    %cst_57 = arith.constant dense<0.000000e+00> : vector<64xf32>
    %246 = vector.multi_reduction <add>, %245, %cst_57 [1] : vector<64x32xf32> to vector<64xf32>
    %247 = vector.shape_cast %246 : vector<64xf32> to vector<64x1xf32>
    %248 = math.tanh %247 : vector<64x1xf32>
    %249 = vector.shape_cast %248 : vector<64x1xf32> to vector<1x64x1xf32>
    %cst_58 = arith.constant dense<0xFF800000> : vector<1xf32>
    %250 = vector.multi_reduction <maximumf>, %249, %cst_58 [1, 2] : vector<1x64x1xf32> to vector<1xf32>
    %251 = vector.shape_cast %250 : vector<1xf32> to vector<1x1x1xf32>
    %252 = vector.extract %251[0, 0, 0] : f32 from vector<1x1x1xf32>
    %253 = vector.broadcast %252 : f32 to vector<1x1xf32>
    %254 = vector.broadcast %253 : vector<1x1xf32> to vector<64x1xf32>
    %255 = arith.subf %248, %254 : vector<64x1xf32>
    %256 = math.exp %255 : vector<64x1xf32>
    %257 = vector.broadcast %256 : vector<64x1xf32> to vector<64x32xf32>
    %258 = arith.mulf %257, %239 : vector<64x32xf32>
    %259 = tpu.concatenate %258, %256 in 1 : vector<64x32xf32>, vector<64x1xf32> -> vector<64x33xf32>
    %cst_59 = arith.constant dense<0.000000e+00> : vector<8x33xf32>
    %260 = tpu.matmul %5, %259, %cst_59 {dimension_numbers = #tpu.dot_dimension_numbers<[1], [0], [0], [1], [0, 0, 1, 1], [], []>} : vector<8x64xf32>, vector<64x33xf32>, vector<8x33xf32> -> vector<8x33xf32>
    %261 = vector.extract_strided_slice %260 {offsets = [0, 0], sizes = [8, 32], strides = [1, 1]} : vector<8x33xf32> to vector<8x32xf32>
    %262 = vector.extract_strided_slice %260 {offsets = [0, 32], sizes = [8, 1], strides = [1, 1]} : vector<8x33xf32> to vector<8x1xf32>
    %263 = vector.broadcast %262 : vector<8x1xf32> to vector<8x32xf32>
    %264 = arith.divf %261, %263 : vector<8x32xf32>
    %c64 = arith.constant 64 : index
    %c0_60 = arith.constant 0 : index
    %265 = vector.load %arg1[%c64, %c0_60] : memref<256x256xf32, #tpu.memory_space<vmem>>, vector<8x96xf32>
    %c120 = arith.constant 120 : index
    %c128_61 = arith.constant 128 : index
    %266 = vector.load %arg1[%c120, %c128_61] : memref<256x256xf32, #tpu.memory_space<vmem>>, vector<8x96xf32>
    %267 = arith.addf %265, %266 : vector<8x96xf32>
    %cst_62 = arith.constant dense<0.000000e+00> : vector<8x96xf32>
    %268 = tpu.matmul %228, %0, %cst_62 {dimension_numbers = #tpu.dot_dimension_numbers<[1], [0], [0], [1], [0, 0, 1, 1], [], []>} : vector<8x32xf32>, vector<32x96xf32>, vector<8x96xf32> -> vector<8x96xf32>
    %269 = vector.broadcast %1 : vector<1x96xf32> to vector<8x96xf32>
    %270 = arith.addf %268, %269 : vector<8x96xf32>
    %271 = vector.extract_strided_slice %267 {offsets = [0, 0], sizes = [8, 64], strides = [1, 1]} : vector<8x96xf32> to vector<8x64xf32>
    %272 = vector.extract_strided_slice %270 {offsets = [0, 0], sizes = [8, 64], strides = [1, 1]} : vector<8x96xf32> to vector<8x64xf32>
    %273 = arith.addf %271, %272 : vector<8x64xf32>
    %274 = arith.negf %273 : vector<8x64xf32>
    %275 = math.exp %274 : vector<8x64xf32>
    %cst_63 = arith.constant 1.000000e+00 : f32
    %276 = vector.broadcast %cst_63 : f32 to vector<8x64xf32>
    %277 = arith.addf %276, %275 : vector<8x64xf32>
    %278 = arith.divf %276, %277 : vector<8x64xf32>
    %279 = vector.extract_strided_slice %278 {offsets = [0, 0], sizes = [8, 32], strides = [1, 1]} : vector<8x64xf32> to vector<8x32xf32>
    %280 = vector.extract_strided_slice %278 {offsets = [0, 32], sizes = [8, 32], strides = [1, 1]} : vector<8x64xf32> to vector<8x32xf32>
    %281 = vector.extract_strided_slice %267 {offsets = [0, 64], sizes = [8, 32], strides = [1, 1]} : vector<8x96xf32> to vector<8x32xf32>
    %282 = vector.extract_strided_slice %270 {offsets = [0, 64], sizes = [8, 32], strides = [1, 1]} : vector<8x96xf32> to vector<8x32xf32>
    %283 = arith.mulf %279, %282 : vector<8x32xf32>
    %284 = arith.addf %281, %283 : vector<8x32xf32>
    %285 = math.tanh %284 : vector<8x32xf32>
    %cst_64 = arith.constant 1.000000e+00 : f32
    %286 = vector.broadcast %cst_64 : f32 to vector<8x32xf32>
    %287 = arith.subf %286, %280 : vector<8x32xf32>
    %288 = arith.mulf %287, %285 : vector<8x32xf32>
    %289 = arith.mulf %280, %228 : vector<8x32xf32>
    %290 = arith.addf %288, %289 : vector<8x32xf32>
    %291 = vector.extract_strided_slice %290 {offsets = [0, 0], sizes = [8, 16], strides = [1, 1]} : vector<8x32xf32> to vector<8x16xf32>
    %292 = vector.extract_strided_slice %290 {offsets = [0, 16], sizes = [8, 16], strides = [1, 1]} : vector<8x32xf32> to vector<8x16xf32>
    %c72_65 = arith.constant 72 : index
    %c0_66 = arith.constant 0 : index
    %293 = vector.load %arg1[%c72_65, %c0_66] : memref<256x256xf32, #tpu.memory_space<vmem>>, vector<8x96xf32>
    %c112 = arith.constant 112 : index
    %c128_67 = arith.constant 128 : index
    %294 = vector.load %arg1[%c112, %c128_67] : memref<256x256xf32, #tpu.memory_space<vmem>>, vector<8x96xf32>
    %295 = arith.addf %293, %294 : vector<8x96xf32>
    %cst_68 = arith.constant dense<0.000000e+00> : vector<8x96xf32>
    %296 = tpu.matmul %290, %0, %cst_68 {dimension_numbers = #tpu.dot_dimension_numbers<[1], [0], [0], [1], [0, 0, 1, 1], [], []>} : vector<8x32xf32>, vector<32x96xf32>, vector<8x96xf32> -> vector<8x96xf32>
    %297 = vector.broadcast %1 : vector<1x96xf32> to vector<8x96xf32>
    %298 = arith.addf %296, %297 : vector<8x96xf32>
    %299 = vector.extract_strided_slice %295 {offsets = [0, 0], sizes = [8, 64], strides = [1, 1]} : vector<8x96xf32> to vector<8x64xf32>
    %300 = vector.extract_strided_slice %298 {offsets = [0, 0], sizes = [8, 64], strides = [1, 1]} : vector<8x96xf32> to vector<8x64xf32>
    %301 = arith.addf %299, %300 : vector<8x64xf32>
    %302 = arith.negf %301 : vector<8x64xf32>
    %303 = math.exp %302 : vector<8x64xf32>
    %cst_69 = arith.constant 1.000000e+00 : f32
    %304 = vector.broadcast %cst_69 : f32 to vector<8x64xf32>
    %305 = arith.addf %304, %303 : vector<8x64xf32>
    %306 = arith.divf %304, %305 : vector<8x64xf32>
    %307 = vector.extract_strided_slice %306 {offsets = [0, 0], sizes = [8, 32], strides = [1, 1]} : vector<8x64xf32> to vector<8x32xf32>
    %308 = vector.extract_strided_slice %306 {offsets = [0, 32], sizes = [8, 32], strides = [1, 1]} : vector<8x64xf32> to vector<8x32xf32>
    %309 = vector.extract_strided_slice %295 {offsets = [0, 64], sizes = [8, 32], strides = [1, 1]} : vector<8x96xf32> to vector<8x32xf32>
    %310 = vector.extract_strided_slice %298 {offsets = [0, 64], sizes = [8, 32], strides = [1, 1]} : vector<8x96xf32> to vector<8x32xf32>
    %311 = arith.mulf %307, %310 : vector<8x32xf32>
    %312 = arith.addf %309, %311 : vector<8x32xf32>
    %313 = math.tanh %312 : vector<8x32xf32>
    %cst_70 = arith.constant 1.000000e+00 : f32
    %314 = vector.broadcast %cst_70 : f32 to vector<8x32xf32>
    %315 = arith.subf %314, %308 : vector<8x32xf32>
    %316 = arith.mulf %315, %313 : vector<8x32xf32>
    %317 = arith.mulf %308, %290 : vector<8x32xf32>
    %318 = arith.addf %316, %317 : vector<8x32xf32>
    %319 = vector.extract_strided_slice %318 {offsets = [0, 0], sizes = [8, 16], strides = [1, 1]} : vector<8x32xf32> to vector<8x16xf32>
    %320 = vector.extract_strided_slice %318 {offsets = [0, 16], sizes = [8, 16], strides = [1, 1]} : vector<8x32xf32> to vector<8x16xf32>
    %c80_71 = arith.constant 80 : index
    %c0_72 = arith.constant 0 : index
    %321 = vector.load %arg1[%c80_71, %c0_72] : memref<256x256xf32, #tpu.memory_space<vmem>>, vector<8x96xf32>
    %c104 = arith.constant 104 : index
    %c128_73 = arith.constant 128 : index
    %322 = vector.load %arg1[%c104, %c128_73] : memref<256x256xf32, #tpu.memory_space<vmem>>, vector<8x96xf32>
    %323 = arith.addf %321, %322 : vector<8x96xf32>
    %cst_74 = arith.constant dense<0.000000e+00> : vector<8x96xf32>
    %324 = tpu.matmul %318, %0, %cst_74 {dimension_numbers = #tpu.dot_dimension_numbers<[1], [0], [0], [1], [0, 0, 1, 1], [], []>} : vector<8x32xf32>, vector<32x96xf32>, vector<8x96xf32> -> vector<8x96xf32>
    %325 = vector.broadcast %1 : vector<1x96xf32> to vector<8x96xf32>
    %326 = arith.addf %324, %325 : vector<8x96xf32>
    %327 = vector.extract_strided_slice %323 {offsets = [0, 0], sizes = [8, 64], strides = [1, 1]} : vector<8x96xf32> to vector<8x64xf32>
    %328 = vector.extract_strided_slice %326 {offsets = [0, 0], sizes = [8, 64], strides = [1, 1]} : vector<8x96xf32> to vector<8x64xf32>
    %329 = arith.addf %327, %328 : vector<8x64xf32>
    %330 = arith.negf %329 : vector<8x64xf32>
    %331 = math.exp %330 : vector<8x64xf32>
    %cst_75 = arith.constant 1.000000e+00 : f32
    %332 = vector.broadcast %cst_75 : f32 to vector<8x64xf32>
    %333 = arith.addf %332, %331 : vector<8x64xf32>
    %334 = arith.divf %332, %333 : vector<8x64xf32>
    %335 = vector.extract_strided_slice %334 {offsets = [0, 0], sizes = [8, 32], strides = [1, 1]} : vector<8x64xf32> to vector<8x32xf32>
    %336 = vector.extract_strided_slice %334 {offsets = [0, 32], sizes = [8, 32], strides = [1, 1]} : vector<8x64xf32> to vector<8x32xf32>
    %337 = vector.extract_strided_slice %323 {offsets = [0, 64], sizes = [8, 32], strides = [1, 1]} : vector<8x96xf32> to vector<8x32xf32>
    %338 = vector.extract_strided_slice %326 {offsets = [0, 64], sizes = [8, 32], strides = [1, 1]} : vector<8x96xf32> to vector<8x32xf32>
    %339 = arith.mulf %335, %338 : vector<8x32xf32>
    %340 = arith.addf %337, %339 : vector<8x32xf32>
    %341 = math.tanh %340 : vector<8x32xf32>
    %cst_76 = arith.constant 1.000000e+00 : f32
    %342 = vector.broadcast %cst_76 : f32 to vector<8x32xf32>
    %343 = arith.subf %342, %336 : vector<8x32xf32>
    %344 = arith.mulf %343, %341 : vector<8x32xf32>
    %345 = arith.mulf %336, %318 : vector<8x32xf32>
    %346 = arith.addf %344, %345 : vector<8x32xf32>
    %347 = vector.extract_strided_slice %346 {offsets = [0, 0], sizes = [8, 16], strides = [1, 1]} : vector<8x32xf32> to vector<8x16xf32>
    %348 = vector.extract_strided_slice %346 {offsets = [0, 16], sizes = [8, 16], strides = [1, 1]} : vector<8x32xf32> to vector<8x16xf32>
    %c88_77 = arith.constant 88 : index
    %c0_78 = arith.constant 0 : index
    %349 = vector.load %arg1[%c88_77, %c0_78] : memref<256x256xf32, #tpu.memory_space<vmem>>, vector<8x96xf32>
    %c96 = arith.constant 96 : index
    %c128_79 = arith.constant 128 : index
    %350 = vector.load %arg1[%c96, %c128_79] : memref<256x256xf32, #tpu.memory_space<vmem>>, vector<8x96xf32>
    %351 = arith.addf %349, %350 : vector<8x96xf32>
    %cst_80 = arith.constant dense<0.000000e+00> : vector<8x96xf32>
    %352 = tpu.matmul %346, %0, %cst_80 {dimension_numbers = #tpu.dot_dimension_numbers<[1], [0], [0], [1], [0, 0, 1, 1], [], []>} : vector<8x32xf32>, vector<32x96xf32>, vector<8x96xf32> -> vector<8x96xf32>
    %353 = vector.broadcast %1 : vector<1x96xf32> to vector<8x96xf32>
    %354 = arith.addf %352, %353 : vector<8x96xf32>
    %355 = vector.extract_strided_slice %351 {offsets = [0, 0], sizes = [8, 64], strides = [1, 1]} : vector<8x96xf32> to vector<8x64xf32>
    %356 = vector.extract_strided_slice %354 {offsets = [0, 0], sizes = [8, 64], strides = [1, 1]} : vector<8x96xf32> to vector<8x64xf32>
    %357 = arith.addf %355, %356 : vector<8x64xf32>
    %358 = arith.negf %357 : vector<8x64xf32>
    %359 = math.exp %358 : vector<8x64xf32>
    %cst_81 = arith.constant 1.000000e+00 : f32
    %360 = vector.broadcast %cst_81 : f32 to vector<8x64xf32>
    %361 = arith.addf %360, %359 : vector<8x64xf32>
    %362 = arith.divf %360, %361 : vector<8x64xf32>
    %363 = vector.extract_strided_slice %362 {offsets = [0, 0], sizes = [8, 32], strides = [1, 1]} : vector<8x64xf32> to vector<8x32xf32>
    %364 = vector.extract_strided_slice %362 {offsets = [0, 32], sizes = [8, 32], strides = [1, 1]} : vector<8x64xf32> to vector<8x32xf32>
    %365 = vector.extract_strided_slice %351 {offsets = [0, 64], sizes = [8, 32], strides = [1, 1]} : vector<8x96xf32> to vector<8x32xf32>
    %366 = vector.extract_strided_slice %354 {offsets = [0, 64], sizes = [8, 32], strides = [1, 1]} : vector<8x96xf32> to vector<8x32xf32>
    %367 = arith.mulf %363, %366 : vector<8x32xf32>
    %368 = arith.addf %365, %367 : vector<8x32xf32>
    %369 = math.tanh %368 : vector<8x32xf32>
    %cst_82 = arith.constant 1.000000e+00 : f32
    %370 = vector.broadcast %cst_82 : f32 to vector<8x32xf32>
    %371 = arith.subf %370, %364 : vector<8x32xf32>
    %372 = arith.mulf %371, %369 : vector<8x32xf32>
    %373 = arith.mulf %364, %346 : vector<8x32xf32>
    %374 = arith.addf %372, %373 : vector<8x32xf32>
    %375 = vector.extract_strided_slice %374 {offsets = [0, 0], sizes = [8, 16], strides = [1, 1]} : vector<8x32xf32> to vector<8x16xf32>
    %376 = vector.extract_strided_slice %374 {offsets = [0, 16], sizes = [8, 16], strides = [1, 1]} : vector<8x32xf32> to vector<8x16xf32>
    %c96_83 = arith.constant 96 : index
    %c0_84 = arith.constant 0 : index
    %377 = vector.load %arg1[%c96_83, %c0_84] : memref<256x256xf32, #tpu.memory_space<vmem>>, vector<8x96xf32>
    %c88_85 = arith.constant 88 : index
    %c128_86 = arith.constant 128 : index
    %378 = vector.load %arg1[%c88_85, %c128_86] : memref<256x256xf32, #tpu.memory_space<vmem>>, vector<8x96xf32>
    %379 = arith.addf %377, %378 : vector<8x96xf32>
    %cst_87 = arith.constant dense<0.000000e+00> : vector<8x96xf32>
    %380 = tpu.matmul %374, %0, %cst_87 {dimension_numbers = #tpu.dot_dimension_numbers<[1], [0], [0], [1], [0, 0, 1, 1], [], []>} : vector<8x32xf32>, vector<32x96xf32>, vector<8x96xf32> -> vector<8x96xf32>
    %381 = vector.broadcast %1 : vector<1x96xf32> to vector<8x96xf32>
    %382 = arith.addf %380, %381 : vector<8x96xf32>
    %383 = vector.extract_strided_slice %379 {offsets = [0, 0], sizes = [8, 64], strides = [1, 1]} : vector<8x96xf32> to vector<8x64xf32>
    %384 = vector.extract_strided_slice %382 {offsets = [0, 0], sizes = [8, 64], strides = [1, 1]} : vector<8x96xf32> to vector<8x64xf32>
    %385 = arith.addf %383, %384 : vector<8x64xf32>
    %386 = arith.negf %385 : vector<8x64xf32>
    %387 = math.exp %386 : vector<8x64xf32>
    %cst_88 = arith.constant 1.000000e+00 : f32
    %388 = vector.broadcast %cst_88 : f32 to vector<8x64xf32>
    %389 = arith.addf %388, %387 : vector<8x64xf32>
    %390 = arith.divf %388, %389 : vector<8x64xf32>
    %391 = vector.extract_strided_slice %390 {offsets = [0, 0], sizes = [8, 32], strides = [1, 1]} : vector<8x64xf32> to vector<8x32xf32>
    %392 = vector.extract_strided_slice %390 {offsets = [0, 32], sizes = [8, 32], strides = [1, 1]} : vector<8x64xf32> to vector<8x32xf32>
    %393 = vector.extract_strided_slice %379 {offsets = [0, 64], sizes = [8, 32], strides = [1, 1]} : vector<8x96xf32> to vector<8x32xf32>
    %394 = vector.extract_strided_slice %382 {offsets = [0, 64], sizes = [8, 32], strides = [1, 1]} : vector<8x96xf32> to vector<8x32xf32>
    %395 = arith.mulf %391, %394 : vector<8x32xf32>
    %396 = arith.addf %393, %395 : vector<8x32xf32>
    %397 = math.tanh %396 : vector<8x32xf32>
    %cst_89 = arith.constant 1.000000e+00 : f32
    %398 = vector.broadcast %cst_89 : f32 to vector<8x32xf32>
    %399 = arith.subf %398, %392 : vector<8x32xf32>
    %400 = arith.mulf %399, %397 : vector<8x32xf32>
    %401 = arith.mulf %392, %374 : vector<8x32xf32>
    %402 = arith.addf %400, %401 : vector<8x32xf32>
    %403 = vector.extract_strided_slice %402 {offsets = [0, 0], sizes = [8, 16], strides = [1, 1]} : vector<8x32xf32> to vector<8x16xf32>
    %404 = vector.extract_strided_slice %402 {offsets = [0, 16], sizes = [8, 16], strides = [1, 1]} : vector<8x32xf32> to vector<8x16xf32>
    %c104_90 = arith.constant 104 : index
    %c0_91 = arith.constant 0 : index
    %405 = vector.load %arg1[%c104_90, %c0_91] : memref<256x256xf32, #tpu.memory_space<vmem>>, vector<8x96xf32>
    %c80_92 = arith.constant 80 : index
    %c128_93 = arith.constant 128 : index
    %406 = vector.load %arg1[%c80_92, %c128_93] : memref<256x256xf32, #tpu.memory_space<vmem>>, vector<8x96xf32>
    %407 = arith.addf %405, %406 : vector<8x96xf32>
    %cst_94 = arith.constant dense<0.000000e+00> : vector<8x96xf32>
    %408 = tpu.matmul %402, %0, %cst_94 {dimension_numbers = #tpu.dot_dimension_numbers<[1], [0], [0], [1], [0, 0, 1, 1], [], []>} : vector<8x32xf32>, vector<32x96xf32>, vector<8x96xf32> -> vector<8x96xf32>
    %409 = vector.broadcast %1 : vector<1x96xf32> to vector<8x96xf32>
    %410 = arith.addf %408, %409 : vector<8x96xf32>
    %411 = vector.extract_strided_slice %407 {offsets = [0, 0], sizes = [8, 64], strides = [1, 1]} : vector<8x96xf32> to vector<8x64xf32>
    %412 = vector.extract_strided_slice %410 {offsets = [0, 0], sizes = [8, 64], strides = [1, 1]} : vector<8x96xf32> to vector<8x64xf32>
    %413 = arith.addf %411, %412 : vector<8x64xf32>
    %414 = arith.negf %413 : vector<8x64xf32>
    %415 = math.exp %414 : vector<8x64xf32>
    %cst_95 = arith.constant 1.000000e+00 : f32
    %416 = vector.broadcast %cst_95 : f32 to vector<8x64xf32>
    %417 = arith.addf %416, %415 : vector<8x64xf32>
    %418 = arith.divf %416, %417 : vector<8x64xf32>
    %419 = vector.extract_strided_slice %418 {offsets = [0, 0], sizes = [8, 32], strides = [1, 1]} : vector<8x64xf32> to vector<8x32xf32>
    %420 = vector.extract_strided_slice %418 {offsets = [0, 32], sizes = [8, 32], strides = [1, 1]} : vector<8x64xf32> to vector<8x32xf32>
    %421 = vector.extract_strided_slice %407 {offsets = [0, 64], sizes = [8, 32], strides = [1, 1]} : vector<8x96xf32> to vector<8x32xf32>
    %422 = vector.extract_strided_slice %410 {offsets = [0, 64], sizes = [8, 32], strides = [1, 1]} : vector<8x96xf32> to vector<8x32xf32>
    %423 = arith.mulf %419, %422 : vector<8x32xf32>
    %424 = arith.addf %421, %423 : vector<8x32xf32>
    %425 = math.tanh %424 : vector<8x32xf32>
    %cst_96 = arith.constant 1.000000e+00 : f32
    %426 = vector.broadcast %cst_96 : f32 to vector<8x32xf32>
    %427 = arith.subf %426, %420 : vector<8x32xf32>
    %428 = arith.mulf %427, %425 : vector<8x32xf32>
    %429 = arith.mulf %420, %402 : vector<8x32xf32>
    %430 = arith.addf %428, %429 : vector<8x32xf32>
    %431 = vector.extract_strided_slice %430 {offsets = [0, 0], sizes = [8, 16], strides = [1, 1]} : vector<8x32xf32> to vector<8x16xf32>
    %432 = vector.extract_strided_slice %430 {offsets = [0, 16], sizes = [8, 16], strides = [1, 1]} : vector<8x32xf32> to vector<8x16xf32>
    %c112_97 = arith.constant 112 : index
    %c0_98 = arith.constant 0 : index
    %433 = vector.load %arg1[%c112_97, %c0_98] : memref<256x256xf32, #tpu.memory_space<vmem>>, vector<8x96xf32>
    %c72_99 = arith.constant 72 : index
    %c128_100 = arith.constant 128 : index
    %434 = vector.load %arg1[%c72_99, %c128_100] : memref<256x256xf32, #tpu.memory_space<vmem>>, vector<8x96xf32>
    %435 = arith.addf %433, %434 : vector<8x96xf32>
    %cst_101 = arith.constant dense<0.000000e+00> : vector<8x96xf32>
    %436 = tpu.matmul %430, %0, %cst_101 {dimension_numbers = #tpu.dot_dimension_numbers<[1], [0], [0], [1], [0, 0, 1, 1], [], []>} : vector<8x32xf32>, vector<32x96xf32>, vector<8x96xf32> -> vector<8x96xf32>
    %437 = vector.broadcast %1 : vector<1x96xf32> to vector<8x96xf32>
    %438 = arith.addf %436, %437 : vector<8x96xf32>
    %439 = vector.extract_strided_slice %435 {offsets = [0, 0], sizes = [8, 64], strides = [1, 1]} : vector<8x96xf32> to vector<8x64xf32>
    %440 = vector.extract_strided_slice %438 {offsets = [0, 0], sizes = [8, 64], strides = [1, 1]} : vector<8x96xf32> to vector<8x64xf32>
    %441 = arith.addf %439, %440 : vector<8x64xf32>
    %442 = arith.negf %441 : vector<8x64xf32>
    %443 = math.exp %442 : vector<8x64xf32>
    %cst_102 = arith.constant 1.000000e+00 : f32
    %444 = vector.broadcast %cst_102 : f32 to vector<8x64xf32>
    %445 = arith.addf %444, %443 : vector<8x64xf32>
    %446 = arith.divf %444, %445 : vector<8x64xf32>
    %447 = vector.extract_strided_slice %446 {offsets = [0, 0], sizes = [8, 32], strides = [1, 1]} : vector<8x64xf32> to vector<8x32xf32>
    %448 = vector.extract_strided_slice %446 {offsets = [0, 32], sizes = [8, 32], strides = [1, 1]} : vector<8x64xf32> to vector<8x32xf32>
    %449 = vector.extract_strided_slice %435 {offsets = [0, 64], sizes = [8, 32], strides = [1, 1]} : vector<8x96xf32> to vector<8x32xf32>
    %450 = vector.extract_strided_slice %438 {offsets = [0, 64], sizes = [8, 32], strides = [1, 1]} : vector<8x96xf32> to vector<8x32xf32>
    %451 = arith.mulf %447, %450 : vector<8x32xf32>
    %452 = arith.addf %449, %451 : vector<8x32xf32>
    %453 = math.tanh %452 : vector<8x32xf32>
    %cst_103 = arith.constant 1.000000e+00 : f32
    %454 = vector.broadcast %cst_103 : f32 to vector<8x32xf32>
    %455 = arith.subf %454, %448 : vector<8x32xf32>
    %456 = arith.mulf %455, %453 : vector<8x32xf32>
    %457 = arith.mulf %448, %430 : vector<8x32xf32>
    %458 = arith.addf %456, %457 : vector<8x32xf32>
    %459 = vector.extract_strided_slice %458 {offsets = [0, 0], sizes = [8, 16], strides = [1, 1]} : vector<8x32xf32> to vector<8x16xf32>
    %460 = vector.extract_strided_slice %458 {offsets = [0, 16], sizes = [8, 16], strides = [1, 1]} : vector<8x32xf32> to vector<8x16xf32>
    %c120_104 = arith.constant 120 : index
    %c0_105 = arith.constant 0 : index
    %461 = vector.load %arg1[%c120_104, %c0_105] : memref<256x256xf32, #tpu.memory_space<vmem>>, vector<8x96xf32>
    %c64_106 = arith.constant 64 : index
    %c128_107 = arith.constant 128 : index
    %462 = vector.load %arg1[%c64_106, %c128_107] : memref<256x256xf32, #tpu.memory_space<vmem>>, vector<8x96xf32>
    %463 = arith.addf %461, %462 : vector<8x96xf32>
    %cst_108 = arith.constant dense<0.000000e+00> : vector<8x96xf32>
    %464 = tpu.matmul %458, %0, %cst_108 {dimension_numbers = #tpu.dot_dimension_numbers<[1], [0], [0], [1], [0, 0, 1, 1], [], []>} : vector<8x32xf32>, vector<32x96xf32>, vector<8x96xf32> -> vector<8x96xf32>
    %465 = vector.broadcast %1 : vector<1x96xf32> to vector<8x96xf32>
    %466 = arith.addf %464, %465 : vector<8x96xf32>
    %467 = vector.extract_strided_slice %463 {offsets = [0, 0], sizes = [8, 64], strides = [1, 1]} : vector<8x96xf32> to vector<8x64xf32>
    %468 = vector.extract_strided_slice %466 {offsets = [0, 0], sizes = [8, 64], strides = [1, 1]} : vector<8x96xf32> to vector<8x64xf32>
    %469 = arith.addf %467, %468 : vector<8x64xf32>
    %470 = arith.negf %469 : vector<8x64xf32>
    %471 = math.exp %470 : vector<8x64xf32>
    %cst_109 = arith.constant 1.000000e+00 : f32
    %472 = vector.broadcast %cst_109 : f32 to vector<8x64xf32>
    %473 = arith.addf %472, %471 : vector<8x64xf32>
    %474 = arith.divf %472, %473 : vector<8x64xf32>
    %475 = vector.extract_strided_slice %474 {offsets = [0, 0], sizes = [8, 32], strides = [1, 1]} : vector<8x64xf32> to vector<8x32xf32>
    %476 = vector.extract_strided_slice %474 {offsets = [0, 32], sizes = [8, 32], strides = [1, 1]} : vector<8x64xf32> to vector<8x32xf32>
    %477 = vector.extract_strided_slice %463 {offsets = [0, 64], sizes = [8, 32], strides = [1, 1]} : vector<8x96xf32> to vector<8x32xf32>
    %478 = vector.extract_strided_slice %466 {offsets = [0, 64], sizes = [8, 32], strides = [1, 1]} : vector<8x96xf32> to vector<8x32xf32>
    %479 = arith.mulf %475, %478 : vector<8x32xf32>
    %480 = arith.addf %477, %479 : vector<8x32xf32>
    %481 = math.tanh %480 : vector<8x32xf32>
    %cst_110 = arith.constant 1.000000e+00 : f32
    %482 = vector.broadcast %cst_110 : f32 to vector<8x32xf32>
    %483 = arith.subf %482, %476 : vector<8x32xf32>
    %484 = arith.mulf %483, %481 : vector<8x32xf32>
    %485 = arith.mulf %476, %458 : vector<8x32xf32>
    %486 = arith.addf %484, %485 : vector<8x32xf32>
    %487 = vector.extract_strided_slice %486 {offsets = [0, 0], sizes = [8, 16], strides = [1, 1]} : vector<8x32xf32> to vector<8x16xf32>
    %488 = vector.extract_strided_slice %486 {offsets = [0, 16], sizes = [8, 16], strides = [1, 1]} : vector<8x32xf32> to vector<8x16xf32>
    %489 = tpu.concatenate %291, %488 in 1 : vector<8x16xf32>, vector<8x16xf32> -> vector<8x32xf32>
    %490 = tpu.concatenate %319, %460 in 1 : vector<8x16xf32>, vector<8x16xf32> -> vector<8x32xf32>
    %491 = tpu.concatenate %347, %432 in 1 : vector<8x16xf32>, vector<8x16xf32> -> vector<8x32xf32>
    %492 = tpu.concatenate %375, %404 in 1 : vector<8x16xf32>, vector<8x16xf32> -> vector<8x32xf32>
    %493 = tpu.concatenate %403, %376 in 1 : vector<8x16xf32>, vector<8x16xf32> -> vector<8x32xf32>
    %494 = tpu.concatenate %431, %348 in 1 : vector<8x16xf32>, vector<8x16xf32> -> vector<8x32xf32>
    %495 = tpu.concatenate %459, %320 in 1 : vector<8x16xf32>, vector<8x16xf32> -> vector<8x32xf32>
    %496 = tpu.concatenate %487, %292 in 1 : vector<8x16xf32>, vector<8x16xf32> -> vector<8x32xf32>
    %497 = tpu.concatenate %489, %490, %491, %492, %493, %494, %495, %496 in 0 : vector<8x32xf32>, vector<8x32xf32>, vector<8x32xf32>, vector<8x32xf32>, vector<8x32xf32>, vector<8x32xf32>, vector<8x32xf32>, vector<8x32xf32> -> vector<64x32xf32>
    %cst_111 = arith.constant dense<0.000000e+00> : vector<64x32xf32>
    %498 = tpu.matmul %497, %2, %cst_111 {dimension_numbers = #tpu.dot_dimension_numbers<[1], [0], [0], [1], [0, 0, 1, 1], [], []>} : vector<64x32xf32>, vector<32x32xf32>, vector<64x32xf32> -> vector<64x32xf32>
    %499 = vector.broadcast %3 : vector<1x32xf32> to vector<64x32xf32>
    %500 = arith.addf %498, %499 : vector<64x32xf32>
    %501 = math.tanh %500 : vector<64x32xf32>
    %502 = vector.broadcast %4 : vector<1x32xf32> to vector<64x32xf32>
    %503 = arith.mulf %501, %502 : vector<64x32xf32>
    %cst_112 = arith.constant dense<0.000000e+00> : vector<64xf32>
    %504 = vector.multi_reduction <add>, %503, %cst_112 [1] : vector<64x32xf32> to vector<64xf32>
    %505 = vector.shape_cast %504 : vector<64xf32> to vector<64x1xf32>
    %506 = math.tanh %505 : vector<64x1xf32>
    %507 = vector.shape_cast %506 : vector<64x1xf32> to vector<1x64x1xf32>
    %cst_113 = arith.constant dense<0xFF800000> : vector<1xf32>
    %508 = vector.multi_reduction <maximumf>, %507, %cst_113 [1, 2] : vector<1x64x1xf32> to vector<1xf32>
    %509 = vector.shape_cast %508 : vector<1xf32> to vector<1x1x1xf32>
    %510 = vector.extract %509[0, 0, 0] : f32 from vector<1x1x1xf32>
    %511 = vector.broadcast %510 : f32 to vector<1x1xf32>
    %512 = vector.broadcast %511 : vector<1x1xf32> to vector<64x1xf32>
    %513 = arith.subf %506, %512 : vector<64x1xf32>
    %514 = math.exp %513 : vector<64x1xf32>
    %515 = vector.broadcast %514 : vector<64x1xf32> to vector<64x32xf32>
    %516 = arith.mulf %515, %497 : vector<64x32xf32>
    %517 = tpu.concatenate %516, %514 in 1 : vector<64x32xf32>, vector<64x1xf32> -> vector<64x33xf32>
    %cst_114 = arith.constant dense<0.000000e+00> : vector<8x33xf32>
    %518 = tpu.matmul %5, %517, %cst_114 {dimension_numbers = #tpu.dot_dimension_numbers<[1], [0], [0], [1], [0, 0, 1, 1], [], []>} : vector<8x64xf32>, vector<64x33xf32>, vector<8x33xf32> -> vector<8x33xf32>
    %519 = vector.extract_strided_slice %518 {offsets = [0, 0], sizes = [8, 32], strides = [1, 1]} : vector<8x33xf32> to vector<8x32xf32>
    %520 = vector.extract_strided_slice %518 {offsets = [0, 32], sizes = [8, 1], strides = [1, 1]} : vector<8x33xf32> to vector<8x1xf32>
    %521 = vector.broadcast %520 : vector<8x1xf32> to vector<8x32xf32>
    %522 = arith.divf %519, %521 : vector<8x32xf32>
    %c128_115 = arith.constant 128 : index
    %c0_116 = arith.constant 0 : index
    %523 = vector.load %arg1[%c128_115, %c0_116] : memref<256x256xf32, #tpu.memory_space<vmem>>, vector<8x96xf32>
    %c184 = arith.constant 184 : index
    %c128_117 = arith.constant 128 : index
    %524 = vector.load %arg1[%c184, %c128_117] : memref<256x256xf32, #tpu.memory_space<vmem>>, vector<8x96xf32>
    %525 = arith.addf %523, %524 : vector<8x96xf32>
    %cst_118 = arith.constant dense<0.000000e+00> : vector<8x96xf32>
    %526 = tpu.matmul %486, %0, %cst_118 {dimension_numbers = #tpu.dot_dimension_numbers<[1], [0], [0], [1], [0, 0, 1, 1], [], []>} : vector<8x32xf32>, vector<32x96xf32>, vector<8x96xf32> -> vector<8x96xf32>
    %527 = vector.broadcast %1 : vector<1x96xf32> to vector<8x96xf32>
    %528 = arith.addf %526, %527 : vector<8x96xf32>
    %529 = vector.extract_strided_slice %525 {offsets = [0, 0], sizes = [8, 64], strides = [1, 1]} : vector<8x96xf32> to vector<8x64xf32>
    %530 = vector.extract_strided_slice %528 {offsets = [0, 0], sizes = [8, 64], strides = [1, 1]} : vector<8x96xf32> to vector<8x64xf32>
    %531 = arith.addf %529, %530 : vector<8x64xf32>
    %532 = arith.negf %531 : vector<8x64xf32>
    %533 = math.exp %532 : vector<8x64xf32>
    %cst_119 = arith.constant 1.000000e+00 : f32
    %534 = vector.broadcast %cst_119 : f32 to vector<8x64xf32>
    %535 = arith.addf %534, %533 : vector<8x64xf32>
    %536 = arith.divf %534, %535 : vector<8x64xf32>
    %537 = vector.extract_strided_slice %536 {offsets = [0, 0], sizes = [8, 32], strides = [1, 1]} : vector<8x64xf32> to vector<8x32xf32>
    %538 = vector.extract_strided_slice %536 {offsets = [0, 32], sizes = [8, 32], strides = [1, 1]} : vector<8x64xf32> to vector<8x32xf32>
    %539 = vector.extract_strided_slice %525 {offsets = [0, 64], sizes = [8, 32], strides = [1, 1]} : vector<8x96xf32> to vector<8x32xf32>
    %540 = vector.extract_strided_slice %528 {offsets = [0, 64], sizes = [8, 32], strides = [1, 1]} : vector<8x96xf32> to vector<8x32xf32>
    %541 = arith.mulf %537, %540 : vector<8x32xf32>
    %542 = arith.addf %539, %541 : vector<8x32xf32>
    %543 = math.tanh %542 : vector<8x32xf32>
    %cst_120 = arith.constant 1.000000e+00 : f32
    %544 = vector.broadcast %cst_120 : f32 to vector<8x32xf32>
    %545 = arith.subf %544, %538 : vector<8x32xf32>
    %546 = arith.mulf %545, %543 : vector<8x32xf32>
    %547 = arith.mulf %538, %486 : vector<8x32xf32>
    %548 = arith.addf %546, %547 : vector<8x32xf32>
    %549 = vector.extract_strided_slice %548 {offsets = [0, 0], sizes = [8, 16], strides = [1, 1]} : vector<8x32xf32> to vector<8x16xf32>
    %550 = vector.extract_strided_slice %548 {offsets = [0, 16], sizes = [8, 16], strides = [1, 1]} : vector<8x32xf32> to vector<8x16xf32>
    %c136 = arith.constant 136 : index
    %c0_121 = arith.constant 0 : index
    %551 = vector.load %arg1[%c136, %c0_121] : memref<256x256xf32, #tpu.memory_space<vmem>>, vector<8x96xf32>
    %c176 = arith.constant 176 : index
    %c128_122 = arith.constant 128 : index
    %552 = vector.load %arg1[%c176, %c128_122] : memref<256x256xf32, #tpu.memory_space<vmem>>, vector<8x96xf32>
    %553 = arith.addf %551, %552 : vector<8x96xf32>
    %cst_123 = arith.constant dense<0.000000e+00> : vector<8x96xf32>
    %554 = tpu.matmul %548, %0, %cst_123 {dimension_numbers = #tpu.dot_dimension_numbers<[1], [0], [0], [1], [0, 0, 1, 1], [], []>} : vector<8x32xf32>, vector<32x96xf32>, vector<8x96xf32> -> vector<8x96xf32>
    %555 = vector.broadcast %1 : vector<1x96xf32> to vector<8x96xf32>
    %556 = arith.addf %554, %555 : vector<8x96xf32>
    %557 = vector.extract_strided_slice %553 {offsets = [0, 0], sizes = [8, 64], strides = [1, 1]} : vector<8x96xf32> to vector<8x64xf32>
    %558 = vector.extract_strided_slice %556 {offsets = [0, 0], sizes = [8, 64], strides = [1, 1]} : vector<8x96xf32> to vector<8x64xf32>
    %559 = arith.addf %557, %558 : vector<8x64xf32>
    %560 = arith.negf %559 : vector<8x64xf32>
    %561 = math.exp %560 : vector<8x64xf32>
    %cst_124 = arith.constant 1.000000e+00 : f32
    %562 = vector.broadcast %cst_124 : f32 to vector<8x64xf32>
    %563 = arith.addf %562, %561 : vector<8x64xf32>
    %564 = arith.divf %562, %563 : vector<8x64xf32>
    %565 = vector.extract_strided_slice %564 {offsets = [0, 0], sizes = [8, 32], strides = [1, 1]} : vector<8x64xf32> to vector<8x32xf32>
    %566 = vector.extract_strided_slice %564 {offsets = [0, 32], sizes = [8, 32], strides = [1, 1]} : vector<8x64xf32> to vector<8x32xf32>
    %567 = vector.extract_strided_slice %553 {offsets = [0, 64], sizes = [8, 32], strides = [1, 1]} : vector<8x96xf32> to vector<8x32xf32>
    %568 = vector.extract_strided_slice %556 {offsets = [0, 64], sizes = [8, 32], strides = [1, 1]} : vector<8x96xf32> to vector<8x32xf32>
    %569 = arith.mulf %565, %568 : vector<8x32xf32>
    %570 = arith.addf %567, %569 : vector<8x32xf32>
    %571 = math.tanh %570 : vector<8x32xf32>
    %cst_125 = arith.constant 1.000000e+00 : f32
    %572 = vector.broadcast %cst_125 : f32 to vector<8x32xf32>
    %573 = arith.subf %572, %566 : vector<8x32xf32>
    %574 = arith.mulf %573, %571 : vector<8x32xf32>
    %575 = arith.mulf %566, %548 : vector<8x32xf32>
    %576 = arith.addf %574, %575 : vector<8x32xf32>
    %577 = vector.extract_strided_slice %576 {offsets = [0, 0], sizes = [8, 16], strides = [1, 1]} : vector<8x32xf32> to vector<8x16xf32>
    %578 = vector.extract_strided_slice %576 {offsets = [0, 16], sizes = [8, 16], strides = [1, 1]} : vector<8x32xf32> to vector<8x16xf32>
    %c144 = arith.constant 144 : index
    %c0_126 = arith.constant 0 : index
    %579 = vector.load %arg1[%c144, %c0_126] : memref<256x256xf32, #tpu.memory_space<vmem>>, vector<8x96xf32>
    %c168 = arith.constant 168 : index
    %c128_127 = arith.constant 128 : index
    %580 = vector.load %arg1[%c168, %c128_127] : memref<256x256xf32, #tpu.memory_space<vmem>>, vector<8x96xf32>
    %581 = arith.addf %579, %580 : vector<8x96xf32>
    %cst_128 = arith.constant dense<0.000000e+00> : vector<8x96xf32>
    %582 = tpu.matmul %576, %0, %cst_128 {dimension_numbers = #tpu.dot_dimension_numbers<[1], [0], [0], [1], [0, 0, 1, 1], [], []>} : vector<8x32xf32>, vector<32x96xf32>, vector<8x96xf32> -> vector<8x96xf32>
    %583 = vector.broadcast %1 : vector<1x96xf32> to vector<8x96xf32>
    %584 = arith.addf %582, %583 : vector<8x96xf32>
    %585 = vector.extract_strided_slice %581 {offsets = [0, 0], sizes = [8, 64], strides = [1, 1]} : vector<8x96xf32> to vector<8x64xf32>
    %586 = vector.extract_strided_slice %584 {offsets = [0, 0], sizes = [8, 64], strides = [1, 1]} : vector<8x96xf32> to vector<8x64xf32>
    %587 = arith.addf %585, %586 : vector<8x64xf32>
    %588 = arith.negf %587 : vector<8x64xf32>
    %589 = math.exp %588 : vector<8x64xf32>
    %cst_129 = arith.constant 1.000000e+00 : f32
    %590 = vector.broadcast %cst_129 : f32 to vector<8x64xf32>
    %591 = arith.addf %590, %589 : vector<8x64xf32>
    %592 = arith.divf %590, %591 : vector<8x64xf32>
    %593 = vector.extract_strided_slice %592 {offsets = [0, 0], sizes = [8, 32], strides = [1, 1]} : vector<8x64xf32> to vector<8x32xf32>
    %594 = vector.extract_strided_slice %592 {offsets = [0, 32], sizes = [8, 32], strides = [1, 1]} : vector<8x64xf32> to vector<8x32xf32>
    %595 = vector.extract_strided_slice %581 {offsets = [0, 64], sizes = [8, 32], strides = [1, 1]} : vector<8x96xf32> to vector<8x32xf32>
    %596 = vector.extract_strided_slice %584 {offsets = [0, 64], sizes = [8, 32], strides = [1, 1]} : vector<8x96xf32> to vector<8x32xf32>
    %597 = arith.mulf %593, %596 : vector<8x32xf32>
    %598 = arith.addf %595, %597 : vector<8x32xf32>
    %599 = math.tanh %598 : vector<8x32xf32>
    %cst_130 = arith.constant 1.000000e+00 : f32
    %600 = vector.broadcast %cst_130 : f32 to vector<8x32xf32>
    %601 = arith.subf %600, %594 : vector<8x32xf32>
    %602 = arith.mulf %601, %599 : vector<8x32xf32>
    %603 = arith.mulf %594, %576 : vector<8x32xf32>
    %604 = arith.addf %602, %603 : vector<8x32xf32>
    %605 = vector.extract_strided_slice %604 {offsets = [0, 0], sizes = [8, 16], strides = [1, 1]} : vector<8x32xf32> to vector<8x16xf32>
    %606 = vector.extract_strided_slice %604 {offsets = [0, 16], sizes = [8, 16], strides = [1, 1]} : vector<8x32xf32> to vector<8x16xf32>
    %c152 = arith.constant 152 : index
    %c0_131 = arith.constant 0 : index
    %607 = vector.load %arg1[%c152, %c0_131] : memref<256x256xf32, #tpu.memory_space<vmem>>, vector<8x96xf32>
    %c160 = arith.constant 160 : index
    %c128_132 = arith.constant 128 : index
    %608 = vector.load %arg1[%c160, %c128_132] : memref<256x256xf32, #tpu.memory_space<vmem>>, vector<8x96xf32>
    %609 = arith.addf %607, %608 : vector<8x96xf32>
    %cst_133 = arith.constant dense<0.000000e+00> : vector<8x96xf32>
    %610 = tpu.matmul %604, %0, %cst_133 {dimension_numbers = #tpu.dot_dimension_numbers<[1], [0], [0], [1], [0, 0, 1, 1], [], []>} : vector<8x32xf32>, vector<32x96xf32>, vector<8x96xf32> -> vector<8x96xf32>
    %611 = vector.broadcast %1 : vector<1x96xf32> to vector<8x96xf32>
    %612 = arith.addf %610, %611 : vector<8x96xf32>
    %613 = vector.extract_strided_slice %609 {offsets = [0, 0], sizes = [8, 64], strides = [1, 1]} : vector<8x96xf32> to vector<8x64xf32>
    %614 = vector.extract_strided_slice %612 {offsets = [0, 0], sizes = [8, 64], strides = [1, 1]} : vector<8x96xf32> to vector<8x64xf32>
    %615 = arith.addf %613, %614 : vector<8x64xf32>
    %616 = arith.negf %615 : vector<8x64xf32>
    %617 = math.exp %616 : vector<8x64xf32>
    %cst_134 = arith.constant 1.000000e+00 : f32
    %618 = vector.broadcast %cst_134 : f32 to vector<8x64xf32>
    %619 = arith.addf %618, %617 : vector<8x64xf32>
    %620 = arith.divf %618, %619 : vector<8x64xf32>
    %621 = vector.extract_strided_slice %620 {offsets = [0, 0], sizes = [8, 32], strides = [1, 1]} : vector<8x64xf32> to vector<8x32xf32>
    %622 = vector.extract_strided_slice %620 {offsets = [0, 32], sizes = [8, 32], strides = [1, 1]} : vector<8x64xf32> to vector<8x32xf32>
    %623 = vector.extract_strided_slice %609 {offsets = [0, 64], sizes = [8, 32], strides = [1, 1]} : vector<8x96xf32> to vector<8x32xf32>
    %624 = vector.extract_strided_slice %612 {offsets = [0, 64], sizes = [8, 32], strides = [1, 1]} : vector<8x96xf32> to vector<8x32xf32>
    %625 = arith.mulf %621, %624 : vector<8x32xf32>
    %626 = arith.addf %623, %625 : vector<8x32xf32>
    %627 = math.tanh %626 : vector<8x32xf32>
    %cst_135 = arith.constant 1.000000e+00 : f32
    %628 = vector.broadcast %cst_135 : f32 to vector<8x32xf32>
    %629 = arith.subf %628, %622 : vector<8x32xf32>
    %630 = arith.mulf %629, %627 : vector<8x32xf32>
    %631 = arith.mulf %622, %604 : vector<8x32xf32>
    %632 = arith.addf %630, %631 : vector<8x32xf32>
    %633 = vector.extract_strided_slice %632 {offsets = [0, 0], sizes = [8, 16], strides = [1, 1]} : vector<8x32xf32> to vector<8x16xf32>
    %634 = vector.extract_strided_slice %632 {offsets = [0, 16], sizes = [8, 16], strides = [1, 1]} : vector<8x32xf32> to vector<8x16xf32>
    %c160_136 = arith.constant 160 : index
    %c0_137 = arith.constant 0 : index
    %635 = vector.load %arg1[%c160_136, %c0_137] : memref<256x256xf32, #tpu.memory_space<vmem>>, vector<8x96xf32>
    %c152_138 = arith.constant 152 : index
    %c128_139 = arith.constant 128 : index
    %636 = vector.load %arg1[%c152_138, %c128_139] : memref<256x256xf32, #tpu.memory_space<vmem>>, vector<8x96xf32>
    %637 = arith.addf %635, %636 : vector<8x96xf32>
    %cst_140 = arith.constant dense<0.000000e+00> : vector<8x96xf32>
    %638 = tpu.matmul %632, %0, %cst_140 {dimension_numbers = #tpu.dot_dimension_numbers<[1], [0], [0], [1], [0, 0, 1, 1], [], []>} : vector<8x32xf32>, vector<32x96xf32>, vector<8x96xf32> -> vector<8x96xf32>
    %639 = vector.broadcast %1 : vector<1x96xf32> to vector<8x96xf32>
    %640 = arith.addf %638, %639 : vector<8x96xf32>
    %641 = vector.extract_strided_slice %637 {offsets = [0, 0], sizes = [8, 64], strides = [1, 1]} : vector<8x96xf32> to vector<8x64xf32>
    %642 = vector.extract_strided_slice %640 {offsets = [0, 0], sizes = [8, 64], strides = [1, 1]} : vector<8x96xf32> to vector<8x64xf32>
    %643 = arith.addf %641, %642 : vector<8x64xf32>
    %644 = arith.negf %643 : vector<8x64xf32>
    %645 = math.exp %644 : vector<8x64xf32>
    %cst_141 = arith.constant 1.000000e+00 : f32
    %646 = vector.broadcast %cst_141 : f32 to vector<8x64xf32>
    %647 = arith.addf %646, %645 : vector<8x64xf32>
    %648 = arith.divf %646, %647 : vector<8x64xf32>
    %649 = vector.extract_strided_slice %648 {offsets = [0, 0], sizes = [8, 32], strides = [1, 1]} : vector<8x64xf32> to vector<8x32xf32>
    %650 = vector.extract_strided_slice %648 {offsets = [0, 32], sizes = [8, 32], strides = [1, 1]} : vector<8x64xf32> to vector<8x32xf32>
    %651 = vector.extract_strided_slice %637 {offsets = [0, 64], sizes = [8, 32], strides = [1, 1]} : vector<8x96xf32> to vector<8x32xf32>
    %652 = vector.extract_strided_slice %640 {offsets = [0, 64], sizes = [8, 32], strides = [1, 1]} : vector<8x96xf32> to vector<8x32xf32>
    %653 = arith.mulf %649, %652 : vector<8x32xf32>
    %654 = arith.addf %651, %653 : vector<8x32xf32>
    %655 = math.tanh %654 : vector<8x32xf32>
    %cst_142 = arith.constant 1.000000e+00 : f32
    %656 = vector.broadcast %cst_142 : f32 to vector<8x32xf32>
    %657 = arith.subf %656, %650 : vector<8x32xf32>
    %658 = arith.mulf %657, %655 : vector<8x32xf32>
    %659 = arith.mulf %650, %632 : vector<8x32xf32>
    %660 = arith.addf %658, %659 : vector<8x32xf32>
    %661 = vector.extract_strided_slice %660 {offsets = [0, 0], sizes = [8, 16], strides = [1, 1]} : vector<8x32xf32> to vector<8x16xf32>
    %662 = vector.extract_strided_slice %660 {offsets = [0, 16], sizes = [8, 16], strides = [1, 1]} : vector<8x32xf32> to vector<8x16xf32>
    %c168_143 = arith.constant 168 : index
    %c0_144 = arith.constant 0 : index
    %663 = vector.load %arg1[%c168_143, %c0_144] : memref<256x256xf32, #tpu.memory_space<vmem>>, vector<8x96xf32>
    %c144_145 = arith.constant 144 : index
    %c128_146 = arith.constant 128 : index
    %664 = vector.load %arg1[%c144_145, %c128_146] : memref<256x256xf32, #tpu.memory_space<vmem>>, vector<8x96xf32>
    %665 = arith.addf %663, %664 : vector<8x96xf32>
    %cst_147 = arith.constant dense<0.000000e+00> : vector<8x96xf32>
    %666 = tpu.matmul %660, %0, %cst_147 {dimension_numbers = #tpu.dot_dimension_numbers<[1], [0], [0], [1], [0, 0, 1, 1], [], []>} : vector<8x32xf32>, vector<32x96xf32>, vector<8x96xf32> -> vector<8x96xf32>
    %667 = vector.broadcast %1 : vector<1x96xf32> to vector<8x96xf32>
    %668 = arith.addf %666, %667 : vector<8x96xf32>
    %669 = vector.extract_strided_slice %665 {offsets = [0, 0], sizes = [8, 64], strides = [1, 1]} : vector<8x96xf32> to vector<8x64xf32>
    %670 = vector.extract_strided_slice %668 {offsets = [0, 0], sizes = [8, 64], strides = [1, 1]} : vector<8x96xf32> to vector<8x64xf32>
    %671 = arith.addf %669, %670 : vector<8x64xf32>
    %672 = arith.negf %671 : vector<8x64xf32>
    %673 = math.exp %672 : vector<8x64xf32>
    %cst_148 = arith.constant 1.000000e+00 : f32
    %674 = vector.broadcast %cst_148 : f32 to vector<8x64xf32>
    %675 = arith.addf %674, %673 : vector<8x64xf32>
    %676 = arith.divf %674, %675 : vector<8x64xf32>
    %677 = vector.extract_strided_slice %676 {offsets = [0, 0], sizes = [8, 32], strides = [1, 1]} : vector<8x64xf32> to vector<8x32xf32>
    %678 = vector.extract_strided_slice %676 {offsets = [0, 32], sizes = [8, 32], strides = [1, 1]} : vector<8x64xf32> to vector<8x32xf32>
    %679 = vector.extract_strided_slice %665 {offsets = [0, 64], sizes = [8, 32], strides = [1, 1]} : vector<8x96xf32> to vector<8x32xf32>
    %680 = vector.extract_strided_slice %668 {offsets = [0, 64], sizes = [8, 32], strides = [1, 1]} : vector<8x96xf32> to vector<8x32xf32>
    %681 = arith.mulf %677, %680 : vector<8x32xf32>
    %682 = arith.addf %679, %681 : vector<8x32xf32>
    %683 = math.tanh %682 : vector<8x32xf32>
    %cst_149 = arith.constant 1.000000e+00 : f32
    %684 = vector.broadcast %cst_149 : f32 to vector<8x32xf32>
    %685 = arith.subf %684, %678 : vector<8x32xf32>
    %686 = arith.mulf %685, %683 : vector<8x32xf32>
    %687 = arith.mulf %678, %660 : vector<8x32xf32>
    %688 = arith.addf %686, %687 : vector<8x32xf32>
    %689 = vector.extract_strided_slice %688 {offsets = [0, 0], sizes = [8, 16], strides = [1, 1]} : vector<8x32xf32> to vector<8x16xf32>
    %690 = vector.extract_strided_slice %688 {offsets = [0, 16], sizes = [8, 16], strides = [1, 1]} : vector<8x32xf32> to vector<8x16xf32>
    %c176_150 = arith.constant 176 : index
    %c0_151 = arith.constant 0 : index
    %691 = vector.load %arg1[%c176_150, %c0_151] : memref<256x256xf32, #tpu.memory_space<vmem>>, vector<8x96xf32>
    %c136_152 = arith.constant 136 : index
    %c128_153 = arith.constant 128 : index
    %692 = vector.load %arg1[%c136_152, %c128_153] : memref<256x256xf32, #tpu.memory_space<vmem>>, vector<8x96xf32>
    %693 = arith.addf %691, %692 : vector<8x96xf32>
    %cst_154 = arith.constant dense<0.000000e+00> : vector<8x96xf32>
    %694 = tpu.matmul %688, %0, %cst_154 {dimension_numbers = #tpu.dot_dimension_numbers<[1], [0], [0], [1], [0, 0, 1, 1], [], []>} : vector<8x32xf32>, vector<32x96xf32>, vector<8x96xf32> -> vector<8x96xf32>
    %695 = vector.broadcast %1 : vector<1x96xf32> to vector<8x96xf32>
    %696 = arith.addf %694, %695 : vector<8x96xf32>
    %697 = vector.extract_strided_slice %693 {offsets = [0, 0], sizes = [8, 64], strides = [1, 1]} : vector<8x96xf32> to vector<8x64xf32>
    %698 = vector.extract_strided_slice %696 {offsets = [0, 0], sizes = [8, 64], strides = [1, 1]} : vector<8x96xf32> to vector<8x64xf32>
    %699 = arith.addf %697, %698 : vector<8x64xf32>
    %700 = arith.negf %699 : vector<8x64xf32>
    %701 = math.exp %700 : vector<8x64xf32>
    %cst_155 = arith.constant 1.000000e+00 : f32
    %702 = vector.broadcast %cst_155 : f32 to vector<8x64xf32>
    %703 = arith.addf %702, %701 : vector<8x64xf32>
    %704 = arith.divf %702, %703 : vector<8x64xf32>
    %705 = vector.extract_strided_slice %704 {offsets = [0, 0], sizes = [8, 32], strides = [1, 1]} : vector<8x64xf32> to vector<8x32xf32>
    %706 = vector.extract_strided_slice %704 {offsets = [0, 32], sizes = [8, 32], strides = [1, 1]} : vector<8x64xf32> to vector<8x32xf32>
    %707 = vector.extract_strided_slice %693 {offsets = [0, 64], sizes = [8, 32], strides = [1, 1]} : vector<8x96xf32> to vector<8x32xf32>
    %708 = vector.extract_strided_slice %696 {offsets = [0, 64], sizes = [8, 32], strides = [1, 1]} : vector<8x96xf32> to vector<8x32xf32>
    %709 = arith.mulf %705, %708 : vector<8x32xf32>
    %710 = arith.addf %707, %709 : vector<8x32xf32>
    %711 = math.tanh %710 : vector<8x32xf32>
    %cst_156 = arith.constant 1.000000e+00 : f32
    %712 = vector.broadcast %cst_156 : f32 to vector<8x32xf32>
    %713 = arith.subf %712, %706 : vector<8x32xf32>
    %714 = arith.mulf %713, %711 : vector<8x32xf32>
    %715 = arith.mulf %706, %688 : vector<8x32xf32>
    %716 = arith.addf %714, %715 : vector<8x32xf32>
    %717 = vector.extract_strided_slice %716 {offsets = [0, 0], sizes = [8, 16], strides = [1, 1]} : vector<8x32xf32> to vector<8x16xf32>
    %718 = vector.extract_strided_slice %716 {offsets = [0, 16], sizes = [8, 16], strides = [1, 1]} : vector<8x32xf32> to vector<8x16xf32>
    %c184_157 = arith.constant 184 : index
    %c0_158 = arith.constant 0 : index
    %719 = vector.load %arg1[%c184_157, %c0_158] : memref<256x256xf32, #tpu.memory_space<vmem>>, vector<8x96xf32>
    %c128_159 = arith.constant 128 : index
    %c128_160 = arith.constant 128 : index
    %720 = vector.load %arg1[%c128_159, %c128_160] : memref<256x256xf32, #tpu.memory_space<vmem>>, vector<8x96xf32>
    %721 = arith.addf %719, %720 : vector<8x96xf32>
    %cst_161 = arith.constant dense<0.000000e+00> : vector<8x96xf32>
    %722 = tpu.matmul %716, %0, %cst_161 {dimension_numbers = #tpu.dot_dimension_numbers<[1], [0], [0], [1], [0, 0, 1, 1], [], []>} : vector<8x32xf32>, vector<32x96xf32>, vector<8x96xf32> -> vector<8x96xf32>
    %723 = vector.broadcast %1 : vector<1x96xf32> to vector<8x96xf32>
    %724 = arith.addf %722, %723 : vector<8x96xf32>
    %725 = vector.extract_strided_slice %721 {offsets = [0, 0], sizes = [8, 64], strides = [1, 1]} : vector<8x96xf32> to vector<8x64xf32>
    %726 = vector.extract_strided_slice %724 {offsets = [0, 0], sizes = [8, 64], strides = [1, 1]} : vector<8x96xf32> to vector<8x64xf32>
    %727 = arith.addf %725, %726 : vector<8x64xf32>
    %728 = arith.negf %727 : vector<8x64xf32>
    %729 = math.exp %728 : vector<8x64xf32>
    %cst_162 = arith.constant 1.000000e+00 : f32
    %730 = vector.broadcast %cst_162 : f32 to vector<8x64xf32>
    %731 = arith.addf %730, %729 : vector<8x64xf32>
    %732 = arith.divf %730, %731 : vector<8x64xf32>
    %733 = vector.extract_strided_slice %732 {offsets = [0, 0], sizes = [8, 32], strides = [1, 1]} : vector<8x64xf32> to vector<8x32xf32>
    %734 = vector.extract_strided_slice %732 {offsets = [0, 32], sizes = [8, 32], strides = [1, 1]} : vector<8x64xf32> to vector<8x32xf32>
    %735 = vector.extract_strided_slice %721 {offsets = [0, 64], sizes = [8, 32], strides = [1, 1]} : vector<8x96xf32> to vector<8x32xf32>
    %736 = vector.extract_strided_slice %724 {offsets = [0, 64], sizes = [8, 32], strides = [1, 1]} : vector<8x96xf32> to vector<8x32xf32>
    %737 = arith.mulf %733, %736 : vector<8x32xf32>
    %738 = arith.addf %735, %737 : vector<8x32xf32>
    %739 = math.tanh %738 : vector<8x32xf32>
    %cst_163 = arith.constant 1.000000e+00 : f32
    %740 = vector.broadcast %cst_163 : f32 to vector<8x32xf32>
    %741 = arith.subf %740, %734 : vector<8x32xf32>
    %742 = arith.mulf %741, %739 : vector<8x32xf32>
    %743 = arith.mulf %734, %716 : vector<8x32xf32>
    %744 = arith.addf %742, %743 : vector<8x32xf32>
    %745 = vector.extract_strided_slice %744 {offsets = [0, 0], sizes = [8, 16], strides = [1, 1]} : vector<8x32xf32> to vector<8x16xf32>
    %746 = vector.extract_strided_slice %744 {offsets = [0, 16], sizes = [8, 16], strides = [1, 1]} : vector<8x32xf32> to vector<8x16xf32>
    %747 = tpu.concatenate %549, %746 in 1 : vector<8x16xf32>, vector<8x16xf32> -> vector<8x32xf32>
    %748 = tpu.concatenate %577, %718 in 1 : vector<8x16xf32>, vector<8x16xf32> -> vector<8x32xf32>
    %749 = tpu.concatenate %605, %690 in 1 : vector<8x16xf32>, vector<8x16xf32> -> vector<8x32xf32>
    %750 = tpu.concatenate %633, %662 in 1 : vector<8x16xf32>, vector<8x16xf32> -> vector<8x32xf32>
    %751 = tpu.concatenate %661, %634 in 1 : vector<8x16xf32>, vector<8x16xf32> -> vector<8x32xf32>
    %752 = tpu.concatenate %689, %606 in 1 : vector<8x16xf32>, vector<8x16xf32> -> vector<8x32xf32>
    %753 = tpu.concatenate %717, %578 in 1 : vector<8x16xf32>, vector<8x16xf32> -> vector<8x32xf32>
    %754 = tpu.concatenate %745, %550 in 1 : vector<8x16xf32>, vector<8x16xf32> -> vector<8x32xf32>
    %755 = tpu.concatenate %747, %748, %749, %750, %751, %752, %753, %754 in 0 : vector<8x32xf32>, vector<8x32xf32>, vector<8x32xf32>, vector<8x32xf32>, vector<8x32xf32>, vector<8x32xf32>, vector<8x32xf32>, vector<8x32xf32> -> vector<64x32xf32>
    %cst_164 = arith.constant dense<0.000000e+00> : vector<64x32xf32>
    %756 = tpu.matmul %755, %2, %cst_164 {dimension_numbers = #tpu.dot_dimension_numbers<[1], [0], [0], [1], [0, 0, 1, 1], [], []>} : vector<64x32xf32>, vector<32x32xf32>, vector<64x32xf32> -> vector<64x32xf32>
    %757 = vector.broadcast %3 : vector<1x32xf32> to vector<64x32xf32>
    %758 = arith.addf %756, %757 : vector<64x32xf32>
    %759 = math.tanh %758 : vector<64x32xf32>
    %760 = vector.broadcast %4 : vector<1x32xf32> to vector<64x32xf32>
    %761 = arith.mulf %759, %760 : vector<64x32xf32>
    %cst_165 = arith.constant dense<0.000000e+00> : vector<64xf32>
    %762 = vector.multi_reduction <add>, %761, %cst_165 [1] : vector<64x32xf32> to vector<64xf32>
    %763 = vector.shape_cast %762 : vector<64xf32> to vector<64x1xf32>
    %764 = math.tanh %763 : vector<64x1xf32>
    %765 = vector.shape_cast %764 : vector<64x1xf32> to vector<1x64x1xf32>
    %cst_166 = arith.constant dense<0xFF800000> : vector<1xf32>
    %766 = vector.multi_reduction <maximumf>, %765, %cst_166 [1, 2] : vector<1x64x1xf32> to vector<1xf32>
    %767 = vector.shape_cast %766 : vector<1xf32> to vector<1x1x1xf32>
    %768 = vector.extract %767[0, 0, 0] : f32 from vector<1x1x1xf32>
    %769 = vector.broadcast %768 : f32 to vector<1x1xf32>
    %770 = vector.broadcast %769 : vector<1x1xf32> to vector<64x1xf32>
    %771 = arith.subf %764, %770 : vector<64x1xf32>
    %772 = math.exp %771 : vector<64x1xf32>
    %773 = vector.broadcast %772 : vector<64x1xf32> to vector<64x32xf32>
    %774 = arith.mulf %773, %755 : vector<64x32xf32>
    %775 = tpu.concatenate %774, %772 in 1 : vector<64x32xf32>, vector<64x1xf32> -> vector<64x33xf32>
    %cst_167 = arith.constant dense<0.000000e+00> : vector<8x33xf32>
    %776 = tpu.matmul %5, %775, %cst_167 {dimension_numbers = #tpu.dot_dimension_numbers<[1], [0], [0], [1], [0, 0, 1, 1], [], []>} : vector<8x64xf32>, vector<64x33xf32>, vector<8x33xf32> -> vector<8x33xf32>
    %777 = vector.extract_strided_slice %776 {offsets = [0, 0], sizes = [8, 32], strides = [1, 1]} : vector<8x33xf32> to vector<8x32xf32>
    %778 = vector.extract_strided_slice %776 {offsets = [0, 32], sizes = [8, 1], strides = [1, 1]} : vector<8x33xf32> to vector<8x1xf32>
    %779 = vector.broadcast %778 : vector<8x1xf32> to vector<8x32xf32>
    %780 = arith.divf %777, %779 : vector<8x32xf32>
    %c192 = arith.constant 192 : index
    %c0_168 = arith.constant 0 : index
    %781 = vector.load %arg1[%c192, %c0_168] : memref<256x256xf32, #tpu.memory_space<vmem>>, vector<8x96xf32>
    %c248 = arith.constant 248 : index
    %c128_169 = arith.constant 128 : index
    %782 = vector.load %arg1[%c248, %c128_169] : memref<256x256xf32, #tpu.memory_space<vmem>>, vector<8x96xf32>
    %783 = arith.addf %781, %782 : vector<8x96xf32>
    %cst_170 = arith.constant dense<0.000000e+00> : vector<8x96xf32>
    %784 = tpu.matmul %744, %0, %cst_170 {dimension_numbers = #tpu.dot_dimension_numbers<[1], [0], [0], [1], [0, 0, 1, 1], [], []>} : vector<8x32xf32>, vector<32x96xf32>, vector<8x96xf32> -> vector<8x96xf32>
    %785 = vector.broadcast %1 : vector<1x96xf32> to vector<8x96xf32>
    %786 = arith.addf %784, %785 : vector<8x96xf32>
    %787 = vector.extract_strided_slice %783 {offsets = [0, 0], sizes = [8, 64], strides = [1, 1]} : vector<8x96xf32> to vector<8x64xf32>
    %788 = vector.extract_strided_slice %786 {offsets = [0, 0], sizes = [8, 64], strides = [1, 1]} : vector<8x96xf32> to vector<8x64xf32>
    %789 = arith.addf %787, %788 : vector<8x64xf32>
    %790 = arith.negf %789 : vector<8x64xf32>
    %791 = math.exp %790 : vector<8x64xf32>
    %cst_171 = arith.constant 1.000000e+00 : f32
    %792 = vector.broadcast %cst_171 : f32 to vector<8x64xf32>
    %793 = arith.addf %792, %791 : vector<8x64xf32>
    %794 = arith.divf %792, %793 : vector<8x64xf32>
    %795 = vector.extract_strided_slice %794 {offsets = [0, 0], sizes = [8, 32], strides = [1, 1]} : vector<8x64xf32> to vector<8x32xf32>
    %796 = vector.extract_strided_slice %794 {offsets = [0, 32], sizes = [8, 32], strides = [1, 1]} : vector<8x64xf32> to vector<8x32xf32>
    %797 = vector.extract_strided_slice %783 {offsets = [0, 64], sizes = [8, 32], strides = [1, 1]} : vector<8x96xf32> to vector<8x32xf32>
    %798 = vector.extract_strided_slice %786 {offsets = [0, 64], sizes = [8, 32], strides = [1, 1]} : vector<8x96xf32> to vector<8x32xf32>
    %799 = arith.mulf %795, %798 : vector<8x32xf32>
    %800 = arith.addf %797, %799 : vector<8x32xf32>
    %801 = math.tanh %800 : vector<8x32xf32>
    %cst_172 = arith.constant 1.000000e+00 : f32
    %802 = vector.broadcast %cst_172 : f32 to vector<8x32xf32>
    %803 = arith.subf %802, %796 : vector<8x32xf32>
    %804 = arith.mulf %803, %801 : vector<8x32xf32>
    %805 = arith.mulf %796, %744 : vector<8x32xf32>
    %806 = arith.addf %804, %805 : vector<8x32xf32>
    %807 = vector.extract_strided_slice %806 {offsets = [0, 0], sizes = [8, 16], strides = [1, 1]} : vector<8x32xf32> to vector<8x16xf32>
    %808 = vector.extract_strided_slice %806 {offsets = [0, 16], sizes = [8, 16], strides = [1, 1]} : vector<8x32xf32> to vector<8x16xf32>
    %c200 = arith.constant 200 : index
    %c0_173 = arith.constant 0 : index
    %809 = vector.load %arg1[%c200, %c0_173] : memref<256x256xf32, #tpu.memory_space<vmem>>, vector<8x96xf32>
    %c240 = arith.constant 240 : index
    %c128_174 = arith.constant 128 : index
    %810 = vector.load %arg1[%c240, %c128_174] : memref<256x256xf32, #tpu.memory_space<vmem>>, vector<8x96xf32>
    %811 = arith.addf %809, %810 : vector<8x96xf32>
    %cst_175 = arith.constant dense<0.000000e+00> : vector<8x96xf32>
    %812 = tpu.matmul %806, %0, %cst_175 {dimension_numbers = #tpu.dot_dimension_numbers<[1], [0], [0], [1], [0, 0, 1, 1], [], []>} : vector<8x32xf32>, vector<32x96xf32>, vector<8x96xf32> -> vector<8x96xf32>
    %813 = vector.broadcast %1 : vector<1x96xf32> to vector<8x96xf32>
    %814 = arith.addf %812, %813 : vector<8x96xf32>
    %815 = vector.extract_strided_slice %811 {offsets = [0, 0], sizes = [8, 64], strides = [1, 1]} : vector<8x96xf32> to vector<8x64xf32>
    %816 = vector.extract_strided_slice %814 {offsets = [0, 0], sizes = [8, 64], strides = [1, 1]} : vector<8x96xf32> to vector<8x64xf32>
    %817 = arith.addf %815, %816 : vector<8x64xf32>
    %818 = arith.negf %817 : vector<8x64xf32>
    %819 = math.exp %818 : vector<8x64xf32>
    %cst_176 = arith.constant 1.000000e+00 : f32
    %820 = vector.broadcast %cst_176 : f32 to vector<8x64xf32>
    %821 = arith.addf %820, %819 : vector<8x64xf32>
    %822 = arith.divf %820, %821 : vector<8x64xf32>
    %823 = vector.extract_strided_slice %822 {offsets = [0, 0], sizes = [8, 32], strides = [1, 1]} : vector<8x64xf32> to vector<8x32xf32>
    %824 = vector.extract_strided_slice %822 {offsets = [0, 32], sizes = [8, 32], strides = [1, 1]} : vector<8x64xf32> to vector<8x32xf32>
    %825 = vector.extract_strided_slice %811 {offsets = [0, 64], sizes = [8, 32], strides = [1, 1]} : vector<8x96xf32> to vector<8x32xf32>
    %826 = vector.extract_strided_slice %814 {offsets = [0, 64], sizes = [8, 32], strides = [1, 1]} : vector<8x96xf32> to vector<8x32xf32>
    %827 = arith.mulf %823, %826 : vector<8x32xf32>
    %828 = arith.addf %825, %827 : vector<8x32xf32>
    %829 = math.tanh %828 : vector<8x32xf32>
    %cst_177 = arith.constant 1.000000e+00 : f32
    %830 = vector.broadcast %cst_177 : f32 to vector<8x32xf32>
    %831 = arith.subf %830, %824 : vector<8x32xf32>
    %832 = arith.mulf %831, %829 : vector<8x32xf32>
    %833 = arith.mulf %824, %806 : vector<8x32xf32>
    %834 = arith.addf %832, %833 : vector<8x32xf32>
    %835 = vector.extract_strided_slice %834 {offsets = [0, 0], sizes = [8, 16], strides = [1, 1]} : vector<8x32xf32> to vector<8x16xf32>
    %836 = vector.extract_strided_slice %834 {offsets = [0, 16], sizes = [8, 16], strides = [1, 1]} : vector<8x32xf32> to vector<8x16xf32>
    %c208 = arith.constant 208 : index
    %c0_178 = arith.constant 0 : index
    %837 = vector.load %arg1[%c208, %c0_178] : memref<256x256xf32, #tpu.memory_space<vmem>>, vector<8x96xf32>
    %c232 = arith.constant 232 : index
    %c128_179 = arith.constant 128 : index
    %838 = vector.load %arg1[%c232, %c128_179] : memref<256x256xf32, #tpu.memory_space<vmem>>, vector<8x96xf32>
    %839 = arith.addf %837, %838 : vector<8x96xf32>
    %cst_180 = arith.constant dense<0.000000e+00> : vector<8x96xf32>
    %840 = tpu.matmul %834, %0, %cst_180 {dimension_numbers = #tpu.dot_dimension_numbers<[1], [0], [0], [1], [0, 0, 1, 1], [], []>} : vector<8x32xf32>, vector<32x96xf32>, vector<8x96xf32> -> vector<8x96xf32>
    %841 = vector.broadcast %1 : vector<1x96xf32> to vector<8x96xf32>
    %842 = arith.addf %840, %841 : vector<8x96xf32>
    %843 = vector.extract_strided_slice %839 {offsets = [0, 0], sizes = [8, 64], strides = [1, 1]} : vector<8x96xf32> to vector<8x64xf32>
    %844 = vector.extract_strided_slice %842 {offsets = [0, 0], sizes = [8, 64], strides = [1, 1]} : vector<8x96xf32> to vector<8x64xf32>
    %845 = arith.addf %843, %844 : vector<8x64xf32>
    %846 = arith.negf %845 : vector<8x64xf32>
    %847 = math.exp %846 : vector<8x64xf32>
    %cst_181 = arith.constant 1.000000e+00 : f32
    %848 = vector.broadcast %cst_181 : f32 to vector<8x64xf32>
    %849 = arith.addf %848, %847 : vector<8x64xf32>
    %850 = arith.divf %848, %849 : vector<8x64xf32>
    %851 = vector.extract_strided_slice %850 {offsets = [0, 0], sizes = [8, 32], strides = [1, 1]} : vector<8x64xf32> to vector<8x32xf32>
    %852 = vector.extract_strided_slice %850 {offsets = [0, 32], sizes = [8, 32], strides = [1, 1]} : vector<8x64xf32> to vector<8x32xf32>
    %853 = vector.extract_strided_slice %839 {offsets = [0, 64], sizes = [8, 32], strides = [1, 1]} : vector<8x96xf32> to vector<8x32xf32>
    %854 = vector.extract_strided_slice %842 {offsets = [0, 64], sizes = [8, 32], strides = [1, 1]} : vector<8x96xf32> to vector<8x32xf32>
    %855 = arith.mulf %851, %854 : vector<8x32xf32>
    %856 = arith.addf %853, %855 : vector<8x32xf32>
    %857 = math.tanh %856 : vector<8x32xf32>
    %cst_182 = arith.constant 1.000000e+00 : f32
    %858 = vector.broadcast %cst_182 : f32 to vector<8x32xf32>
    %859 = arith.subf %858, %852 : vector<8x32xf32>
    %860 = arith.mulf %859, %857 : vector<8x32xf32>
    %861 = arith.mulf %852, %834 : vector<8x32xf32>
    %862 = arith.addf %860, %861 : vector<8x32xf32>
    %863 = vector.extract_strided_slice %862 {offsets = [0, 0], sizes = [8, 16], strides = [1, 1]} : vector<8x32xf32> to vector<8x16xf32>
    %864 = vector.extract_strided_slice %862 {offsets = [0, 16], sizes = [8, 16], strides = [1, 1]} : vector<8x32xf32> to vector<8x16xf32>
    %c216 = arith.constant 216 : index
    %c0_183 = arith.constant 0 : index
    %865 = vector.load %arg1[%c216, %c0_183] : memref<256x256xf32, #tpu.memory_space<vmem>>, vector<8x96xf32>
    %c224 = arith.constant 224 : index
    %c128_184 = arith.constant 128 : index
    %866 = vector.load %arg1[%c224, %c128_184] : memref<256x256xf32, #tpu.memory_space<vmem>>, vector<8x96xf32>
    %867 = arith.addf %865, %866 : vector<8x96xf32>
    %cst_185 = arith.constant dense<0.000000e+00> : vector<8x96xf32>
    %868 = tpu.matmul %862, %0, %cst_185 {dimension_numbers = #tpu.dot_dimension_numbers<[1], [0], [0], [1], [0, 0, 1, 1], [], []>} : vector<8x32xf32>, vector<32x96xf32>, vector<8x96xf32> -> vector<8x96xf32>
    %869 = vector.broadcast %1 : vector<1x96xf32> to vector<8x96xf32>
    %870 = arith.addf %868, %869 : vector<8x96xf32>
    %871 = vector.extract_strided_slice %867 {offsets = [0, 0], sizes = [8, 64], strides = [1, 1]} : vector<8x96xf32> to vector<8x64xf32>
    %872 = vector.extract_strided_slice %870 {offsets = [0, 0], sizes = [8, 64], strides = [1, 1]} : vector<8x96xf32> to vector<8x64xf32>
    %873 = arith.addf %871, %872 : vector<8x64xf32>
    %874 = arith.negf %873 : vector<8x64xf32>
    %875 = math.exp %874 : vector<8x64xf32>
    %cst_186 = arith.constant 1.000000e+00 : f32
    %876 = vector.broadcast %cst_186 : f32 to vector<8x64xf32>
    %877 = arith.addf %876, %875 : vector<8x64xf32>
    %878 = arith.divf %876, %877 : vector<8x64xf32>
    %879 = vector.extract_strided_slice %878 {offsets = [0, 0], sizes = [8, 32], strides = [1, 1]} : vector<8x64xf32> to vector<8x32xf32>
    %880 = vector.extract_strided_slice %878 {offsets = [0, 32], sizes = [8, 32], strides = [1, 1]} : vector<8x64xf32> to vector<8x32xf32>
    %881 = vector.extract_strided_slice %867 {offsets = [0, 64], sizes = [8, 32], strides = [1, 1]} : vector<8x96xf32> to vector<8x32xf32>
    %882 = vector.extract_strided_slice %870 {offsets = [0, 64], sizes = [8, 32], strides = [1, 1]} : vector<8x96xf32> to vector<8x32xf32>
    %883 = arith.mulf %879, %882 : vector<8x32xf32>
    %884 = arith.addf %881, %883 : vector<8x32xf32>
    %885 = math.tanh %884 : vector<8x32xf32>
    %cst_187 = arith.constant 1.000000e+00 : f32
    %886 = vector.broadcast %cst_187 : f32 to vector<8x32xf32>
    %887 = arith.subf %886, %880 : vector<8x32xf32>
    %888 = arith.mulf %887, %885 : vector<8x32xf32>
    %889 = arith.mulf %880, %862 : vector<8x32xf32>
    %890 = arith.addf %888, %889 : vector<8x32xf32>
    %891 = vector.extract_strided_slice %890 {offsets = [0, 0], sizes = [8, 16], strides = [1, 1]} : vector<8x32xf32> to vector<8x16xf32>
    %892 = vector.extract_strided_slice %890 {offsets = [0, 16], sizes = [8, 16], strides = [1, 1]} : vector<8x32xf32> to vector<8x16xf32>
    %c224_188 = arith.constant 224 : index
    %c0_189 = arith.constant 0 : index
    %893 = vector.load %arg1[%c224_188, %c0_189] : memref<256x256xf32, #tpu.memory_space<vmem>>, vector<8x96xf32>
    %c216_190 = arith.constant 216 : index
    %c128_191 = arith.constant 128 : index
    %894 = vector.load %arg1[%c216_190, %c128_191] : memref<256x256xf32, #tpu.memory_space<vmem>>, vector<8x96xf32>
    %895 = arith.addf %893, %894 : vector<8x96xf32>
    %cst_192 = arith.constant dense<0.000000e+00> : vector<8x96xf32>
    %896 = tpu.matmul %890, %0, %cst_192 {dimension_numbers = #tpu.dot_dimension_numbers<[1], [0], [0], [1], [0, 0, 1, 1], [], []>} : vector<8x32xf32>, vector<32x96xf32>, vector<8x96xf32> -> vector<8x96xf32>
    %897 = vector.broadcast %1 : vector<1x96xf32> to vector<8x96xf32>
    %898 = arith.addf %896, %897 : vector<8x96xf32>
    %899 = vector.extract_strided_slice %895 {offsets = [0, 0], sizes = [8, 64], strides = [1, 1]} : vector<8x96xf32> to vector<8x64xf32>
    %900 = vector.extract_strided_slice %898 {offsets = [0, 0], sizes = [8, 64], strides = [1, 1]} : vector<8x96xf32> to vector<8x64xf32>
    %901 = arith.addf %899, %900 : vector<8x64xf32>
    %902 = arith.negf %901 : vector<8x64xf32>
    %903 = math.exp %902 : vector<8x64xf32>
    %cst_193 = arith.constant 1.000000e+00 : f32
    %904 = vector.broadcast %cst_193 : f32 to vector<8x64xf32>
    %905 = arith.addf %904, %903 : vector<8x64xf32>
    %906 = arith.divf %904, %905 : vector<8x64xf32>
    %907 = vector.extract_strided_slice %906 {offsets = [0, 0], sizes = [8, 32], strides = [1, 1]} : vector<8x64xf32> to vector<8x32xf32>
    %908 = vector.extract_strided_slice %906 {offsets = [0, 32], sizes = [8, 32], strides = [1, 1]} : vector<8x64xf32> to vector<8x32xf32>
    %909 = vector.extract_strided_slice %895 {offsets = [0, 64], sizes = [8, 32], strides = [1, 1]} : vector<8x96xf32> to vector<8x32xf32>
    %910 = vector.extract_strided_slice %898 {offsets = [0, 64], sizes = [8, 32], strides = [1, 1]} : vector<8x96xf32> to vector<8x32xf32>
    %911 = arith.mulf %907, %910 : vector<8x32xf32>
    %912 = arith.addf %909, %911 : vector<8x32xf32>
    %913 = math.tanh %912 : vector<8x32xf32>
    %cst_194 = arith.constant 1.000000e+00 : f32
    %914 = vector.broadcast %cst_194 : f32 to vector<8x32xf32>
    %915 = arith.subf %914, %908 : vector<8x32xf32>
    %916 = arith.mulf %915, %913 : vector<8x32xf32>
    %917 = arith.mulf %908, %890 : vector<8x32xf32>
    %918 = arith.addf %916, %917 : vector<8x32xf32>
    %919 = vector.extract_strided_slice %918 {offsets = [0, 0], sizes = [8, 16], strides = [1, 1]} : vector<8x32xf32> to vector<8x16xf32>
    %920 = vector.extract_strided_slice %918 {offsets = [0, 16], sizes = [8, 16], strides = [1, 1]} : vector<8x32xf32> to vector<8x16xf32>
    %c232_195 = arith.constant 232 : index
    %c0_196 = arith.constant 0 : index
    %921 = vector.load %arg1[%c232_195, %c0_196] : memref<256x256xf32, #tpu.memory_space<vmem>>, vector<8x96xf32>
    %c208_197 = arith.constant 208 : index
    %c128_198 = arith.constant 128 : index
    %922 = vector.load %arg1[%c208_197, %c128_198] : memref<256x256xf32, #tpu.memory_space<vmem>>, vector<8x96xf32>
    %923 = arith.addf %921, %922 : vector<8x96xf32>
    %cst_199 = arith.constant dense<0.000000e+00> : vector<8x96xf32>
    %924 = tpu.matmul %918, %0, %cst_199 {dimension_numbers = #tpu.dot_dimension_numbers<[1], [0], [0], [1], [0, 0, 1, 1], [], []>} : vector<8x32xf32>, vector<32x96xf32>, vector<8x96xf32> -> vector<8x96xf32>
    %925 = vector.broadcast %1 : vector<1x96xf32> to vector<8x96xf32>
    %926 = arith.addf %924, %925 : vector<8x96xf32>
    %927 = vector.extract_strided_slice %923 {offsets = [0, 0], sizes = [8, 64], strides = [1, 1]} : vector<8x96xf32> to vector<8x64xf32>
    %928 = vector.extract_strided_slice %926 {offsets = [0, 0], sizes = [8, 64], strides = [1, 1]} : vector<8x96xf32> to vector<8x64xf32>
    %929 = arith.addf %927, %928 : vector<8x64xf32>
    %930 = arith.negf %929 : vector<8x64xf32>
    %931 = math.exp %930 : vector<8x64xf32>
    %cst_200 = arith.constant 1.000000e+00 : f32
    %932 = vector.broadcast %cst_200 : f32 to vector<8x64xf32>
    %933 = arith.addf %932, %931 : vector<8x64xf32>
    %934 = arith.divf %932, %933 : vector<8x64xf32>
    %935 = vector.extract_strided_slice %934 {offsets = [0, 0], sizes = [8, 32], strides = [1, 1]} : vector<8x64xf32> to vector<8x32xf32>
    %936 = vector.extract_strided_slice %934 {offsets = [0, 32], sizes = [8, 32], strides = [1, 1]} : vector<8x64xf32> to vector<8x32xf32>
    %937 = vector.extract_strided_slice %923 {offsets = [0, 64], sizes = [8, 32], strides = [1, 1]} : vector<8x96xf32> to vector<8x32xf32>
    %938 = vector.extract_strided_slice %926 {offsets = [0, 64], sizes = [8, 32], strides = [1, 1]} : vector<8x96xf32> to vector<8x32xf32>
    %939 = arith.mulf %935, %938 : vector<8x32xf32>
    %940 = arith.addf %937, %939 : vector<8x32xf32>
    %941 = math.tanh %940 : vector<8x32xf32>
    %cst_201 = arith.constant 1.000000e+00 : f32
    %942 = vector.broadcast %cst_201 : f32 to vector<8x32xf32>
    %943 = arith.subf %942, %936 : vector<8x32xf32>
    %944 = arith.mulf %943, %941 : vector<8x32xf32>
    %945 = arith.mulf %936, %918 : vector<8x32xf32>
    %946 = arith.addf %944, %945 : vector<8x32xf32>
    %947 = vector.extract_strided_slice %946 {offsets = [0, 0], sizes = [8, 16], strides = [1, 1]} : vector<8x32xf32> to vector<8x16xf32>
    %948 = vector.extract_strided_slice %946 {offsets = [0, 16], sizes = [8, 16], strides = [1, 1]} : vector<8x32xf32> to vector<8x16xf32>
    %c240_202 = arith.constant 240 : index
    %c0_203 = arith.constant 0 : index
    %949 = vector.load %arg1[%c240_202, %c0_203] : memref<256x256xf32, #tpu.memory_space<vmem>>, vector<8x96xf32>
    %c200_204 = arith.constant 200 : index
    %c128_205 = arith.constant 128 : index
    %950 = vector.load %arg1[%c200_204, %c128_205] : memref<256x256xf32, #tpu.memory_space<vmem>>, vector<8x96xf32>
    %951 = arith.addf %949, %950 : vector<8x96xf32>
    %cst_206 = arith.constant dense<0.000000e+00> : vector<8x96xf32>
    %952 = tpu.matmul %946, %0, %cst_206 {dimension_numbers = #tpu.dot_dimension_numbers<[1], [0], [0], [1], [0, 0, 1, 1], [], []>} : vector<8x32xf32>, vector<32x96xf32>, vector<8x96xf32> -> vector<8x96xf32>
    %953 = vector.broadcast %1 : vector<1x96xf32> to vector<8x96xf32>
    %954 = arith.addf %952, %953 : vector<8x96xf32>
    %955 = vector.extract_strided_slice %951 {offsets = [0, 0], sizes = [8, 64], strides = [1, 1]} : vector<8x96xf32> to vector<8x64xf32>
    %956 = vector.extract_strided_slice %954 {offsets = [0, 0], sizes = [8, 64], strides = [1, 1]} : vector<8x96xf32> to vector<8x64xf32>
    %957 = arith.addf %955, %956 : vector<8x64xf32>
    %958 = arith.negf %957 : vector<8x64xf32>
    %959 = math.exp %958 : vector<8x64xf32>
    %cst_207 = arith.constant 1.000000e+00 : f32
    %960 = vector.broadcast %cst_207 : f32 to vector<8x64xf32>
    %961 = arith.addf %960, %959 : vector<8x64xf32>
    %962 = arith.divf %960, %961 : vector<8x64xf32>
    %963 = vector.extract_strided_slice %962 {offsets = [0, 0], sizes = [8, 32], strides = [1, 1]} : vector<8x64xf32> to vector<8x32xf32>
    %964 = vector.extract_strided_slice %962 {offsets = [0, 32], sizes = [8, 32], strides = [1, 1]} : vector<8x64xf32> to vector<8x32xf32>
    %965 = vector.extract_strided_slice %951 {offsets = [0, 64], sizes = [8, 32], strides = [1, 1]} : vector<8x96xf32> to vector<8x32xf32>
    %966 = vector.extract_strided_slice %954 {offsets = [0, 64], sizes = [8, 32], strides = [1, 1]} : vector<8x96xf32> to vector<8x32xf32>
    %967 = arith.mulf %963, %966 : vector<8x32xf32>
    %968 = arith.addf %965, %967 : vector<8x32xf32>
    %969 = math.tanh %968 : vector<8x32xf32>
    %cst_208 = arith.constant 1.000000e+00 : f32
    %970 = vector.broadcast %cst_208 : f32 to vector<8x32xf32>
    %971 = arith.subf %970, %964 : vector<8x32xf32>
    %972 = arith.mulf %971, %969 : vector<8x32xf32>
    %973 = arith.mulf %964, %946 : vector<8x32xf32>
    %974 = arith.addf %972, %973 : vector<8x32xf32>
    %975 = vector.extract_strided_slice %974 {offsets = [0, 0], sizes = [8, 16], strides = [1, 1]} : vector<8x32xf32> to vector<8x16xf32>
    %976 = vector.extract_strided_slice %974 {offsets = [0, 16], sizes = [8, 16], strides = [1, 1]} : vector<8x32xf32> to vector<8x16xf32>
    %c248_209 = arith.constant 248 : index
    %c0_210 = arith.constant 0 : index
    %977 = vector.load %arg1[%c248_209, %c0_210] : memref<256x256xf32, #tpu.memory_space<vmem>>, vector<8x96xf32>
    %c192_211 = arith.constant 192 : index
    %c128_212 = arith.constant 128 : index
    %978 = vector.load %arg1[%c192_211, %c128_212] : memref<256x256xf32, #tpu.memory_space<vmem>>, vector<8x96xf32>
    %979 = arith.addf %977, %978 : vector<8x96xf32>
    %cst_213 = arith.constant dense<0.000000e+00> : vector<8x96xf32>
    %980 = tpu.matmul %974, %0, %cst_213 {dimension_numbers = #tpu.dot_dimension_numbers<[1], [0], [0], [1], [0, 0, 1, 1], [], []>} : vector<8x32xf32>, vector<32x96xf32>, vector<8x96xf32> -> vector<8x96xf32>
    %981 = vector.broadcast %1 : vector<1x96xf32> to vector<8x96xf32>
    %982 = arith.addf %980, %981 : vector<8x96xf32>
    %983 = vector.extract_strided_slice %979 {offsets = [0, 0], sizes = [8, 64], strides = [1, 1]} : vector<8x96xf32> to vector<8x64xf32>
    %984 = vector.extract_strided_slice %982 {offsets = [0, 0], sizes = [8, 64], strides = [1, 1]} : vector<8x96xf32> to vector<8x64xf32>
    %985 = arith.addf %983, %984 : vector<8x64xf32>
    %986 = arith.negf %985 : vector<8x64xf32>
    %987 = math.exp %986 : vector<8x64xf32>
    %cst_214 = arith.constant 1.000000e+00 : f32
    %988 = vector.broadcast %cst_214 : f32 to vector<8x64xf32>
    %989 = arith.addf %988, %987 : vector<8x64xf32>
    %990 = arith.divf %988, %989 : vector<8x64xf32>
    %991 = vector.extract_strided_slice %990 {offsets = [0, 0], sizes = [8, 32], strides = [1, 1]} : vector<8x64xf32> to vector<8x32xf32>
    %992 = vector.extract_strided_slice %990 {offsets = [0, 32], sizes = [8, 32], strides = [1, 1]} : vector<8x64xf32> to vector<8x32xf32>
    %993 = vector.extract_strided_slice %979 {offsets = [0, 64], sizes = [8, 32], strides = [1, 1]} : vector<8x96xf32> to vector<8x32xf32>
    %994 = vector.extract_strided_slice %982 {offsets = [0, 64], sizes = [8, 32], strides = [1, 1]} : vector<8x96xf32> to vector<8x32xf32>
    %995 = arith.mulf %991, %994 : vector<8x32xf32>
    %996 = arith.addf %993, %995 : vector<8x32xf32>
    %997 = math.tanh %996 : vector<8x32xf32>
    %cst_215 = arith.constant 1.000000e+00 : f32
    %998 = vector.broadcast %cst_215 : f32 to vector<8x32xf32>
    %999 = arith.subf %998, %992 : vector<8x32xf32>
    %1000 = arith.mulf %999, %997 : vector<8x32xf32>
    %1001 = arith.mulf %992, %974 : vector<8x32xf32>
    %1002 = arith.addf %1000, %1001 : vector<8x32xf32>
    %1003 = vector.extract_strided_slice %1002 {offsets = [0, 0], sizes = [8, 16], strides = [1, 1]} : vector<8x32xf32> to vector<8x16xf32>
    %1004 = vector.extract_strided_slice %1002 {offsets = [0, 16], sizes = [8, 16], strides = [1, 1]} : vector<8x32xf32> to vector<8x16xf32>
    %1005 = tpu.concatenate %807, %1004 in 1 : vector<8x16xf32>, vector<8x16xf32> -> vector<8x32xf32>
    %1006 = tpu.concatenate %835, %976 in 1 : vector<8x16xf32>, vector<8x16xf32> -> vector<8x32xf32>
    %1007 = tpu.concatenate %863, %948 in 1 : vector<8x16xf32>, vector<8x16xf32> -> vector<8x32xf32>
    %1008 = tpu.concatenate %891, %920 in 1 : vector<8x16xf32>, vector<8x16xf32> -> vector<8x32xf32>
    %1009 = tpu.concatenate %919, %892 in 1 : vector<8x16xf32>, vector<8x16xf32> -> vector<8x32xf32>
    %1010 = tpu.concatenate %947, %864 in 1 : vector<8x16xf32>, vector<8x16xf32> -> vector<8x32xf32>
    %1011 = tpu.concatenate %975, %836 in 1 : vector<8x16xf32>, vector<8x16xf32> -> vector<8x32xf32>
    %1012 = tpu.concatenate %1003, %808 in 1 : vector<8x16xf32>, vector<8x16xf32> -> vector<8x32xf32>
    %1013 = tpu.concatenate %1005, %1006, %1007, %1008, %1009, %1010, %1011, %1012 in 0 : vector<8x32xf32>, vector<8x32xf32>, vector<8x32xf32>, vector<8x32xf32>, vector<8x32xf32>, vector<8x32xf32>, vector<8x32xf32>, vector<8x32xf32> -> vector<64x32xf32>
    %cst_216 = arith.constant dense<0.000000e+00> : vector<64x32xf32>
    %1014 = tpu.matmul %1013, %2, %cst_216 {dimension_numbers = #tpu.dot_dimension_numbers<[1], [0], [0], [1], [0, 0, 1, 1], [], []>} : vector<64x32xf32>, vector<32x32xf32>, vector<64x32xf32> -> vector<64x32xf32>
    %1015 = vector.broadcast %3 : vector<1x32xf32> to vector<64x32xf32>
    %1016 = arith.addf %1014, %1015 : vector<64x32xf32>
    %1017 = math.tanh %1016 : vector<64x32xf32>
    %1018 = vector.broadcast %4 : vector<1x32xf32> to vector<64x32xf32>
    %1019 = arith.mulf %1017, %1018 : vector<64x32xf32>
    %cst_217 = arith.constant dense<0.000000e+00> : vector<64xf32>
    %1020 = vector.multi_reduction <add>, %1019, %cst_217 [1] : vector<64x32xf32> to vector<64xf32>
    %1021 = vector.shape_cast %1020 : vector<64xf32> to vector<64x1xf32>
    %1022 = math.tanh %1021 : vector<64x1xf32>
    %1023 = vector.shape_cast %1022 : vector<64x1xf32> to vector<1x64x1xf32>
    %cst_218 = arith.constant dense<0xFF800000> : vector<1xf32>
    %1024 = vector.multi_reduction <maximumf>, %1023, %cst_218 [1, 2] : vector<1x64x1xf32> to vector<1xf32>
    %1025 = vector.shape_cast %1024 : vector<1xf32> to vector<1x1x1xf32>
    %1026 = vector.extract %1025[0, 0, 0] : f32 from vector<1x1x1xf32>
    %1027 = vector.broadcast %1026 : f32 to vector<1x1xf32>
    %1028 = vector.broadcast %1027 : vector<1x1xf32> to vector<64x1xf32>
    %1029 = arith.subf %1022, %1028 : vector<64x1xf32>
    %1030 = math.exp %1029 : vector<64x1xf32>
    %1031 = vector.broadcast %1030 : vector<64x1xf32> to vector<64x32xf32>
    %1032 = arith.mulf %1031, %1013 : vector<64x32xf32>
    %1033 = tpu.concatenate %1032, %1030 in 1 : vector<64x32xf32>, vector<64x1xf32> -> vector<64x33xf32>
    %cst_219 = arith.constant dense<0.000000e+00> : vector<8x33xf32>
    %1034 = tpu.matmul %5, %1033, %cst_219 {dimension_numbers = #tpu.dot_dimension_numbers<[1], [0], [0], [1], [0, 0, 1, 1], [], []>} : vector<8x64xf32>, vector<64x33xf32>, vector<8x33xf32> -> vector<8x33xf32>
    %1035 = vector.extract_strided_slice %1034 {offsets = [0, 0], sizes = [8, 32], strides = [1, 1]} : vector<8x33xf32> to vector<8x32xf32>
    %1036 = vector.extract_strided_slice %1034 {offsets = [0, 32], sizes = [8, 1], strides = [1, 1]} : vector<8x33xf32> to vector<8x1xf32>
    %1037 = vector.broadcast %1036 : vector<8x1xf32> to vector<8x32xf32>
    %1038 = arith.divf %1035, %1037 : vector<8x32xf32>
    %1039 = tpu.concatenate %264, %522, %780, %1038 in 0 : vector<8x32xf32>, vector<8x32xf32>, vector<8x32xf32>, vector<8x32xf32> -> vector<32x32xf32>
    %c96_220 = arith.constant 96 : index
    %c0_221 = arith.constant 0 : index
    %1040 = vector.load %arg2[%c96_220, %c0_221] : memref<272x256xf32, #tpu.memory_space<vmem>>, vector<32x256xf32>
    %cst_222 = arith.constant dense<0.000000e+00> : vector<32x256xf32>
    %1041 = tpu.matmul %1039, %1040, %cst_222 {dimension_numbers = #tpu.dot_dimension_numbers<[1], [0], [0], [1], [0, 0, 1, 1], [], []>} : vector<32x32xf32>, vector<32x256xf32>, vector<32x256xf32> -> vector<32x256xf32>
    %c128_223 = arith.constant 128 : index
    %c0_224 = arith.constant 0 : index
    %1042 = vector.load %arg2[%c128_223, %c0_224] : memref<272x256xf32, #tpu.memory_space<vmem>>, vector<1x256xf32>
    %1043 = vector.broadcast %1042 : vector<1x256xf32> to vector<32x256xf32>
    %1044 = arith.addf %1041, %1043 : vector<32x256xf32>
    %cst_225 = arith.constant 0.000000e+00 : f32
    %1045 = vector.broadcast %cst_225 : f32 to vector<8x32xf32>
    %c136_226 = arith.constant 136 : index
    %c0_227 = arith.constant 0 : index
    %1046 = vector.load %arg2[%c136_226, %c0_227] : memref<272x256xf32, #tpu.memory_space<vmem>>, vector<32x96xf32>
    %c168_228 = arith.constant 168 : index
    %c0_229 = arith.constant 0 : index
    %1047 = vector.load %arg2[%c168_228, %c0_229] : memref<272x256xf32, #tpu.memory_space<vmem>>, vector<1x96xf32>
    %1048 = vector.extract_strided_slice %1044 {offsets = [0, 0], sizes = [8, 96], strides = [1, 1]} : vector<32x256xf32> to vector<8x96xf32>
    %1049 = vector.extract_strided_slice %1044 {offsets = [24, 128], sizes = [8, 96], strides = [1, 1]} : vector<32x256xf32> to vector<8x96xf32>
    %1050 = arith.addf %1048, %1049 : vector<8x96xf32>
    %cst_230 = arith.constant dense<0.000000e+00> : vector<8x96xf32>
    %1051 = tpu.matmul %1045, %1046, %cst_230 {dimension_numbers = #tpu.dot_dimension_numbers<[1], [0], [0], [1], [0, 0, 1, 1], [], []>} : vector<8x32xf32>, vector<32x96xf32>, vector<8x96xf32> -> vector<8x96xf32>
    %1052 = vector.broadcast %1047 : vector<1x96xf32> to vector<8x96xf32>
    %1053 = arith.addf %1051, %1052 : vector<8x96xf32>
    %1054 = vector.extract_strided_slice %1050 {offsets = [0, 0], sizes = [8, 64], strides = [1, 1]} : vector<8x96xf32> to vector<8x64xf32>
    %1055 = vector.extract_strided_slice %1053 {offsets = [0, 0], sizes = [8, 64], strides = [1, 1]} : vector<8x96xf32> to vector<8x64xf32>
    %1056 = arith.addf %1054, %1055 : vector<8x64xf32>
    %1057 = arith.negf %1056 : vector<8x64xf32>
    %1058 = math.exp %1057 : vector<8x64xf32>
    %cst_231 = arith.constant 1.000000e+00 : f32
    %1059 = vector.broadcast %cst_231 : f32 to vector<8x64xf32>
    %1060 = arith.addf %1059, %1058 : vector<8x64xf32>
    %1061 = arith.divf %1059, %1060 : vector<8x64xf32>
    %1062 = vector.extract_strided_slice %1061 {offsets = [0, 0], sizes = [8, 32], strides = [1, 1]} : vector<8x64xf32> to vector<8x32xf32>
    %1063 = vector.extract_strided_slice %1061 {offsets = [0, 32], sizes = [8, 32], strides = [1, 1]} : vector<8x64xf32> to vector<8x32xf32>
    %1064 = vector.extract_strided_slice %1050 {offsets = [0, 64], sizes = [8, 32], strides = [1, 1]} : vector<8x96xf32> to vector<8x32xf32>
    %1065 = vector.extract_strided_slice %1053 {offsets = [0, 64], sizes = [8, 32], strides = [1, 1]} : vector<8x96xf32> to vector<8x32xf32>
    %1066 = arith.mulf %1062, %1065 : vector<8x32xf32>
    %1067 = arith.addf %1064, %1066 : vector<8x32xf32>
    %1068 = math.tanh %1067 : vector<8x32xf32>
    %cst_232 = arith.constant 1.000000e+00 : f32
    %1069 = vector.broadcast %cst_232 : f32 to vector<8x32xf32>
    %1070 = arith.subf %1069, %1063 : vector<8x32xf32>
    %1071 = arith.mulf %1070, %1068 : vector<8x32xf32>
    %1072 = arith.mulf %1063, %1045 : vector<8x32xf32>
    %1073 = arith.addf %1071, %1072 : vector<8x32xf32>
    %1074 = vector.extract_strided_slice %1073 {offsets = [0, 0], sizes = [8, 16], strides = [1, 1]} : vector<8x32xf32> to vector<8x16xf32>
    %1075 = vector.extract_strided_slice %1073 {offsets = [0, 16], sizes = [8, 16], strides = [1, 1]} : vector<8x32xf32> to vector<8x16xf32>
    %1076 = vector.extract_strided_slice %1044 {offsets = [8, 0], sizes = [8, 96], strides = [1, 1]} : vector<32x256xf32> to vector<8x96xf32>
    %1077 = vector.extract_strided_slice %1044 {offsets = [16, 128], sizes = [8, 96], strides = [1, 1]} : vector<32x256xf32> to vector<8x96xf32>
    %1078 = arith.addf %1076, %1077 : vector<8x96xf32>
    %cst_233 = arith.constant dense<0.000000e+00> : vector<8x96xf32>
    %1079 = tpu.matmul %1073, %1046, %cst_233 {dimension_numbers = #tpu.dot_dimension_numbers<[1], [0], [0], [1], [0, 0, 1, 1], [], []>} : vector<8x32xf32>, vector<32x96xf32>, vector<8x96xf32> -> vector<8x96xf32>
    %1080 = vector.broadcast %1047 : vector<1x96xf32> to vector<8x96xf32>
    %1081 = arith.addf %1079, %1080 : vector<8x96xf32>
    %1082 = vector.extract_strided_slice %1078 {offsets = [0, 0], sizes = [8, 64], strides = [1, 1]} : vector<8x96xf32> to vector<8x64xf32>
    %1083 = vector.extract_strided_slice %1081 {offsets = [0, 0], sizes = [8, 64], strides = [1, 1]} : vector<8x96xf32> to vector<8x64xf32>
    %1084 = arith.addf %1082, %1083 : vector<8x64xf32>
    %1085 = arith.negf %1084 : vector<8x64xf32>
    %1086 = math.exp %1085 : vector<8x64xf32>
    %cst_234 = arith.constant 1.000000e+00 : f32
    %1087 = vector.broadcast %cst_234 : f32 to vector<8x64xf32>
    %1088 = arith.addf %1087, %1086 : vector<8x64xf32>
    %1089 = arith.divf %1087, %1088 : vector<8x64xf32>
    %1090 = vector.extract_strided_slice %1089 {offsets = [0, 0], sizes = [8, 32], strides = [1, 1]} : vector<8x64xf32> to vector<8x32xf32>
    %1091 = vector.extract_strided_slice %1089 {offsets = [0, 32], sizes = [8, 32], strides = [1, 1]} : vector<8x64xf32> to vector<8x32xf32>
    %1092 = vector.extract_strided_slice %1078 {offsets = [0, 64], sizes = [8, 32], strides = [1, 1]} : vector<8x96xf32> to vector<8x32xf32>
    %1093 = vector.extract_strided_slice %1081 {offsets = [0, 64], sizes = [8, 32], strides = [1, 1]} : vector<8x96xf32> to vector<8x32xf32>
    %1094 = arith.mulf %1090, %1093 : vector<8x32xf32>
    %1095 = arith.addf %1092, %1094 : vector<8x32xf32>
    %1096 = math.tanh %1095 : vector<8x32xf32>
    %cst_235 = arith.constant 1.000000e+00 : f32
    %1097 = vector.broadcast %cst_235 : f32 to vector<8x32xf32>
    %1098 = arith.subf %1097, %1091 : vector<8x32xf32>
    %1099 = arith.mulf %1098, %1096 : vector<8x32xf32>
    %1100 = arith.mulf %1091, %1073 : vector<8x32xf32>
    %1101 = arith.addf %1099, %1100 : vector<8x32xf32>
    %1102 = vector.extract_strided_slice %1101 {offsets = [0, 0], sizes = [8, 16], strides = [1, 1]} : vector<8x32xf32> to vector<8x16xf32>
    %1103 = vector.extract_strided_slice %1101 {offsets = [0, 16], sizes = [8, 16], strides = [1, 1]} : vector<8x32xf32> to vector<8x16xf32>
    %1104 = vector.extract_strided_slice %1044 {offsets = [16, 0], sizes = [8, 96], strides = [1, 1]} : vector<32x256xf32> to vector<8x96xf32>
    %1105 = vector.extract_strided_slice %1044 {offsets = [8, 128], sizes = [8, 96], strides = [1, 1]} : vector<32x256xf32> to vector<8x96xf32>
    %1106 = arith.addf %1104, %1105 : vector<8x96xf32>
    %cst_236 = arith.constant dense<0.000000e+00> : vector<8x96xf32>
    %1107 = tpu.matmul %1101, %1046, %cst_236 {dimension_numbers = #tpu.dot_dimension_numbers<[1], [0], [0], [1], [0, 0, 1, 1], [], []>} : vector<8x32xf32>, vector<32x96xf32>, vector<8x96xf32> -> vector<8x96xf32>
    %1108 = vector.broadcast %1047 : vector<1x96xf32> to vector<8x96xf32>
    %1109 = arith.addf %1107, %1108 : vector<8x96xf32>
    %1110 = vector.extract_strided_slice %1106 {offsets = [0, 0], sizes = [8, 64], strides = [1, 1]} : vector<8x96xf32> to vector<8x64xf32>
    %1111 = vector.extract_strided_slice %1109 {offsets = [0, 0], sizes = [8, 64], strides = [1, 1]} : vector<8x96xf32> to vector<8x64xf32>
    %1112 = arith.addf %1110, %1111 : vector<8x64xf32>
    %1113 = arith.negf %1112 : vector<8x64xf32>
    %1114 = math.exp %1113 : vector<8x64xf32>
    %cst_237 = arith.constant 1.000000e+00 : f32
    %1115 = vector.broadcast %cst_237 : f32 to vector<8x64xf32>
    %1116 = arith.addf %1115, %1114 : vector<8x64xf32>
    %1117 = arith.divf %1115, %1116 : vector<8x64xf32>
    %1118 = vector.extract_strided_slice %1117 {offsets = [0, 0], sizes = [8, 32], strides = [1, 1]} : vector<8x64xf32> to vector<8x32xf32>
    %1119 = vector.extract_strided_slice %1117 {offsets = [0, 32], sizes = [8, 32], strides = [1, 1]} : vector<8x64xf32> to vector<8x32xf32>
    %1120 = vector.extract_strided_slice %1106 {offsets = [0, 64], sizes = [8, 32], strides = [1, 1]} : vector<8x96xf32> to vector<8x32xf32>
    %1121 = vector.extract_strided_slice %1109 {offsets = [0, 64], sizes = [8, 32], strides = [1, 1]} : vector<8x96xf32> to vector<8x32xf32>
    %1122 = arith.mulf %1118, %1121 : vector<8x32xf32>
    %1123 = arith.addf %1120, %1122 : vector<8x32xf32>
    %1124 = math.tanh %1123 : vector<8x32xf32>
    %cst_238 = arith.constant 1.000000e+00 : f32
    %1125 = vector.broadcast %cst_238 : f32 to vector<8x32xf32>
    %1126 = arith.subf %1125, %1119 : vector<8x32xf32>
    %1127 = arith.mulf %1126, %1124 : vector<8x32xf32>
    %1128 = arith.mulf %1119, %1101 : vector<8x32xf32>
    %1129 = arith.addf %1127, %1128 : vector<8x32xf32>
    %1130 = vector.extract_strided_slice %1129 {offsets = [0, 0], sizes = [8, 16], strides = [1, 1]} : vector<8x32xf32> to vector<8x16xf32>
    %1131 = vector.extract_strided_slice %1129 {offsets = [0, 16], sizes = [8, 16], strides = [1, 1]} : vector<8x32xf32> to vector<8x16xf32>
    %1132 = vector.extract_strided_slice %1044 {offsets = [24, 0], sizes = [8, 96], strides = [1, 1]} : vector<32x256xf32> to vector<8x96xf32>
    %1133 = vector.extract_strided_slice %1044 {offsets = [0, 128], sizes = [8, 96], strides = [1, 1]} : vector<32x256xf32> to vector<8x96xf32>
    %1134 = arith.addf %1132, %1133 : vector<8x96xf32>
    %cst_239 = arith.constant dense<0.000000e+00> : vector<8x96xf32>
    %1135 = tpu.matmul %1129, %1046, %cst_239 {dimension_numbers = #tpu.dot_dimension_numbers<[1], [0], [0], [1], [0, 0, 1, 1], [], []>} : vector<8x32xf32>, vector<32x96xf32>, vector<8x96xf32> -> vector<8x96xf32>
    %1136 = vector.broadcast %1047 : vector<1x96xf32> to vector<8x96xf32>
    %1137 = arith.addf %1135, %1136 : vector<8x96xf32>
    %1138 = vector.extract_strided_slice %1134 {offsets = [0, 0], sizes = [8, 64], strides = [1, 1]} : vector<8x96xf32> to vector<8x64xf32>
    %1139 = vector.extract_strided_slice %1137 {offsets = [0, 0], sizes = [8, 64], strides = [1, 1]} : vector<8x96xf32> to vector<8x64xf32>
    %1140 = arith.addf %1138, %1139 : vector<8x64xf32>
    %1141 = arith.negf %1140 : vector<8x64xf32>
    %1142 = math.exp %1141 : vector<8x64xf32>
    %cst_240 = arith.constant 1.000000e+00 : f32
    %1143 = vector.broadcast %cst_240 : f32 to vector<8x64xf32>
    %1144 = arith.addf %1143, %1142 : vector<8x64xf32>
    %1145 = arith.divf %1143, %1144 : vector<8x64xf32>
    %1146 = vector.extract_strided_slice %1145 {offsets = [0, 0], sizes = [8, 32], strides = [1, 1]} : vector<8x64xf32> to vector<8x32xf32>
    %1147 = vector.extract_strided_slice %1145 {offsets = [0, 32], sizes = [8, 32], strides = [1, 1]} : vector<8x64xf32> to vector<8x32xf32>
    %1148 = vector.extract_strided_slice %1134 {offsets = [0, 64], sizes = [8, 32], strides = [1, 1]} : vector<8x96xf32> to vector<8x32xf32>
    %1149 = vector.extract_strided_slice %1137 {offsets = [0, 64], sizes = [8, 32], strides = [1, 1]} : vector<8x96xf32> to vector<8x32xf32>
    %1150 = arith.mulf %1146, %1149 : vector<8x32xf32>
    %1151 = arith.addf %1148, %1150 : vector<8x32xf32>
    %1152 = math.tanh %1151 : vector<8x32xf32>
    %cst_241 = arith.constant 1.000000e+00 : f32
    %1153 = vector.broadcast %cst_241 : f32 to vector<8x32xf32>
    %1154 = arith.subf %1153, %1147 : vector<8x32xf32>
    %1155 = arith.mulf %1154, %1152 : vector<8x32xf32>
    %1156 = arith.mulf %1147, %1129 : vector<8x32xf32>
    %1157 = arith.addf %1155, %1156 : vector<8x32xf32>
    %1158 = vector.extract_strided_slice %1157 {offsets = [0, 0], sizes = [8, 16], strides = [1, 1]} : vector<8x32xf32> to vector<8x16xf32>
    %1159 = vector.extract_strided_slice %1157 {offsets = [0, 16], sizes = [8, 16], strides = [1, 1]} : vector<8x32xf32> to vector<8x16xf32>
    %1160 = tpu.concatenate %1074, %1159 in 1 : vector<8x16xf32>, vector<8x16xf32> -> vector<8x32xf32>
    %1161 = tpu.concatenate %1102, %1131 in 1 : vector<8x16xf32>, vector<8x16xf32> -> vector<8x32xf32>
    %1162 = tpu.concatenate %1130, %1103 in 1 : vector<8x16xf32>, vector<8x16xf32> -> vector<8x32xf32>
    %1163 = tpu.concatenate %1158, %1075 in 1 : vector<8x16xf32>, vector<8x16xf32> -> vector<8x32xf32>
    %1164 = tpu.concatenate %1160, %1161, %1162, %1163 in 0 : vector<8x32xf32>, vector<8x32xf32>, vector<8x32xf32>, vector<8x32xf32> -> vector<32x32xf32>
    %c176_242 = arith.constant 176 : index
    %c0_243 = arith.constant 0 : index
    %1165 = vector.load %arg2[%c176_242, %c0_243] : memref<272x256xf32, #tpu.memory_space<vmem>>, vector<32x32xf32>
    %c208_244 = arith.constant 208 : index
    %c0_245 = arith.constant 0 : index
    %1166 = vector.load %arg2[%c208_244, %c0_245] : memref<272x256xf32, #tpu.memory_space<vmem>>, vector<1x32xf32>
    %c216_246 = arith.constant 216 : index
    %c0_247 = arith.constant 0 : index
    %1167 = vector.load %arg2[%c216_246, %c0_247] : memref<272x256xf32, #tpu.memory_space<vmem>>, vector<1x32xf32>
    %c224_248 = arith.constant 224 : index
    %c0_249 = arith.constant 0 : index
    %1168 = vector.load %arg2[%c224_248, %c0_249] : memref<272x256xf32, #tpu.memory_space<vmem>>, vector<8x32xf32>
    %cst_250 = arith.constant dense<0.000000e+00> : vector<32x32xf32>
    %1169 = tpu.matmul %1164, %1165, %cst_250 {dimension_numbers = #tpu.dot_dimension_numbers<[1], [0], [0], [1], [0, 0, 1, 1], [], []>} : vector<32x32xf32>, vector<32x32xf32>, vector<32x32xf32> -> vector<32x32xf32>
    %1170 = vector.broadcast %1166 : vector<1x32xf32> to vector<32x32xf32>
    %1171 = arith.addf %1169, %1170 : vector<32x32xf32>
    %1172 = math.tanh %1171 : vector<32x32xf32>
    %1173 = vector.broadcast %1167 : vector<1x32xf32> to vector<32x32xf32>
    %1174 = arith.mulf %1172, %1173 : vector<32x32xf32>
    %cst_251 = arith.constant dense<0.000000e+00> : vector<32xf32>
    %1175 = vector.multi_reduction <add>, %1174, %cst_251 [1] : vector<32x32xf32> to vector<32xf32>
    %1176 = vector.shape_cast %1175 : vector<32xf32> to vector<32x1xf32>
    %1177 = math.tanh %1176 : vector<32x1xf32>
    %1178 = vector.shape_cast %1177 : vector<32x1xf32> to vector<1x32x1xf32>
    %cst_252 = arith.constant dense<0xFF800000> : vector<1xf32>
    %1179 = vector.multi_reduction <maximumf>, %1178, %cst_252 [1, 2] : vector<1x32x1xf32> to vector<1xf32>
    %1180 = vector.shape_cast %1179 : vector<1xf32> to vector<1x1x1xf32>
    %1181 = vector.extract %1180[0, 0, 0] : f32 from vector<1x1x1xf32>
    %1182 = vector.broadcast %1181 : f32 to vector<1x1xf32>
    %1183 = vector.broadcast %1182 : vector<1x1xf32> to vector<32x1xf32>
    %1184 = arith.subf %1177, %1183 : vector<32x1xf32>
    %1185 = math.exp %1184 : vector<32x1xf32>
    %1186 = vector.broadcast %1185 : vector<32x1xf32> to vector<32x32xf32>
    %1187 = arith.mulf %1186, %1164 : vector<32x32xf32>
    %1188 = tpu.concatenate %1187, %1185 in 1 : vector<32x32xf32>, vector<32x1xf32> -> vector<32x33xf32>
    %cst_253 = arith.constant dense<0.000000e+00> : vector<8x33xf32>
    %1189 = tpu.matmul %1168, %1188, %cst_253 {dimension_numbers = #tpu.dot_dimension_numbers<[1], [0], [0], [1], [0, 0, 1, 1], [], []>} : vector<8x32xf32>, vector<32x33xf32>, vector<8x33xf32> -> vector<8x33xf32>
    %1190 = vector.extract_strided_slice %1189 {offsets = [0, 0], sizes = [8, 32], strides = [1, 1]} : vector<8x33xf32> to vector<8x32xf32>
    %1191 = vector.extract_strided_slice %1189 {offsets = [0, 32], sizes = [8, 1], strides = [1, 1]} : vector<8x33xf32> to vector<8x1xf32>
    %1192 = vector.broadcast %1191 : vector<8x1xf32> to vector<8x32xf32>
    %1193 = arith.divf %1190, %1192 : vector<8x32xf32>
    %c232_254 = arith.constant 232 : index
    %c0_255 = arith.constant 0 : index
    %1194 = vector.load %arg2[%c232_254, %c0_255] : memref<272x256xf32, #tpu.memory_space<vmem>>, vector<32x5xf32>
    %cst_256 = arith.constant dense<0.000000e+00> : vector<8x5xf32>
    %1195 = tpu.matmul %1193, %1194, %cst_256 {dimension_numbers = #tpu.dot_dimension_numbers<[1], [0], [0], [1], [0, 0, 1, 1], [], []>} : vector<8x32xf32>, vector<32x5xf32>, vector<8x5xf32> -> vector<8x5xf32>
    %c264 = arith.constant 264 : index
    %c0_257 = arith.constant 0 : index
    %1196 = vector.load %arg2[%c264, %c0_257] : memref<272x256xf32, #tpu.memory_space<vmem>>, vector<1x5xf32>
    %1197 = vector.broadcast %1196 : vector<1x5xf32> to vector<8x5xf32>
    %1198 = arith.addf %1195, %1197 : vector<8x5xf32>
    %c0_258 = arith.constant 0 : index
    %c0_259 = arith.constant 0 : index
    %1199 = vector.load %arg3[%c0_258, %c0_259] : memref<8x5xf32, #tpu.memory_space<vmem>>, vector<8x5xf32>
    tpu.vector_store %arg3[%c0_258, %c0_259], %1198 {strides = array<i32>} : memref<8x5xf32, #tpu.memory_space<vmem>>, vector<8x5xf32>,
    return
  }
  func.func @transform_0(%arg0: i32) -> (i32, i32) {
    %c0_i32 = arith.constant 0 : i32
    %c0_i32_0 = arith.constant 0 : i32
    %c0_i32_1 = arith.constant 0 : i32
    return %c0_i32, %c0_i32_0 : i32, i32
  }
  func.func @transform_1(%arg0: i32) -> (i32, i32) {
    %c0_i32 = arith.constant 0 : i32
    %c0_i32_0 = arith.constant 0 : i32
    %c0_i32_1 = arith.constant 0 : i32
    return %c0_i32, %c0_i32_0 : i32, i32
  }
  func.func @transform_2(%arg0: i32) -> (i32, i32) {
    %c0_i32 = arith.constant 0 : i32
    %c0_i32_0 = arith.constant 0 : i32
    %c0_i32_1 = arith.constant 0 : i32
    return %c0_i32, %c0_i32_0 : i32, i32
  }
}

</mosaic_0001>

<llo_original>
// kernel: hier_att_net.1
$region0: #{hier_att_net.1}
  #allocation0 [shape = 'u32[]', space=smem, size = 0x4, offset = 0x4, fixed_abs, tag = 'smem constant byte address 0x4 - core index']
  #allocation1 [shape = 'u32[72,128]{1,0:T(1,128)}', space=vmem, size = 0x9000, scoped, tag = 'internal scratch']
  %s0 = inlined_call_operand.vmem [shape: f32[256,256], index: 0, kind: input, shape index: {}]
  %s1 = inlined_call_operand.vmem [shape: f32[272,256], index: 1, kind: input, shape index: {}]
  %s2 = inlined_call_operand.vmem [shape: f32[8,5], index: 2, kind: output, shape index: {}]
  %s3 = sld [smem:[#allocation0]]
  $region18: #{hier_att_net.1} parent=0
    _
  %s5 = ssub.s32 1, %s3
  %s6 = scalar_select 0, %s5, %s3
  // Predicated region
  $region2: #{hier_att_net.1} parent=0 // pred_check
    _
  $region3: #{hier_att_net.1} parent=0 // pred_check_branch
    %8 = sbr.rel (0) target = $region5
  $region4: #{hier_att_net.1} parent=0 // pred_region
    _
  $region5: #{hier_att_net.1} parent=0 // pred_fallthru
    _
  // Predicated region
  $region6: #{hier_att_net.1} parent=0 // pred_check
    _
  $region7: #{hier_att_net.1} parent=0 // pred_check_branch
    %10 = sbr.rel (0) target = $region9
  $region8: #{hier_att_net.1} parent=0 // pred_region
    _
  $region9: #{hier_att_net.1} parent=0 // pred_fallthru
    _
  %v11 = vld [vmem:[%s1] sm:$0xff]
  %v12 = vld [vmem:[%s1 + $0x10] sm:$0xff]
  %v13 = vld [vmem:[%s1 + $0x20] sm:$0xff]
  %v14 = vld [vmem:[%s1 + $0x30] sm:$0xff]
  %v15 = vld [vmem:[%s1 + $0x40] ss:$0 sm:$0xff]
  %v16 = vld [vmem:[%s1 + $0x50] sm:$0xff]
  %v17 = vld [vmem:[%s1 + $0x60] sm:$0xff]
  %v18 = vld [vmem:[%s1 + $0x70] sm:$0xff]
  %v19 = vld [vmem:[%s1 + $0x80] sm:$0xff]
  %v20 = vld [vmem:[%s1 + $0x90] ss:$0 sm:$0xff]
  %v21 = vld [vmem:[%s1 + $0xa0] ss:$0 sm:$0xff]
  %v22 = vld [vmem:[%s1 + $0xb0] sm:$0xff]
  %v23 = vld [vmem:[%s0] sm:$0xff]
  %v24 = vld [vmem:[%s0 + $0x78] sm:$0xff]
  %v25 = vadd.f32 %v23, %v24
  %vm26 = vcmask 261120
  %v28 = vsel %vm26, 0.0, 0
  %30 = vmatpush.msra.mxu0 0.0
  %31 = vmatpush.msra.mxu0 0.0
  %32 = vmatpush.msra.mxu0 0.0
  %33 = vmatpush.msra.mxu0 0.0
  %34 = vmatpush.msra.mxu0 0.0
  %35 = vmatpush.msra.mxu0 0.0
  %36 = vmatpush.msra.mxu0 0.0
  %37 = vmatpush.msra.mxu0 0.0
  %38 = vmatpush.msra.mxu0 0.0
  %39 = vmatpush.msra.mxu0 0.0
  %40 = vmatpush.msra.mxu0 0.0
  %41 = vmatpush.msra.mxu0 0.0
  %42 = vmatpush.msra.mxu0 %v14
  %43 = vmatpush.msra.mxu0 %v13
  %44 = vmatpush.msra.mxu0 %v12
  %45 = vmatpush.msra.mxu0 %v11
  %46 = vmatmul.f32.gmra.mxu0 %v28
  %v47 = vpop.f32.mrf.mxu0
  %v48 = vadd.f32 %v15, %v47
  %49 = vdwg.mxu0
  %v50 = vadd.f32 %v25, %v48
  %v51 = vxor.u32 %v50, 2147483648
  %v52 = vmul.f32 %v51, 1.442695
  %v53 = vpow.pop %v52
  %v54 = vadd.f32 %v53, 1.0
  %v55 = vrcp.pop %v54
  %v56 = vmul.f32 %v54, %v55
  %v57 = vsub.f32 1.0, %v56
  %v58 = vmul.f32 %v55, %v57
  %v59 = vadd.f32 %v55, %v58
  %vm60 = vweird.f32 %v54
  %vm61 = vweird.f32 %v55
  %vm62 = vmor %vm60, %vm61
  %v63 = vsel %vm62, %v55, %v59
  %v64 = vand.u32 2147483647, %v54
  %vm65 = vcmp.eq.f32.partialorder %v64, 8.507059e+37
  %v66 = vand.u32 %v54, 2147483648
  %v67 = vor.u32 1.1754944e-38, %v66
  %v68 = vsel %vm65, %v67, %v63
  %v69 = vmul.f32 1.0, %v68
  %71 = vrot.lane.b32.xlu0 %v48, 64
  %v72 = vpop.permute.xlu0 %71
  %v74 = vmul.f32 %v69, %v72
  %76 = vrot.lane.b32.xlu0 %v74, 64
  %v77 = vpop.permute.xlu0 %76
  %v79 = vadd.f32 %v25, %v77
  %v80 = vtanh.pop %v79
  %v81 = vsub.f32 1.0, %v69
  %83 = vrot.lane.b32.xlu0 %v80, 96
  %v84 = vpop.permute.xlu0 %83
  %v86 = vmul.f32 %v81, %v84
  %v87 = vmul.f32 %v69, 0.0
  %v88 = vadd.f32 %v86, %v87
  %v89 = vld [vmem:[%s0 + $0x10] sm:$0xff]
  %v90 = vld [vmem:[%s0 + $0x68] sm:$0xff]
  %v91 = vadd.f32 %v89, %v90
  %93 = vrot.lane.b32.xlu0 %v88, 96
  %v94 = vpop.permute.xlu0 %93
  %v95 = vsel %vm26, %v94, 0
  %97 = vmatpush.msra.mxu0 0.0
  %98 = vmatpush.msra.mxu0 0.0
  %99 = vmatpush.msra.mxu0 0.0
  %100 = vmatpush.msra.mxu0 0.0
  %101 = vmatpush.msra.mxu0 0.0
  %102 = vmatpush.msra.mxu0 0.0
  %103 = vmatpush.msra.mxu0 0.0
  %104 = vmatpush.msra.mxu0 0.0
  %105 = vmatpush.msra.mxu0 0.0
  %106 = vmatpush.msra.mxu0 0.0
  %107 = vmatpush.msra.mxu0 0.0
  %108 = vmatpush.msra.mxu0 0.0
  %109 = vmatpush.msra.mxu0 %v14
  %110 = vmatpush.msra.mxu0 %v13
  %111 = vmatpush.msra.mxu0 %v12
  %112 = vmatpush.msra.mxu0 %v11
  %113 = vmatmul.f32.gmra.mxu0 %v95
  %v114 = vpop.f32.mrf.mxu0
  %v115 = vadd.f32 %v15, %v114
  %116 = vdwg.mxu0
  %v117 = vadd.f32 %v91, %v115
  %v118 = vxor.u32 %v117, 2147483648
  %v119 = vmul.f32 %v118, 1.442695
  %v120 = vpow.pop %v119
  %v121 = vadd.f32 %v120, 1.0
  %v122 = vrcp.pop %v121
  %v123 = vmul.f32 %v121, %v122
  %v124 = vsub.f32 1.0, %v123
  %v125 = vmul.f32 %v122, %v124
  %v126 = vadd.f32 %v122, %v125
  %vm127 = vweird.f32 %v121
  %vm128 = vweird.f32 %v122
  %vm129 = vmor %vm127, %vm128
  %v130 = vsel %vm129, %v122, %v126
  %v131 = vand.u32 2147483647, %v121
  %vm132 = vcmp.eq.f32.partialorder %v131, 8.507059e+37
  %v133 = vand.u32 %v121, 2147483648
  %v134 = vor.u32 1.1754944e-38, %v133
  %v135 = vsel %vm132, %v134, %v130
  %v136 = vmul.f32 1.0, %v135
  %138 = vrot.lane.b32.xlu0 %v115, 64
  %v139 = vpop.permute.xlu0 %138
  %v141 = vmul.f32 %v136, %v139
  %143 = vrot.lane.b32.xlu0 %v141, 64
  %v144 = vpop.permute.xlu0 %143
  %v146 = vadd.f32 %v91, %v144
  %v147 = vtanh.pop %v146
  %v148 = vsub.f32 1.0, %v136
  %150 = vrot.lane.b32.xlu0 %v147, 96
  %v151 = vpop.permute.xlu0 %150
  %v153 = vmul.f32 %v148, %v151
  %v154 = vmul.f32 %v136, %v88
  %v155 = vadd.f32 %v153, %v154
  %v156 = vld [vmem:[%s0 + $0x20] sm:$0xff]
  %v157 = vld [vmem:[%s0 + $0x58] sm:$0xff]
  %v158 = vadd.f32 %v156, %v157
  %160 = vrot.lane.b32.xlu0 %v155, 96
  %v161 = vpop.permute.xlu0 %160
  %v162 = vsel %vm26, %v161, 0
  %164 = vmatpush.msra.mxu0 0.0
  %165 = vmatpush.msra.mxu0 0.0
  %166 = vmatpush.msra.mxu0 0.0
  %167 = vmatpush.msra.mxu0 0.0
  %168 = vmatpush.msra.mxu0 0.0
  %169 = vmatpush.msra.mxu0 0.0
  %170 = vmatpush.msra.mxu0 0.0
  %171 = vmatpush.msra.mxu0 0.0
  %172 = vmatpush.msra.mxu0 0.0
  %173 = vmatpush.msra.mxu0 0.0
  %174 = vmatpush.msra.mxu0 0.0
  %175 = vmatpush.msra.mxu0 0.0
  %176 = vmatpush.msra.mxu0 %v14
  %177 = vmatpush.msra.mxu0 %v13
  %178 = vmatpush.msra.mxu0 %v12
  %179 = vmatpush.msra.mxu0 %v11
  %180 = vmatmul.f32.gmra.mxu0 %v162
  %v181 = vpop.f32.mrf.mxu0
  %v182 = vadd.f32 %v15, %v181
  %183 = vdwg.mxu0
  %v184 = vadd.f32 %v158, %v182
  %v185 = vxor.u32 %v184, 2147483648
  %v186 = vmul.f32 %v185, 1.442695
  %v187 = vpow.pop %v186
  %v188 = vadd.f32 %v187, 1.0
  %v189 = vrcp.pop %v188
  %v190 = vmul.f32 %v188, %v189
  %v191 = vsub.f32 1.0, %v190
  %v192 = vmul.f32 %v189, %v191
  %v193 = vadd.f32 %v189, %v192
  %vm194 = vweird.f32 %v188
  %vm195 = vweird.f32 %v189
  %vm196 = vmor %vm194, %vm195
  %v197 = vsel %vm196, %v189, %v193
  %v198 = vand.u32 2147483647, %v188
  %vm199 = vcmp.eq.f32.partialorder %v198, 8.507059e+37
  %v200 = vand.u32 %v188, 2147483648
  %v201 = vor.u32 1.1754944e-38, %v200
  %v202 = vsel %vm199, %v201, %v197
  %v203 = vmul.f32 1.0, %v202
  %205 = vrot.lane.b32.xlu0 %v182, 64
  %v206 = vpop.permute.xlu0 %205
  %v208 = vmul.f32 %v203, %v206
  %210 = vrot.lane.b32.xlu0 %v208, 64
  %v211 = vpop.permute.xlu0 %210
  %v213 = vadd.f32 %v158, %v211
  %v214 = vtanh.pop %v213
  %v215 = vsub.f32 1.0, %v203
  %217 = vrot.lane.b32.xlu0 %v214, 96
  %v218 = vpop.permute.xlu0 %217
  %v220 = vmul.f32 %v215, %v218
  %v221 = vmul.f32 %v203, %v155
  %v222 = vadd.f32 %v220, %v221
  %v223 = vld [vmem:[%s0 + $0x30] sm:$0xff]
  %v224 = vld [vmem:[%s0 + $0x48] sm:$0xff]
  %v225 = vadd.f32 %v223, %v224
  %227 = vrot.lane.b32.xlu0 %v222, 96
  %v228 = vpop.permute.xlu0 %227
  %v229 = vsel %vm26, %v228, 0
  %231 = vmatpush.msra.mxu0 0.0
  %232 = vmatpush.msra.mxu0 0.0
  %233 = vmatpush.msra.mxu0 0.0
  %234 = vmatpush.msra.mxu0 0.0
  %235 = vmatpush.msra.mxu0 0.0
  %236 = vmatpush.msra.mxu0 0.0
  %237 = vmatpush.msra.mxu0 0.0
  %238 = vmatpush.msra.mxu0 0.0
  %239 = vmatpush.msra.mxu0 0.0
  %240 = vmatpush.msra.mxu0 0.0
  %241 = vmatpush.msra.mxu0 0.0
  %242 = vmatpush.msra.mxu0 0.0
  %243 = vmatpush.msra.mxu0 %v14
  %244 = vmatpush.msra.mxu0 %v13
  %245 = vmatpush.msra.mxu0 %v12
  %246 = vmatpush.msra.mxu0 %v11
  %247 = vmatmul.f32.gmra.mxu0 %v229
  %v248 = vpop.f32.mrf.mxu0
  %v249 = vadd.f32 %v15, %v248
  %250 = vdwg.mxu0
  %v251 = vadd.f32 %v225, %v249
  %v252 = vxor.u32 %v251, 2147483648
  %v253 = vmul.f32 %v252, 1.442695
  %v254 = vpow.pop %v253
  %v255 = vadd.f32 %v254, 1.0
  %v256 = vrcp.pop %v255
  %v257 = vmul.f32 %v255, %v256
  %v258 = vsub.f32 1.0, %v257
  %v259 = vmul.f32 %v256, %v258
  %v260 = vadd.f32 %v256, %v259
  %vm261 = vweird.f32 %v255
  %vm262 = vweird.f32 %v256
  %vm263 = vmor %vm261, %vm262
  %v264 = vsel %vm263, %v256, %v260
  %v265 = vand.u32 2147483647, %v255
  %vm266 = vcmp.eq.f32.partialorder %v265, 8.507059e+37
  %v267 = vand.u32 %v255, 2147483648
  %v268 = vor.u32 1.1754944e-38, %v267
  %v269 = vsel %vm266, %v268, %v264
  %v270 = vmul.f32 1.0, %v269
  %272 = vrot.lane.b32.xlu0 %v249, 64
  %v273 = vpop.permute.xlu0 %272
  %v275 = vmul.f32 %v270, %v273
  %277 = vrot.lane.b32.xlu0 %v275, 64
  %v278 = vpop.permute.xlu0 %277
  %v280 = vadd.f32 %v225, %v278
  %v281 = vtanh.pop %v280
  %v282 = vsub.f32 1.0, %v270
  %284 = vrot.lane.b32.xlu0 %v281, 96
  %v285 = vpop.permute.xlu0 %284
  %v287 = vmul.f32 %v282, %v285
  %v288 = vmul.f32 %v270, %v222
  %v289 = vadd.f32 %v287, %v288
  %v290 = vld [vmem:[%s0 + $0x40] sm:$0xff]
  %v291 = vld [vmem:[%s0 + $0x38] sm:$0xff]
  %v292 = vadd.f32 %v290, %v291
  %294 = vrot.lane.b32.xlu0 %v289, 96
  %v295 = vpop.permute.xlu0 %294
  %v296 = vsel %vm26, %v295, 0
  %298 = vmatpush.msra.mxu0 0.0
  %299 = vmatpush.msra.mxu0 0.0
  %300 = vmatpush.msra.mxu0 0.0
  %301 = vmatpush.msra.mxu0 0.0
  %302 = vmatpush.msra.mxu0 0.0
  %303 = vmatpush.msra.mxu0 0.0
  %304 = vmatpush.msra.mxu0 0.0
  %305 = vmatpush.msra.mxu0 0.0
  %306 = vmatpush.msra.mxu0 0.0
  %307 = vmatpush.msra.mxu0 0.0
  %308 = vmatpush.msra.mxu0 0.0
  %309 = vmatpush.msra.mxu0 0.0
  %310 = vmatpush.msra.mxu0 %v14
  %311 = vmatpush.msra.mxu0 %v13
  %312 = vmatpush.msra.mxu0 %v12
  %313 = vmatpush.msra.mxu0 %v11
  %314 = vmatmul.f32.gmra.mxu0 %v296
  %v315 = vpop.f32.mrf.mxu0
  %v316 = vadd.f32 %v15, %v315
  %317 = vdwg.mxu0
  %v318 = vadd.f32 %v292, %v316
  %v319 = vxor.u32 %v318, 2147483648
  %v320 = vmul.f32 %v319, 1.442695
  %v321 = vpow.pop %v320
  %v322 = vadd.f32 %v321, 1.0
  %v323 = vrcp.pop %v322
  %v324 = vmul.f32 %v322, %v323
  %v325 = vsub.f32 1.0, %v324
  %v326 = vmul.f32 %v323, %v325
  %v327 = vadd.f32 %v323, %v326
  %vm328 = vweird.f32 %v322
  %vm329 = vweird.f32 %v323
  %vm330 = vmor %vm328, %vm329
  %v331 = vsel %vm330, %v323, %v327
  %v332 = vand.u32 2147483647, %v322
  %vm333 = vcmp.eq.f32.partialorder %v332, 8.507059e+37
  %v334 = vand.u32 %v322, 2147483648
  %v335 = vor.u32 1.1754944e-38, %v334
  %v336 = vsel %vm333, %v335, %v331
  %v337 = vmul.f32 1.0, %v336
  %339 = vrot.lane.b32.xlu0 %v316, 64
  %v340 = vpop.permute.xlu0 %339
  %v342 = vmul.f32 %v337, %v340
  %344 = vrot.lane.b32.xlu0 %v342, 64
  %v345 = vpop.permute.xlu0 %344
  %v347 = vadd.f32 %v292, %v345
  %v348 = vtanh.pop %v347
  %v349 = vsub.f32 1.0, %v337
  %351 = vrot.lane.b32.xlu0 %v348, 96
  %v352 = vpop.permute.xlu0 %351
  %v354 = vmul.f32 %v349, %v352
  %v355 = vmul.f32 %v337, %v289
  %v356 = vadd.f32 %v354, %v355
  %v357 = vld [vmem:[%s0 + $0x50] sm:$0xff]
  %v358 = vld [vmem:[%s0 + $0x28] sm:$0xff]
  %v359 = vadd.f32 %v357, %v358
  %361 = vrot.lane.b32.xlu0 %v356, 96
  %v362 = vpop.permute.xlu0 %361
  %v363 = vsel %vm26, %v362, 0
  %365 = vmatpush.msra.mxu0 0.0
  %366 = vmatpush.msra.mxu0 0.0
  %367 = vmatpush.msra.mxu0 0.0
  %368 = vmatpush.msra.mxu0 0.0
  %369 = vmatpush.msra.mxu0 0.0
  %370 = vmatpush.msra.mxu0 0.0
  %371 = vmatpush.msra.mxu0 0.0
  %372 = vmatpush.msra.mxu0 0.0
  %373 = vmatpush.msra.mxu0 0.0
  %374 = vmatpush.msra.mxu0 0.0
  %375 = vmatpush.msra.mxu0 0.0
  %376 = vmatpush.msra.mxu0 0.0
  %377 = vmatpush.msra.mxu0 %v14
  %378 = vmatpush.msra.mxu0 %v13
  %379 = vmatpush.msra.mxu0 %v12
  %380 = vmatpush.msra.mxu0 %v11
  %381 = vmatmul.f32.gmra.mxu0 %v363
  %v382 = vpop.f32.mrf.mxu0
  %v383 = vadd.f32 %v15, %v382
  %384 = vdwg.mxu0
  %v385 = vadd.f32 %v359, %v383
  %v386 = vxor.u32 %v385, 2147483648
  %v387 = vmul.f32 %v386, 1.442695
  %v388 = vpow.pop %v387
  %v389 = vadd.f32 %v388, 1.0
  %v390 = vrcp.pop %v389
  %v391 = vmul.f32 %v389, %v390
  %v392 = vsub.f32 1.0, %v391
  %v393 = vmul.f32 %v390, %v392
  %v394 = vadd.f32 %v390, %v393
  %vm395 = vweird.f32 %v389
  %vm396 = vweird.f32 %v390
  %vm397 = vmor %vm395, %vm396
  %v398 = vsel %vm397, %v390, %v394
  %v399 = vand.u32 2147483647, %v389
  %vm400 = vcmp.eq.f32.partialorder %v399, 8.507059e+37
  %v401 = vand.u32 %v389, 2147483648
  %v402 = vor.u32 1.1754944e-38, %v401
  %v403 = vsel %vm400, %v402, %v398
  %v404 = vmul.f32 1.0, %v403
  %406 = vrot.lane.b32.xlu0 %v383, 64
  %v407 = vpop.permute.xlu0 %406
  %v409 = vmul.f32 %v404, %v407
  %411 = vrot.lane.b32.xlu0 %v409, 64
  %v412 = vpop.permute.xlu0 %411
  %v414 = vadd.f32 %v359, %v412
  %v415 = vtanh.pop %v414
  %v416 = vsub.f32 1.0, %v404
  %418 = vrot.lane.b32.xlu0 %v415, 96
  %v419 = vpop.permute.xlu0 %418
  %v421 = vmul.f32 %v416, %v419
  %v422 = vmul.f32 %v404, %v356
  %v423 = vadd.f32 %v421, %v422
  %v424 = vld [vmem:[%s0 + $0x60] sm:$0xff]
  %v425 = vld [vmem:[%s0 + $0x18] sm:$0xff]
  %v426 = vadd.f32 %v424, %v425
  %428 = vrot.lane.b32.xlu0 %v423, 96
  %v429 = vpop.permute.xlu0 %428
  %v430 = vsel %vm26, %v429, 0
  %432 = vmatpush.msra.mxu0 0.0
  %433 = vmatpush.msra.mxu0 0.0
  %434 = vmatpush.msra.mxu0 0.0
  %435 = vmatpush.msra.mxu0 0.0
  %436 = vmatpush.msra.mxu0 0.0
  %437 = vmatpush.msra.mxu0 0.0
  %438 = vmatpush.msra.mxu0 0.0
  %439 = vmatpush.msra.mxu0 0.0
  %440 = vmatpush.msra.mxu0 0.0
  %441 = vmatpush.msra.mxu0 0.0
  %442 = vmatpush.msra.mxu0 0.0
  %443 = vmatpush.msra.mxu0 0.0
  %444 = vmatpush.msra.mxu0 %v14
  %445 = vmatpush.msra.mxu0 %v13
  %446 = vmatpush.msra.mxu0 %v12
  %447 = vmatpush.msra.mxu0 %v11
  %448 = vmatmul.f32.gmra.mxu0 %v430
  %v449 = vpop.f32.mrf.mxu0
  %v450 = vadd.f32 %v15, %v449
  %451 = vdwg.mxu0
  %v452 = vadd.f32 %v426, %v450
  %v453 = vxor.u32 %v452, 2147483648
  %v454 = vmul.f32 %v453, 1.442695
  %v455 = vpow.pop %v454
  %v456 = vadd.f32 %v455, 1.0
  %v457 = vrcp.pop %v456
  %v458 = vmul.f32 %v456, %v457
  %v459 = vsub.f32 1.0, %v458
  %v460 = vmul.f32 %v457, %v459
  %v461 = vadd.f32 %v457, %v460
  %vm462 = vweird.f32 %v456
  %vm463 = vweird.f32 %v457
  %vm464 = vmor %vm462, %vm463
  %v465 = vsel %vm464, %v457, %v461
  %v466 = vand.u32 2147483647, %v456
  %vm467 = vcmp.eq.f32.partialorder %v466, 8.507059e+37
  %v468 = vand.u32 %v456, 2147483648
  %v469 = vor.u32 1.1754944e-38, %v468
  %v470 = vsel %vm467, %v469, %v465
  %v471 = vmul.f32 1.0, %v470
  %473 = vrot.lane.b32.xlu0 %v450, 64
  %v474 = vpop.permute.xlu0 %473
  %v476 = vmul.f32 %v471, %v474
  %478 = vrot.lane.b32.xlu0 %v476, 64
  %v479 = vpop.permute.xlu0 %478
  %v481 = vadd.f32 %v426, %v479
  %v482 = vtanh.pop %v481
  %v483 = vsub.f32 1.0, %v471
  %485 = vrot.lane.b32.xlu0 %v482, 96
  %v486 = vpop.permute.xlu0 %485
  %v488 = vmul.f32 %v483, %v486
  %v489 = vmul.f32 %v471, %v423
  %v490 = vadd.f32 %v488, %v489
  %v491 = vld [vmem:[%s0 + $0x70] sm:$0xff]
  %v492 = vld [vmem:[%s0 + $0x8] sm:$0xff]
  %v493 = vadd.f32 %v491, %v492
  %495 = vrot.lane.b32.xlu0 %v490, 96
  %v496 = vpop.permute.xlu0 %495
  %v497 = vsel %vm26, %v496, 0
  %499 = vmatpush.msra.mxu0 0.0
  %500 = vmatpush.msra.mxu0 0.0
  %501 = vmatpush.msra.mxu0 0.0
  %502 = vmatpush.msra.mxu0 0.0
  %503 = vmatpush.msra.mxu0 0.0
  %504 = vmatpush.msra.mxu0 0.0
  %505 = vmatpush.msra.mxu0 0.0
  %506 = vmatpush.msra.mxu0 0.0
  %507 = vmatpush.msra.mxu0 0.0
  %508 = vmatpush.msra.mxu0 0.0
  %509 = vmatpush.msra.mxu0 0.0
  %510 = vmatpush.msra.mxu0 0.0
  %511 = vmatpush.msra.mxu0 %v14
  %512 = vmatpush.msra.mxu0 %v13
  %513 = vmatpush.msra.mxu0 %v12
  %514 = vmatpush.msra.mxu0 %v11
  %515 = vmatmul.f32.gmra.mxu0 %v497
  %v516 = vpop.f32.mrf.mxu0
  %v517 = vadd.f32 %v15, %v516
  %518 = vdwg.mxu0
  %v519 = vadd.f32 %v493, %v517
  %v520 = vxor.u32 %v519, 2147483648
  %v521 = vmul.f32 %v520, 1.442695
  %v522 = vpow.pop %v521
  %v523 = vadd.f32 %v522, 1.0
  %v524 = vrcp.pop %v523
  %v525 = vmul.f32 %v523, %v524
  %v526 = vsub.f32 1.0, %v525
  %v527 = vmul.f32 %v524, %v526
  %v528 = vadd.f32 %v524, %v527
  %vm529 = vweird.f32 %v523
  %vm530 = vweird.f32 %v524
  %vm531 = vmor %vm529, %vm530
  %v532 = vsel %vm531, %v524, %v528
  %v533 = vand.u32 2147483647, %v523
  %vm534 = vcmp.eq.f32.partialorder %v533, 8.507059e+37
  %v535 = vand.u32 %v523, 2147483648
  %v536 = vor.u32 1.1754944e-38, %v535
  %v537 = vsel %vm534, %v536, %v532
  %v538 = vmul.f32 1.0, %v537
  %540 = vrot.lane.b32.xlu0 %v517, 64
  %v541 = vpop.permute.xlu0 %540
  %v543 = vmul.f32 %v538, %v541
  %545 = vrot.lane.b32.xlu0 %v543, 64
  %v546 = vpop.permute.xlu0 %545
  %v548 = vadd.f32 %v493, %v546
  %v549 = vtanh.pop %v548
  %v550 = vsub.f32 1.0, %v538
  %552 = vrot.lane.b32.xlu0 %v549, 96
  %v553 = vpop.permute.xlu0 %552
  %v555 = vmul.f32 %v550, %v553
  %v556 = vmul.f32 %v538, %v490
  %v557 = vadd.f32 %v555, %v556
  %560 = vrot.lane.b32.xlu0 %v557, 96
  %v561 = vpop.permute.xlu0 %560
  %vm563 = vcmask 130048
  %v564 = vsel %vm563, %v94, %v561
  %v567 = vsel %vm563, %v161, %v496
  %v570 = vsel %vm563, %v228, %v429
  %v573 = vsel %vm563, %v295, %v362
  %v574 = vsel %vm563, %v362, %v295
  %v575 = vsel %vm563, %v429, %v228
  %v576 = vsel %vm563, %v496, %v161
  %v577 = vsel %vm563, %v561, %v94
  %v579 = vsel %vm26, %v564, 0
  %v582 = vsel %vm26, %v567, 0
  %v585 = vsel %vm26, %v570, 0
  %v588 = vsel %vm26, %v573, 0
  %v591 = vsel %vm26, %v574, 0
  %v594 = vsel %vm26, %v575, 0
  %v597 = vsel %vm26, %v576, 0
  %v600 = vsel %vm26, %v577, 0
  %602 = vmatpush.msra.mxu0 0.0
  %603 = vmatpush.msra.mxu0 0.0
  %604 = vmatpush.msra.mxu0 0.0
  %605 = vmatpush.msra.mxu0 0.0
  %606 = vmatpush.msra.mxu0 0.0
  %607 = vmatpush.msra.mxu0 0.0
  %608 = vmatpush.msra.mxu0 0.0
  %609 = vmatpush.msra.mxu0 0.0
  %610 = vmatpush.msra.mxu0 0.0
  %611 = vmatpush.msra.mxu0 0.0
  %612 = vmatpush.msra.mxu0 0.0
  %613 = vmatpush.msra.mxu0 0.0
  %614 = vmatpush.msra.mxu0 %v19
  %615 = vmatpush.msra.mxu0 %v18
  %616 = vmatpush.msra.mxu0 %v17
  %617 = vmatpush.msra.mxu0 %v16
  %618 = vmatmul.f32.gmra.mxu0 %v579
  %v619 = vpop.f32.mrf.mxu0
  %v620 = vadd.f32 %v20, %v619
  %621 = vmatmul.f32.gmra.mxu0 %v582
  %v622 = vpop.f32.mrf.mxu0
  %v623 = vadd.f32 %v20, %v622
  %624 = vmatmul.f32.gmra.mxu0 %v585
  %v625 = vpop.f32.mrf.mxu0
  %v626 = vadd.f32 %v20, %v625
  %627 = vmatmul.f32.gmra.mxu0 %v588
  %v628 = vpop.f32.mrf.mxu0
  %v629 = vadd.f32 %v20, %v628
  %630 = vmatmul.f32.gmra.mxu0 %v591
  %v631 = vpop.f32.mrf.mxu0
  %v632 = vadd.f32 %v20, %v631
  %633 = vmatmul.f32.gmra.mxu0 %v594
  %v634 = vpop.f32.mrf.mxu0
  %v635 = vadd.f32 %v20, %v634
  %636 = vmatmul.f32.gmra.mxu0 %v597
  %v637 = vpop.f32.mrf.mxu0
  %v638 = vadd.f32 %v20, %v637
  %639 = vmatmul.f32.gmra.mxu0 %v600
  %v640 = vpop.f32.mrf.mxu0
  %v641 = vadd.f32 %v20, %v640
  %642 = vdwg.mxu0
  %v643 = vtanh.pop %v620
  %v644 = vtanh.pop %v623
  %v645 = vtanh.pop %v626
  %v646 = vtanh.pop %v629
  %v647 = vtanh.pop %v632
  %v648 = vtanh.pop %v635
  %v649 = vtanh.pop %v638
  %v650 = vtanh.pop %v641
  %v651 = vmul.f32 %v643, %v21
  %v652 = vmul.f32 %v644, %v21
  %v653 = vmul.f32 %v645, %v21
  %v654 = vmul.f32 %v646, %v21
  %v655 = vmul.f32 %v647, %v21
  %v656 = vmul.f32 %v648, %v21
  %v657 = vmul.f32 %v649, %v21
  %v658 = vmul.f32 %v650, %v21
  %v659 = vsel %vm26, %v651, 0.0
  %660 = vadd.xlane.f32.xlu0 %v659
  %v661 = vpop.xlane.xlu0 %660
  %v662 = vsel %vm26, %v652, 0.0
  %663 = vadd.xlane.f32.xlu0 %v662
  %v664 = vpop.xlane.xlu0 %663
  %v665 = vsel %vm26, %v653, 0.0
  %666 = vadd.xlane.f32.xlu0 %v665
  %v667 = vpop.xlane.xlu0 %666
  %v668 = vsel %vm26, %v654, 0.0
  %669 = vadd.xlane.f32.xlu0 %v668
  %v670 = vpop.xlane.xlu0 %669
  %v671 = vsel %vm26, %v655, 0.0
  %672 = vadd.xlane.f32.xlu0 %v671
  %v673 = vpop.xlane.xlu0 %672
  %v674 = vsel %vm26, %v656, 0.0
  %675 = vadd.xlane.f32.xlu0 %v674
  %v676 = vpop.xlane.xlu0 %675
  %v677 = vsel %vm26, %v657, 0.0
  %678 = vadd.xlane.f32.xlu0 %v677
  %v679 = vpop.xlane.xlu0 %678
  %v680 = vsel %vm26, %v658, 0.0
  %681 = vadd.xlane.f32.xlu0 %v680
  %v682 = vpop.xlane.xlu0 %681
  %v683 = vtanh.pop %v661
  %v684 = vtanh.pop %v664
  %v685 = vtanh.pop %v667
  %v686 = vtanh.pop %v670
  %v687 = vtanh.pop %v673
  %v688 = vtanh.pop %v676
  %v689 = vtanh.pop %v679
  %v690 = vtanh.pop %v682
  %v691 = vmax.f32 %v683, %v687
  %v692 = vmax.f32 %v684, %v688
  %v693 = vmax.f32 %v685, %v689
  %v694 = vmax.f32 %v686, %v690
  %v695 = vmax.f32 %v691, %v692
  %v696 = vmax.f32 %v693, %v694
  %v697 = vmax.f32 %v695, %v696
  %v698 = vrot.slane %v697, 4
  %v699 = vmax.f32 %v697, %v698
  %v700 = vrot.slane %v699, 2
  %v701 = vmax.f32 %v699, %v700
  %v702 = vrot.slane %v701, 1
  %v703 = vmax.f32 %v701, %v702
  %s704 = vtos %v703
  %v705 = vstv %s704
  %v706 = vsub.f32 %v683, %v705
  %v707 = vsub.f32 %v684, %v705
  %v708 = vsub.f32 %v685, %v705
  %v709 = vsub.f32 %v686, %v705
  %v710 = vsub.f32 %v687, %v705
  %v711 = vsub.f32 %v688, %v705
  %v712 = vsub.f32 %v689, %v705
  %v713 = vsub.f32 %v690, %v705
  %v714 = vmul.f32 %v706, 1.442695
  %v715 = vpow.pop %v714
  %v716 = vmul.f32 %v707, 1.442695
  %v717 = vpow.pop %v716
  %v718 = vmul.f32 %v708, 1.442695
  %v719 = vpow.pop %v718
  %v720 = vmul.f32 %v709, 1.442695
  %v721 = vpow.pop %v720
  %v722 = vmul.f32 %v710, 1.442695
  %v723 = vpow.pop %v722
  %v724 = vmul.f32 %v711, 1.442695
  %v725 = vpow.pop %v724
  %v726 = vmul.f32 %v712, 1.442695
  %v727 = vpow.pop %v726
  %v728 = vmul.f32 %v713, 1.442695
  %v729 = vpow.pop %v728
  %v730 = vmul.f32 %v715, %v564
  %v731 = vmul.f32 %v717, %v567
  %v732 = vmul.f32 %v719, %v570
  %v733 = vmul.f32 %v721, %v573
  %v734 = vmul.f32 %v723, %v574
  %v735 = vmul.f32 %v725, %v575
  %v736 = vmul.f32 %v727, %v576
  %v737 = vmul.f32 %v729, %v577
  %v738 = vsel %vm26, %v730, %v715
  %v739 = vsel %vm26, %v731, %v717
  %v740 = vsel %vm26, %v732, %v719
  %v741 = vsel %vm26, %v733, %v721
  %v742 = vsel %vm26, %v734, %v723
  %v743 = vsel %vm26, %v735, %v725
  %v744 = vsel %vm26, %v736, %v727
  %v745 = vsel %vm26, %v737, %v729
  %vm746 = vcmask 523264
  %v748 = vsel %vm746, %v22, 0
  %750 = vmatpush.msra.mxu0 0.0
  %751 = vmatpush.msra.mxu0 0.0
  %752 = vmatpush.msra.mxu0 0.0
  %753 = vmatpush.msra.mxu0 0.0
  %754 = vmatpush.msra.mxu0 0.0
  %755 = vmatpush.msra.mxu0 0.0
  %756 = vmatpush.msra.mxu0 0.0
  %757 = vmatpush.msra.mxu0 0.0
  %758 = vmatpush.msra.mxu0 %v745
  %759 = vmatpush.msra.mxu0 %v744
  %760 = vmatpush.msra.mxu0 %v743
  %761 = vmatpush.msra.mxu0 %v742
  %762 = vmatpush.msra.mxu0 %v741
  %763 = vmatpush.msra.mxu0 %v740
  %764 = vmatpush.msra.mxu0 %v739
  %765 = vmatpush.msra.mxu0 %v738
  %766 = vmatmul.f32.gmra.mxu0 %v748
  %v767 = vpop.f32.mrf.mxu0
  %v768 = vadd.f32 0.0, %v767
  %769 = vdwg.mxu0
  %771 = vset.pattern.permute.xlu0 32
  %772 = vperm.xlu0 %771, %v768
  %v773 = vpop.permute.xlu0 %772
  %v775 = vrcp.pop %v773
  %v776 = vmul.f32 %v773, %v775
  %v777 = vsub.f32 1.0, %v776
  %v778 = vmul.f32 %v775, %v777
  %v779 = vadd.f32 %v775, %v778
  %vm780 = vweird.f32 %v773
  %vm781 = vweird.f32 %v775
  %vm782 = vmor %vm780, %vm781
  %v783 = vsel %vm782, %v775, %v779
  %v784 = vand.u32 2147483647, %v773
  %vm785 = vcmp.eq.f32.partialorder %v784, 8.507059e+37
  %v786 = vand.u32 %v773, 2147483648
  %v787 = vor.u32 1.1754944e-38, %v786
  %v788 = vsel %vm785, %v787, %v783
  %v789 = vmul.f32 %v768, %v788
  %v790 = vld [vmem:[%s0 + $0x80] sm:$0xff]
  %v791 = vld [vmem:[%s0 + $0xf8] sm:$0xff]
  %v792 = vadd.f32 %v790, %v791
  %v793 = vsel %vm26, %v561, 0
  %795 = vmatpush.msra.mxu0 0.0
  %796 = vmatpush.msra.mxu0 0.0
  %797 = vmatpush.msra.mxu0 0.0
  %798 = vmatpush.msra.mxu0 0.0
  %799 = vmatpush.msra.mxu0 0.0
  %800 = vmatpush.msra.mxu0 0.0
  %801 = vmatpush.msra.mxu0 0.0
  %802 = vmatpush.msra.mxu0 0.0
  %803 = vmatpush.msra.mxu0 0.0
  %804 = vmatpush.msra.mxu0 0.0
  %805 = vmatpush.msra.mxu0 0.0
  %806 = vmatpush.msra.mxu0 0.0
  %807 = vmatpush.msra.mxu0 %v14
  %808 = vmatpush.msra.mxu0 %v13
  %809 = vmatpush.msra.mxu0 %v12
  %810 = vmatpush.msra.mxu0 %v11
  %811 = vmatmul.f32.gmra.mxu0 %v793
  %v812 = vpop.f32.mrf.mxu0
  %v813 = vadd.f32 %v15, %v812
  %814 = vdwg.mxu0
  %v815 = vadd.f32 %v792, %v813
  %v816 = vxor.u32 %v815, 2147483648
  %v817 = vmul.f32 %v816, 1.442695
  %v818 = vpow.pop %v817
  %v819 = vadd.f32 %v818, 1.0
  %v820 = vrcp.pop %v819
  %v821 = vmul.f32 %v819, %v820
  %v822 = vsub.f32 1.0, %v821
  %v823 = vmul.f32 %v820, %v822
  %v824 = vadd.f32 %v820, %v823
  %vm825 = vweird.f32 %v819
  %vm826 = vweird.f32 %v820
  %vm827 = vmor %vm825, %vm826
  %v828 = vsel %vm827, %v820, %v824
  %v829 = vand.u32 2147483647, %v819
  %vm830 = vcmp.eq.f32.partialorder %v829, 8.507059e+37
  %v831 = vand.u32 %v819, 2147483648
  %v832 = vor.u32 1.1754944e-38, %v831
  %v833 = vsel %vm830, %v832, %v828
  %v834 = vmul.f32 1.0, %v833
  %836 = vrot.lane.b32.xlu0 %v813, 64
  %v837 = vpop.permute.xlu0 %836
  %v839 = vmul.f32 %v834, %v837
  %841 = vrot.lane.b32.xlu0 %v839, 64
  %v842 = vpop.permute.xlu0 %841
  %v844 = vadd.f32 %v792, %v842
  %v845 = vtanh.pop %v844
  %v846 = vsub.f32 1.0, %v834
  %848 = vrot.lane.b32.xlu0 %v845, 96
  %v849 = vpop.permute.xlu0 %848
  %v851 = vmul.f32 %v846, %v849
  %v852 = vmul.f32 %v834, %v557
  %v853 = vadd.f32 %v851, %v852
  %v854 = vld [vmem:[%s0 + $0x90] sm:$0xff]
  %v855 = vld [vmem:[%s0 + $0xe8] sm:$0xff]
  %v856 = vadd.f32 %v854, %v855
  %858 = vrot.lane.b32.xlu0 %v853, 96
  %v859 = vpop.permute.xlu0 %858
  %v860 = vsel %vm26, %v859, 0
  %862 = vmatpush.msra.mxu0 0.0
  %863 = vmatpush.msra.mxu0 0.0
  %864 = vmatpush.msra.mxu0 0.0
  %865 = vmatpush.msra.mxu0 0.0
  %866 = vmatpush.msra.mxu0 0.0
  %867 = vmatpush.msra.mxu0 0.0
  %868 = vmatpush.msra.mxu0 0.0
  %869 = vmatpush.msra.mxu0 0.0
  %870 = vmatpush.msra.mxu0 0.0
  %871 = vmatpush.msra.mxu0 0.0
  %872 = vmatpush.msra.mxu0 0.0
  %873 = vmatpush.msra.mxu0 0.0
  %874 = vmatpush.msra.mxu0 %v14
  %875 = vmatpush.msra.mxu0 %v13
  %876 = vmatpush.msra.mxu0 %v12
  %877 = vmatpush.msra.mxu0 %v11
  %878 = vmatmul.f32.gmra.mxu0 %v860
  %v879 = vpop.f32.mrf.mxu0
  %v880 = vadd.f32 %v15, %v879
  %881 = vdwg.mxu0
  %v882 = vadd.f32 %v856, %v880
  %v883 = vxor.u32 %v882, 2147483648
  %v884 = vmul.f32 %v883, 1.442695
  %v885 = vpow.pop %v884
  %v886 = vadd.f32 %v885, 1.0
  %v887 = vrcp.pop %v886
  %v888 = vmul.f32 %v886, %v887
  %v889 = vsub.f32 1.0, %v888
  %v890 = vmul.f32 %v887, %v889
  %v891 = vadd.f32 %v887, %v890
  %vm892 = vweird.f32 %v886
  %vm893 = vweird.f32 %v887
  %vm894 = vmor %vm892, %vm893
  %v895 = vsel %vm894, %v887, %v891
  %v896 = vand.u32 2147483647, %v886
  %vm897 = vcmp.eq.f32.partialorder %v896, 8.507059e+37
  %v898 = vand.u32 %v886, 2147483648
  %v899 = vor.u32 1.1754944e-38, %v898
  %v900 = vsel %vm897, %v899, %v895
  %v901 = vmul.f32 1.0, %v900
  %903 = vrot.lane.b32.xlu0 %v880, 64
  %v904 = vpop.permute.xlu0 %903
  %v906 = vmul.f32 %v901, %v904
  %908 = vrot.lane.b32.xlu0 %v906, 64
  %v909 = vpop.permute.xlu0 %908
  %v911 = vadd.f32 %v856, %v909
  %v912 = vtanh.pop %v911
  %v913 = vsub.f32 1.0, %v901
  %915 = vrot.lane.b32.xlu0 %v912, 96
  %v916 = vpop.permute.xlu0 %915
  %v918 = vmul.f32 %v913, %v916
  %v919 = vmul.f32 %v901, %v853
  %v920 = vadd.f32 %v918, %v919
  %v921 = vld [vmem:[%s0 + $0xa0] sm:$0xff]
  %v922 = vld [vmem:[%s0 + $0xd8] sm:$0xff]
  %v923 = vadd.f32 %v921, %v922
  %925 = vrot.lane.b32.xlu0 %v920, 96
  %v926 = vpop.permute.xlu0 %925
  %v927 = vsel %vm26, %v926, 0
  %929 = vmatpush.msra.mxu0 0.0
  %930 = vmatpush.msra.mxu0 0.0
  %931 = vmatpush.msra.mxu0 0.0
  %932 = vmatpush.msra.mxu0 0.0
  %933 = vmatpush.msra.mxu0 0.0
  %934 = vmatpush.msra.mxu0 0.0
  %935 = vmatpush.msra.mxu0 0.0
  %936 = vmatpush.msra.mxu0 0.0
  %937 = vmatpush.msra.mxu0 0.0
  %938 = vmatpush.msra.mxu0 0.0
  %939 = vmatpush.msra.mxu0 0.0
  %940 = vmatpush.msra.mxu0 0.0
  %941 = vmatpush.msra.mxu0 %v14
  %942 = vmatpush.msra.mxu0 %v13
  %943 = vmatpush.msra.mxu0 %v12
  %944 = vmatpush.msra.mxu0 %v11
  %945 = vmatmul.f32.gmra.mxu0 %v927
  %v946 = vpop.f32.mrf.mxu0
  %v947 = vadd.f32 %v15, %v946
  %948 = vdwg.mxu0
  %v949 = vadd.f32 %v923, %v947
  %v950 = vxor.u32 %v949, 2147483648
  %v951 = vmul.f32 %v950, 1.442695
  %v952 = vpow.pop %v951
  %v953 = vadd.f32 %v952, 1.0
  %v954 = vrcp.pop %v953
  %v955 = vmul.f32 %v953, %v954
  %v956 = vsub.f32 1.0, %v955
  %v957 = vmul.f32 %v954, %v956
  %v958 = vadd.f32 %v954, %v957
  %vm959 = vweird.f32 %v953
  %vm960 = vweird.f32 %v954
  %vm961 = vmor %vm959, %vm960
  %v962 = vsel %vm961, %v954, %v958
  %v963 = vand.u32 2147483647, %v953
  %vm964 = vcmp.eq.f32.partialorder %v963, 8.507059e+37
  %v965 = vand.u32 %v953, 2147483648
  %v966 = vor.u32 1.1754944e-38, %v965
  %v967 = vsel %vm964, %v966, %v962
  %v968 = vmul.f32 1.0, %v967
  %970 = vrot.lane.b32.xlu0 %v947, 64
  %v971 = vpop.permute.xlu0 %970
  %v973 = vmul.f32 %v968, %v971
  %975 = vrot.lane.b32.xlu0 %v973, 64
  %v976 = vpop.permute.xlu0 %975
  %v978 = vadd.f32 %v923, %v976
  %v979 = vtanh.pop %v978
  %v980 = vsub.f32 1.0, %v968
  %982 = vrot.lane.b32.xlu0 %v979, 96
  %v983 = vpop.permute.xlu0 %982
  %v985 = vmul.f32 %v980, %v983
  %v986 = vmul.f32 %v968, %v920
  %v987 = vadd.f32 %v985, %v986
  %v988 = vld [vmem:[%s0 + $0xb0] sm:$0xff]
  %v989 = vld [vmem:[%s0 + $0xc8] sm:$0xff]
  %v990 = vadd.f32 %v988, %v989
  %992 = vrot.lane.b32.xlu0 %v987, 96
  %v993 = vpop.permute.xlu0 %992
  %v994 = vsel %vm26, %v993, 0
  %996 = vmatpush.msra.mxu0 0.0
  %997 = vmatpush.msra.mxu0 0.0
  %998 = vmatpush.msra.mxu0 0.0
  %999 = vmatpush.msra.mxu0 0.0
  %1000 = vmatpush.msra.mxu0 0.0
  %1001 = vmatpush.msra.mxu0 0.0
  %1002 = vmatpush.msra.mxu0 0.0
  %1003 = vmatpush.msra.mxu0 0.0
  %1004 = vmatpush.msra.mxu0 0.0
  %1005 = vmatpush.msra.mxu0 0.0
  %1006 = vmatpush.msra.mxu0 0.0
  %1007 = vmatpush.msra.mxu0 0.0
  %1008 = vmatpush.msra.mxu0 %v14
  %1009 = vmatpush.msra.mxu0 %v13
  %1010 = vmatpush.msra.mxu0 %v12
  %1011 = vmatpush.msra.mxu0 %v11
  %1012 = vmatmul.f32.gmra.mxu0 %v994
  %v1013 = vpop.f32.mrf.mxu0
  %v1014 = vadd.f32 %v15, %v1013
  %1015 = vdwg.mxu0
  %v1016 = vadd.f32 %v990, %v1014
  %v1017 = vxor.u32 %v1016, 2147483648
  %v1018 = vmul.f32 %v1017, 1.442695
  %v1019 = vpow.pop %v1018
  %v1020 = vadd.f32 %v1019, 1.0
  %v1021 = vrcp.pop %v1020
  %v1022 = vmul.f32 %v1020, %v1021
  %v1023 = vsub.f32 1.0, %v1022
  %v1024 = vmul.f32 %v1021, %v1023
  %v1025 = vadd.f32 %v1021, %v1024
  %vm1026 = vweird.f32 %v1020
  %vm1027 = vweird.f32 %v1021
  %vm1028 = vmor %vm1026, %vm1027
  %v1029 = vsel %vm1028, %v1021, %v1025
  %v1030 = vand.u32 2147483647, %v1020
  %vm1031 = vcmp.eq.f32.partialorder %v1030, 8.507059e+37
  %v1032 = vand.u32 %v1020, 2147483648
  %v1033 = vor.u32 1.1754944e-38, %v1032
  %v1034 = vsel %vm1031, %v1033, %v1029
  %v1035 = vmul.f32 1.0, %v1034
  %1037 = vrot.lane.b32.xlu0 %v1014, 64
  %v1038 = vpop.permute.xlu0 %1037
  %v1040 = vmul.f32 %v1035, %v1038
  %1042 = vrot.lane.b32.xlu0 %v1040, 64
  %v1043 = vpop.permute.xlu0 %1042
  %v1045 = vadd.f32 %v990, %v1043
  %v1046 = vtanh.pop %v1045
  %v1047 = vsub.f32 1.0, %v1035
  %1049 = vrot.lane.b32.xlu0 %v1046, 96
  %v1050 = vpop.permute.xlu0 %1049
  %v1052 = vmul.f32 %v1047, %v1050
  %v1053 = vmul.f32 %v1035, %v987
  %v1054 = vadd.f32 %v1052, %v1053
  %v1055 = vld [vmem:[%s0 + $0xc0] sm:$0xff]
  %v1056 = vld [vmem:[%s0 + $0xb8] sm:$0xff]
  %v1057 = vadd.f32 %v1055, %v1056
  %1059 = vrot.lane.b32.xlu0 %v1054, 96
  %v1060 = vpop.permute.xlu0 %1059
  %v1061 = vsel %vm26, %v1060, 0
  %1063 = vmatpush.msra.mxu0 0.0
  %1064 = vmatpush.msra.mxu0 0.0
  %1065 = vmatpush.msra.mxu0 0.0
  %1066 = vmatpush.msra.mxu0 0.0
  %1067 = vmatpush.msra.mxu0 0.0
  %1068 = vmatpush.msra.mxu0 0.0
  %1069 = vmatpush.msra.mxu0 0.0
  %1070 = vmatpush.msra.mxu0 0.0
  %1071 = vmatpush.msra.mxu0 0.0
  %1072 = vmatpush.msra.mxu0 0.0
  %1073 = vmatpush.msra.mxu0 0.0
  %1074 = vmatpush.msra.mxu0 0.0
  %1075 = vmatpush.msra.mxu0 %v14
  %1076 = vmatpush.msra.mxu0 %v13
  %1077 = vmatpush.msra.mxu0 %v12
  %1078 = vmatpush.msra.mxu0 %v11
  %1079 = vmatmul.f32.gmra.mxu0 %v1061
  %v1080 = vpop.f32.mrf.mxu0
  %v1081 = vadd.f32 %v15, %v1080
  %1082 = vdwg.mxu0
  %v1083 = vadd.f32 %v1057, %v1081
  %v1084 = vxor.u32 %v1083, 2147483648
  %v1085 = vmul.f32 %v1084, 1.442695
  %v1086 = vpow.pop %v1085
  %v1087 = vadd.f32 %v1086, 1.0
  %v1088 = vrcp.pop %v1087
  %v1089 = vmul.f32 %v1087, %v1088
  %v1090 = vsub.f32 1.0, %v1089
  %v1091 = vmul.f32 %v1088, %v1090
  %v1092 = vadd.f32 %v1088, %v1091
  %vm1093 = vweird.f32 %v1087
  %vm1094 = vweird.f32 %v1088
  %vm1095 = vmor %vm1093, %vm1094
  %v1096 = vsel %vm1095, %v1088, %v1092
  %v1097 = vand.u32 2147483647, %v1087
  %vm1098 = vcmp.eq.f32.partialorder %v1097, 8.507059e+37
  %v1099 = vand.u32 %v1087, 2147483648
  %v1100 = vor.u32 1.1754944e-38, %v1099
  %v1101 = vsel %vm1098, %v1100, %v1096
  %v1102 = vmul.f32 1.0, %v1101
  %1104 = vrot.lane.b32.xlu0 %v1081, 64
  %v1105 = vpop.permute.xlu0 %1104
  %v1107 = vmul.f32 %v1102, %v1105
  %1109 = vrot.lane.b32.xlu0 %v1107, 64
  %v1110 = vpop.permute.xlu0 %1109
  %v1112 = vadd.f32 %v1057, %v1110
  %v1113 = vtanh.pop %v1112
  %v1114 = vsub.f32 1.0, %v1102
  %1116 = vrot.lane.b32.xlu0 %v1113, 96
  %v1117 = vpop.permute.xlu0 %1116
  %v1119 = vmul.f32 %v1114, %v1117
  %v1120 = vmul.f32 %v1102, %v1054
  %v1121 = vadd.f32 %v1119, %v1120
  %v1122 = vld [vmem:[%s0 + $0xd0] sm:$0xff]
  %v1123 = vld [vmem:[%s0 + $0xa8] sm:$0xff]
  %v1124 = vadd.f32 %v1122, %v1123
  %1126 = vrot.lane.b32.xlu0 %v1121, 96
  %v1127 = vpop.permute.xlu0 %1126
  %v1128 = vsel %vm26, %v1127, 0
  %1130 = vmatpush.msra.mxu0 0.0
  %1131 = vmatpush.msra.mxu0 0.0
  %1132 = vmatpush.msra.mxu0 0.0
  %1133 = vmatpush.msra.mxu0 0.0
  %1134 = vmatpush.msra.mxu0 0.0
  %1135 = vmatpush.msra.mxu0 0.0
  %1136 = vmatpush.msra.mxu0 0.0
  %1137 = vmatpush.msra.mxu0 0.0
  %1138 = vmatpush.msra.mxu0 0.0
  %1139 = vmatpush.msra.mxu0 0.0
  %1140 = vmatpush.msra.mxu0 0.0
  %1141 = vmatpush.msra.mxu0 0.0
  %1142 = vmatpush.msra.mxu0 %v14
  %1143 = vmatpush.msra.mxu0 %v13
  %1144 = vmatpush.msra.mxu0 %v12
  %1145 = vmatpush.msra.mxu0 %v11
  %1146 = vmatmul.f32.gmra.mxu0 %v1128
  %v1147 = vpop.f32.mrf.mxu0
  %v1148 = vadd.f32 %v15, %v1147
  %1149 = vdwg.mxu0
  %v1150 = vadd.f32 %v1124, %v1148
  %v1151 = vxor.u32 %v1150, 2147483648
  %v1152 = vmul.f32 %v1151, 1.442695
  %v1153 = vpow.pop %v1152
  %v1154 = vadd.f32 %v1153, 1.0
  %v1155 = vrcp.pop %v1154
  %v1156 = vmul.f32 %v1154, %v1155
  %v1157 = vsub.f32 1.0, %v1156
  %v1158 = vmul.f32 %v1155, %v1157
  %v1159 = vadd.f32 %v1155, %v1158
  %vm1160 = vweird.f32 %v1154
  %vm1161 = vweird.f32 %v1155
  %vm1162 = vmor %vm1160, %vm1161
  %v1163 = vsel %vm1162, %v1155, %v1159
  %v1164 = vand.u32 2147483647, %v1154
  %vm1165 = vcmp.eq.f32.partialorder %v1164, 8.507059e+37
  %v1166 = vand.u32 %v1154, 2147483648
  %v1167 = vor.u32 1.1754944e-38, %v1166
  %v1168 = vsel %vm1165, %v1167, %v1163
  %v1169 = vmul.f32 1.0, %v1168
  %1171 = vrot.lane.b32.xlu0 %v1148, 64
  %v1172 = vpop.permute.xlu0 %1171
  %v1174 = vmul.f32 %v1169, %v1172
  %1176 = vrot.lane.b32.xlu0 %v1174, 64
  %v1177 = vpop.permute.xlu0 %1176
  %v1179 = vadd.f32 %v1124, %v1177
  %v1180 = vtanh.pop %v1179
  %v1181 = vsub.f32 1.0, %v1169
  %1183 = vrot.lane.b32.xlu0 %v1180, 96
  %v1184 = vpop.permute.xlu0 %1183
  %v1186 = vmul.f32 %v1181, %v1184
  %v1187 = vmul.f32 %v1169, %v1121
  %v1188 = vadd.f32 %v1186, %v1187
  %v1189 = vld [vmem:[%s0 + $0xe0] sm:$0xff]
  %v1190 = vld [vmem:[%s0 + $0x98] sm:$0xff]
  %v1191 = vadd.f32 %v1189, %v1190
  %1193 = vrot.lane.b32.xlu0 %v1188, 96
  %v1194 = vpop.permute.xlu0 %1193
  %v1195 = vsel %vm26, %v1194, 0
  %1197 = vmatpush.msra.mxu0 0.0
  %1198 = vmatpush.msra.mxu0 0.0
  %1199 = vmatpush.msra.mxu0 0.0
  %1200 = vmatpush.msra.mxu0 0.0
  %1201 = vmatpush.msra.mxu0 0.0
  %1202 = vmatpush.msra.mxu0 0.0
  %1203 = vmatpush.msra.mxu0 0.0
  %1204 = vmatpush.msra.mxu0 0.0
  %1205 = vmatpush.msra.mxu0 0.0
  %1206 = vmatpush.msra.mxu0 0.0
  %1207 = vmatpush.msra.mxu0 0.0
  %1208 = vmatpush.msra.mxu0 0.0
  %1209 = vmatpush.msra.mxu0 %v14
  %1210 = vmatpush.msra.mxu0 %v13
  %1211 = vmatpush.msra.mxu0 %v12
  %1212 = vmatpush.msra.mxu0 %v11
  %1213 = vmatmul.f32.gmra.mxu0 %v1195
  %v1214 = vpop.f32.mrf.mxu0
  %v1215 = vadd.f32 %v15, %v1214
  %1216 = vdwg.mxu0
  %v1217 = vadd.f32 %v1191, %v1215
  %v1218 = vxor.u32 %v1217, 2147483648
  %v1219 = vmul.f32 %v1218, 1.442695
  %v1220 = vpow.pop %v1219
  %v1221 = vadd.f32 %v1220, 1.0
  %v1222 = vrcp.pop %v1221
  %v1223 = vmul.f32 %v1221, %v1222
  %v1224 = vsub.f32 1.0, %v1223
  %v1225 = vmul.f32 %v1222, %v1224
  %v1226 = vadd.f32 %v1222, %v1225
  %vm1227 = vweird.f32 %v1221
  %vm1228 = vweird.f32 %v1222
  %vm1229 = vmor %vm1227, %vm1228
  %v1230 = vsel %vm1229, %v1222, %v1226
  %v1231 = vand.u32 2147483647, %v1221
  %vm1232 = vcmp.eq.f32.partialorder %v1231, 8.507059e+37
  %v1233 = vand.u32 %v1221, 2147483648
  %v1234 = vor.u32 1.1754944e-38, %v1233
  %v1235 = vsel %vm1232, %v1234, %v1230
  %v1236 = vmul.f32 1.0, %v1235
  %1238 = vrot.lane.b32.xlu0 %v1215, 64
  %v1239 = vpop.permute.xlu0 %1238
  %v1241 = vmul.f32 %v1236, %v1239
  %1243 = vrot.lane.b32.xlu0 %v1241, 64
  %v1244 = vpop.permute.xlu0 %1243
  %v1246 = vadd.f32 %v1191, %v1244
  %v1247 = vtanh.pop %v1246
  %v1248 = vsub.f32 1.0, %v1236
  %1250 = vrot.lane.b32.xlu0 %v1247, 96
  %v1251 = vpop.permute.xlu0 %1250
  %v1253 = vmul.f32 %v1248, %v1251
  %v1254 = vmul.f32 %v1236, %v1188
  %v1255 = vadd.f32 %v1253, %v1254
  %v1256 = vld [vmem:[%s0 + $0xf0] sm:$0xff]
  %v1257 = vld [vmem:[%s0 + $0x88] sm:$0xff]
  %v1258 = vadd.f32 %v1256, %v1257
  %1260 = vrot.lane.b32.xlu0 %v1255, 96
  %v1261 = vpop.permute.xlu0 %1260
  %v1262 = vsel %vm26, %v1261, 0
  %1264 = vmatpush.msra.mxu0 0.0
  %1265 = vmatpush.msra.mxu0 0.0
  %1266 = vmatpush.msra.mxu0 0.0
  %1267 = vmatpush.msra.mxu0 0.0
  %1268 = vmatpush.msra.mxu0 0.0
  %1269 = vmatpush.msra.mxu0 0.0
  %1270 = vmatpush.msra.mxu0 0.0
  %1271 = vmatpush.msra.mxu0 0.0
  %1272 = vmatpush.msra.mxu0 0.0
  %1273 = vmatpush.msra.mxu0 0.0
  %1274 = vmatpush.msra.mxu0 0.0
  %1275 = vmatpush.msra.mxu0 0.0
  %1276 = vmatpush.msra.mxu0 %v14
  %1277 = vmatpush.msra.mxu0 %v13
  %1278 = vmatpush.msra.mxu0 %v12
  %1279 = vmatpush.msra.mxu0 %v11
  %1280 = vmatmul.f32.gmra.mxu0 %v1262
  %v1281 = vpop.f32.mrf.mxu0
  %v1282 = vadd.f32 %v15, %v1281
  %1283 = vdwg.mxu0
  %v1284 = vadd.f32 %v1258, %v1282
  %v1285 = vxor.u32 %v1284, 2147483648
  %v1286 = vmul.f32 %v1285, 1.442695
  %v1287 = vpow.pop %v1286
  %v1288 = vadd.f32 %v1287, 1.0
  %v1289 = vrcp.pop %v1288
  %v1290 = vmul.f32 %v1288, %v1289
  %v1291 = vsub.f32 1.0, %v1290
  %v1292 = vmul.f32 %v1289, %v1291
  %v1293 = vadd.f32 %v1289, %v1292
  %vm1294 = vweird.f32 %v1288
  %vm1295 = vweird.f32 %v1289
  %vm1296 = vmor %vm1294, %vm1295
  %v1297 = vsel %vm1296, %v1289, %v1293
  %v1298 = vand.u32 2147483647, %v1288
  %vm1299 = vcmp.eq.f32.partialorder %v1298, 8.507059e+37
  %v1300 = vand.u32 %v1288, 2147483648
  %v1301 = vor.u32 1.1754944e-38, %v1300
  %v1302 = vsel %vm1299, %v1301, %v1297
  %v1303 = vmul.f32 1.0, %v1302
  %1305 = vrot.lane.b32.xlu0 %v1282, 64
  %v1306 = vpop.permute.xlu0 %1305
  %v1308 = vmul.f32 %v1303, %v1306
  %1310 = vrot.lane.b32.xlu0 %v1308, 64
  %v1311 = vpop.permute.xlu0 %1310
  %v1313 = vadd.f32 %v1258, %v1311
  %v1314 = vtanh.pop %v1313
  %v1315 = vsub.f32 1.0, %v1303
  %1317 = vrot.lane.b32.xlu0 %v1314, 96
  %v1318 = vpop.permute.xlu0 %1317
  %v1320 = vmul.f32 %v1315, %v1318
  %v1321 = vmul.f32 %v1303, %v1255
  %v1322 = vadd.f32 %v1320, %v1321
  %1325 = vrot.lane.b32.xlu0 %v1322, 96
  %v1326 = vpop.permute.xlu0 %1325
  %v1328 = vsel %vm563, %v859, %v1326
  %v1331 = vsel %vm563, %v926, %v1261
  %v1334 = vsel %vm563, %v993, %v1194
  %v1337 = vsel %vm563, %v1060, %v1127
  %v1338 = vsel %vm563, %v1127, %v1060
  %v1339 = vsel %vm563, %v1194, %v993
  %v1340 = vsel %vm563, %v1261, %v926
  %v1341 = vsel %vm563, %v1326, %v859
  %v1343 = vsel %vm26, %v1328, 0
  %v1346 = vsel %vm26, %v1331, 0
  %v1349 = vsel %vm26, %v1334, 0
  %v1352 = vsel %vm26, %v1337, 0
  %v1355 = vsel %vm26, %v1338, 0
  %v1358 = vsel %vm26, %v1339, 0
  %v1361 = vsel %vm26, %v1340, 0
  %v1364 = vsel %vm26, %v1341, 0
  %1366 = vmatpush.msra.mxu0 0.0
  %1367 = vmatpush.msra.mxu0 0.0
  %1368 = vmatpush.msra.mxu0 0.0
  %1369 = vmatpush.msra.mxu0 0.0
  %1370 = vmatpush.msra.mxu0 0.0
  %1371 = vmatpush.msra.mxu0 0.0
  %1372 = vmatpush.msra.mxu0 0.0
  %1373 = vmatpush.msra.mxu0 0.0
  %1374 = vmatpush.msra.mxu0 0.0
  %1375 = vmatpush.msra.mxu0 0.0
  %1376 = vmatpush.msra.mxu0 0.0
  %1377 = vmatpush.msra.mxu0 0.0
  %1378 = vmatpush.msra.mxu0 %v19
  %1379 = vmatpush.msra.mxu0 %v18
  %1380 = vmatpush.msra.mxu0 %v17
  %1381 = vmatpush.msra.mxu0 %v16
  %1382 = vmatmul.f32.gmra.mxu0 %v1343
  %v1383 = vpop.f32.mrf.mxu0
  %v1384 = vadd.f32 %v20, %v1383
  %1385 = vmatmul.f32.gmra.mxu0 %v1346
  %v1386 = vpop.f32.mrf.mxu0
  %v1387 = vadd.f32 %v20, %v1386
  %1388 = vmatmul.f32.gmra.mxu0 %v1349
  %v1389 = vpop.f32.mrf.mxu0
  %v1390 = vadd.f32 %v20, %v1389
  %1391 = vmatmul.f32.gmra.mxu0 %v1352
  %v1392 = vpop.f32.mrf.mxu0
  %v1393 = vadd.f32 %v20, %v1392
  %1394 = vmatmul.f32.gmra.mxu0 %v1355
  %v1395 = vpop.f32.mrf.mxu0
  %v1396 = vadd.f32 %v20, %v1395
  %1397 = vmatmul.f32.gmra.mxu0 %v1358
  %v1398 = vpop.f32.mrf.mxu0
  %v1399 = vadd.f32 %v20, %v1398
  %1400 = vmatmul.f32.gmra.mxu0 %v1361
  %v1401 = vpop.f32.mrf.mxu0
  %v1402 = vadd.f32 %v20, %v1401
  %1403 = vmatmul.f32.gmra.mxu0 %v1364
  %v1404 = vpop.f32.mrf.mxu0
  %v1405 = vadd.f32 %v20, %v1404
  %1406 = vdwg.mxu0
  %v1407 = vtanh.pop %v1384
  %v1408 = vtanh.pop %v1387
  %v1409 = vtanh.pop %v1390
  %v1410 = vtanh.pop %v1393
  %v1411 = vtanh.pop %v1396
  %v1412 = vtanh.pop %v1399
  %v1413 = vtanh.pop %v1402
  %v1414 = vtanh.pop %v1405
  %v1415 = vmul.f32 %v1407, %v21
  %v1416 = vmul.f32 %v1408, %v21
  %v1417 = vmul.f32 %v1409, %v21
  %v1418 = vmul.f32 %v1410, %v21
  %v1419 = vmul.f32 %v1411, %v21
  %v1420 = vmul.f32 %v1412, %v21
  %v1421 = vmul.f32 %v1413, %v21
  %v1422 = vmul.f32 %v1414, %v21
  %v1423 = vsel %vm26, %v1415, 0.0
  %1424 = vadd.xlane.f32.xlu0 %v1423
  %v1425 = vpop.xlane.xlu0 %1424
  %v1426 = vsel %vm26, %v1416, 0.0
  %1427 = vadd.xlane.f32.xlu0 %v1426
  %v1428 = vpop.xlane.xlu0 %1427
  %v1429 = vsel %vm26, %v1417, 0.0
  %1430 = vadd.xlane.f32.xlu0 %v1429
  %v1431 = vpop.xlane.xlu0 %1430
  %v1432 = vsel %vm26, %v1418, 0.0
  %1433 = vadd.xlane.f32.xlu0 %v1432
  %v1434 = vpop.xlane.xlu0 %1433
  %v1435 = vsel %vm26, %v1419, 0.0
  %1436 = vadd.xlane.f32.xlu0 %v1435
  %v1437 = vpop.xlane.xlu0 %1436
  %v1438 = vsel %vm26, %v1420, 0.0
  %1439 = vadd.xlane.f32.xlu0 %v1438
  %v1440 = vpop.xlane.xlu0 %1439
  %v1441 = vsel %vm26, %v1421, 0.0
  %1442 = vadd.xlane.f32.xlu0 %v1441
  %v1443 = vpop.xlane.xlu0 %1442
  %v1444 = vsel %vm26, %v1422, 0.0
  %1445 = vadd.xlane.f32.xlu0 %v1444
  %v1446 = vpop.xlane.xlu0 %1445
  %v1447 = vtanh.pop %v1425
  %v1448 = vtanh.pop %v1428
  %v1449 = vtanh.pop %v1431
  %v1450 = vtanh.pop %v1434
  %v1451 = vtanh.pop %v1437
  %v1452 = vtanh.pop %v1440
  %v1453 = vtanh.pop %v1443
  %v1454 = vtanh.pop %v1446
  %v1455 = vmax.f32 %v1447, %v1451
  %v1456 = vmax.f32 %v1448, %v1452
  %v1457 = vmax.f32 %v1449, %v1453
  %v1458 = vmax.f32 %v1450, %v1454
  %v1459 = vmax.f32 %v1455, %v1456
  %v1460 = vmax.f32 %v1457, %v1458
  %v1461 = vmax.f32 %v1459, %v1460
  %v1462 = vrot.slane %v1461, 4
  %v1463 = vmax.f32 %v1461, %v1462
  %v1464 = vrot.slane %v1463, 2
  %v1465 = vmax.f32 %v1463, %v1464
  %v1466 = vrot.slane %v1465, 1
  %v1467 = vmax.f32 %v1465, %v1466
  %s1468 = vtos %v1467
  %v1469 = vstv %s1468
  %v1470 = vsub.f32 %v1447, %v1469
  %v1471 = vsub.f32 %v1448, %v1469
  %v1472 = vsub.f32 %v1449, %v1469
  %v1473 = vsub.f32 %v1450, %v1469
  %v1474 = vsub.f32 %v1451, %v1469
  %v1475 = vsub.f32 %v1452, %v1469
  %v1476 = vsub.f32 %v1453, %v1469
  %v1477 = vsub.f32 %v1454, %v1469
  %v1478 = vmul.f32 %v1470, 1.442695
  %v1479 = vpow.pop %v1478
  %v1480 = vmul.f32 %v1471, 1.442695
  %v1481 = vpow.pop %v1480
  %v1482 = vmul.f32 %v1472, 1.442695
  %v1483 = vpow.pop %v1482
  %v1484 = vmul.f32 %v1473, 1.442695
  %v1485 = vpow.pop %v1484
  %v1486 = vmul.f32 %v1474, 1.442695
  %v1487 = vpow.pop %v1486
  %v1488 = vmul.f32 %v1475, 1.442695
  %v1489 = vpow.pop %v1488
  %v1490 = vmul.f32 %v1476, 1.442695
  %v1491 = vpow.pop %v1490
  %v1492 = vmul.f32 %v1477, 1.442695
  %v1493 = vpow.pop %v1492
  %v1494 = vmul.f32 %v1479, %v1328
  %v1495 = vmul.f32 %v1481, %v1331
  %v1496 = vmul.f32 %v1483, %v1334
  %v1497 = vmul.f32 %v1485, %v1337
  %v1498 = vmul.f32 %v1487, %v1338
  %v1499 = vmul.f32 %v1489, %v1339
  %v1500 = vmul.f32 %v1491, %v1340
  %v1501 = vmul.f32 %v1493, %v1341
  %v1502 = vsel %vm26, %v1494, %v1479
  %v1503 = vsel %vm26, %v1495, %v1481
  %v1504 = vsel %vm26, %v1496, %v1483
  %v1505 = vsel %vm26, %v1497, %v1485
  %v1506 = vsel %vm26, %v1498, %v1487
  %v1507 = vsel %vm26, %v1499, %v1489
  %v1508 = vsel %vm26, %v1500, %v1491
  %v1509 = vsel %vm26, %v1501, %v1493
  %1510 = vmatpush.msra.mxu0 0.0
  %1511 = vmatpush.msra.mxu0 0.0
  %1512 = vmatpush.msra.mxu0 0.0
  %1513 = vmatpush.msra.mxu0 0.0
  %1514 = vmatpush.msra.mxu0 0.0
  %1515 = vmatpush.msra.mxu0 0.0
  %1516 = vmatpush.msra.mxu0 0.0
  %1517 = vmatpush.msra.mxu0 0.0
  %1518 = vmatpush.msra.mxu0 %v1509
  %1519 = vmatpush.msra.mxu0 %v1508
  %1520 = vmatpush.msra.mxu0 %v1507
  %1521 = vmatpush.msra.mxu0 %v1506
  %1522 = vmatpush.msra.mxu0 %v1505
  %1523 = vmatpush.msra.mxu0 %v1504
  %1524 = vmatpush.msra.mxu0 %v1503
  %1525 = vmatpush.msra.mxu0 %v1502
  %1526 = vmatmul.f32.gmra.mxu0 %v748
  %v1527 = vpop.f32.mrf.mxu0
  %v1528 = vadd.f32 0.0, %v1527
  %1529 = vdwg.mxu0
  %1531 = vset.pattern.permute.xlu0 32
  %1532 = vperm.xlu0 %1531, %v1528
  %v1533 = vpop.permute.xlu0 %1532
  %v1535 = vrcp.pop %v1533
  %v1536 = vmul.f32 %v1533, %v1535
  %v1537 = vsub.f32 1.0, %v1536
  %v1538 = vmul.f32 %v1535, %v1537
  %v1539 = vadd.f32 %v1535, %v1538
  %vm1540 = vweird.f32 %v1533
  %vm1541 = vweird.f32 %v1535
  %vm1542 = vmor %vm1540, %vm1541
  %v1543 = vsel %vm1542, %v1535, %v1539
  %v1544 = vand.u32 2147483647, %v1533
  %vm1545 = vcmp.eq.f32.partialorder %v1544, 8.507059e+37
  %v1546 = vand.u32 %v1533, 2147483648
  %v1547 = vor.u32 1.1754944e-38, %v1546
  %v1548 = vsel %vm1545, %v1547, %v1543
  %v1549 = vmul.f32 %v1528, %v1548
  %v1550 = vld [vmem:[%s0 + $0x100] sm:$0xff]
  %v1551 = vld [vmem:[%s0 + $0x178] sm:$0xff]
  %v1552 = vadd.f32 %v1550, %v1551
  %v1553 = vsel %vm26, %v1326, 0
  %1555 = vmatpush.msra.mxu0 0.0
  %1556 = vmatpush.msra.mxu0 0.0
  %1557 = vmatpush.msra.mxu0 0.0
  %1558 = vmatpush.msra.mxu0 0.0
  %1559 = vmatpush.msra.mxu0 0.0
  %1560 = vmatpush.msra.mxu0 0.0
  %1561 = vmatpush.msra.mxu0 0.0
  %1562 = vmatpush.msra.mxu0 0.0
  %1563 = vmatpush.msra.mxu0 0.0
  %1564 = vmatpush.msra.mxu0 0.0
  %1565 = vmatpush.msra.mxu0 0.0
  %1566 = vmatpush.msra.mxu0 0.0
  %1567 = vmatpush.msra.mxu0 %v14
  %1568 = vmatpush.msra.mxu0 %v13
  %1569 = vmatpush.msra.mxu0 %v12
  %1570 = vmatpush.msra.mxu0 %v11
  %1571 = vmatmul.f32.gmra.mxu0 %v1553
  %v1572 = vpop.f32.mrf.mxu0
  %v1573 = vadd.f32 %v15, %v1572
  %1574 = vdwg.mxu0
  %v1575 = vadd.f32 %v1552, %v1573
  %v1576 = vxor.u32 %v1575, 2147483648
  %v1577 = vmul.f32 %v1576, 1.442695
  %v1578 = vpow.pop %v1577
  %v1579 = vadd.f32 %v1578, 1.0
  %v1580 = vrcp.pop %v1579
  %v1581 = vmul.f32 %v1579, %v1580
  %v1582 = vsub.f32 1.0, %v1581
  %v1583 = vmul.f32 %v1580, %v1582
  %v1584 = vadd.f32 %v1580, %v1583
  %vm1585 = vweird.f32 %v1579
  %vm1586 = vweird.f32 %v1580
  %vm1587 = vmor %vm1585, %vm1586
  %v1588 = vsel %vm1587, %v1580, %v1584
  %v1589 = vand.u32 2147483647, %v1579
  %vm1590 = vcmp.eq.f32.partialorder %v1589, 8.507059e+37
  %v1591 = vand.u32 %v1579, 2147483648
  %v1592 = vor.u32 1.1754944e-38, %v1591
  %v1593 = vsel %vm1590, %v1592, %v1588
  %v1594 = vmul.f32 1.0, %v1593
  %1596 = vrot.lane.b32.xlu0 %v1573, 64
  %v1597 = vpop.permute.xlu0 %1596
  %v1599 = vmul.f32 %v1594, %v1597
  %1601 = vrot.lane.b32.xlu0 %v1599, 64
  %v1602 = vpop.permute.xlu0 %1601
  %v1604 = vadd.f32 %v1552, %v1602
  %v1605 = vtanh.pop %v1604
  %v1606 = vsub.f32 1.0, %v1594
  %1608 = vrot.lane.b32.xlu0 %v1605, 96
  %v1609 = vpop.permute.xlu0 %1608
  %v1611 = vmul.f32 %v1606, %v1609
  %v1612 = vmul.f32 %v1594, %v1322
  %v1613 = vadd.f32 %v1611, %v1612
  %v1614 = vld [vmem:[%s0 + $0x110] sm:$0xff]
  %v1615 = vld [vmem:[%s0 + $0x168] sm:$0xff]
  %v1616 = vadd.f32 %v1614, %v1615
  %1618 = vrot.lane.b32.xlu0 %v1613, 96
  %v1619 = vpop.permute.xlu0 %1618
  %v1620 = vsel %vm26, %v1619, 0
  %1622 = vmatpush.msra.mxu0 0.0
  %1623 = vmatpush.msra.mxu0 0.0
  %1624 = vmatpush.msra.mxu0 0.0
  %1625 = vmatpush.msra.mxu0 0.0
  %1626 = vmatpush.msra.mxu0 0.0
  %1627 = vmatpush.msra.mxu0 0.0
  %1628 = vmatpush.msra.mxu0 0.0
  %1629 = vmatpush.msra.mxu0 0.0
  %1630 = vmatpush.msra.mxu0 0.0
  %1631 = vmatpush.msra.mxu0 0.0
  %1632 = vmatpush.msra.mxu0 0.0
  %1633 = vmatpush.msra.mxu0 0.0
  %1634 = vmatpush.msra.mxu0 %v14
  %1635 = vmatpush.msra.mxu0 %v13
  %1636 = vmatpush.msra.mxu0 %v12
  %1637 = vmatpush.msra.mxu0 %v11
  %1638 = vmatmul.f32.gmra.mxu0 %v1620
  %v1639 = vpop.f32.mrf.mxu0
  %v1640 = vadd.f32 %v15, %v1639
  %1641 = vdwg.mxu0
  %v1642 = vadd.f32 %v1616, %v1640
  %v1643 = vxor.u32 %v1642, 2147483648
  %v1644 = vmul.f32 %v1643, 1.442695
  %v1645 = vpow.pop %v1644
  %v1646 = vadd.f32 %v1645, 1.0
  %v1647 = vrcp.pop %v1646
  %v1648 = vmul.f32 %v1646, %v1647
  %v1649 = vsub.f32 1.0, %v1648
  %v1650 = vmul.f32 %v1647, %v1649
  %v1651 = vadd.f32 %v1647, %v1650
  %vm1652 = vweird.f32 %v1646
  %vm1653 = vweird.f32 %v1647
  %vm1654 = vmor %vm1652, %vm1653
  %v1655 = vsel %vm1654, %v1647, %v1651
  %v1656 = vand.u32 2147483647, %v1646
  %vm1657 = vcmp.eq.f32.partialorder %v1656, 8.507059e+37
  %v1658 = vand.u32 %v1646, 2147483648
  %v1659 = vor.u32 1.1754944e-38, %v1658
  %v1660 = vsel %vm1657, %v1659, %v1655
  %v1661 = vmul.f32 1.0, %v1660
  %1663 = vrot.lane.b32.xlu0 %v1640, 64
  %v1664 = vpop.permute.xlu0 %1663
  %v1666 = vmul.f32 %v1661, %v1664
  %1668 = vrot.lane.b32.xlu0 %v1666, 64
  %v1669 = vpop.permute.xlu0 %1668
  %v1671 = vadd.f32 %v1616, %v1669
  %v1672 = vtanh.pop %v1671
  %v1673 = vsub.f32 1.0, %v1661
  %1675 = vrot.lane.b32.xlu0 %v1672, 96
  %v1676 = vpop.permute.xlu0 %1675
  %v1678 = vmul.f32 %v1673, %v1676
  %v1679 = vmul.f32 %v1661, %v1613
  %v1680 = vadd.f32 %v1678, %v1679
  %v1681 = vld [vmem:[%s0 + $0x120] sm:$0xff]
  %v1682 = vld [vmem:[%s0 + $0x158] sm:$0xff]
  %v1683 = vadd.f32 %v1681, %v1682
  %1685 = vrot.lane.b32.xlu0 %v1680, 96
  %v1686 = vpop.permute.xlu0 %1685
  %v1687 = vsel %vm26, %v1686, 0
  %1689 = vmatpush.msra.mxu0 0.0
  %1690 = vmatpush.msra.mxu0 0.0
  %1691 = vmatpush.msra.mxu0 0.0
  %1692 = vmatpush.msra.mxu0 0.0
  %1693 = vmatpush.msra.mxu0 0.0
  %1694 = vmatpush.msra.mxu0 0.0
  %1695 = vmatpush.msra.mxu0 0.0
  %1696 = vmatpush.msra.mxu0 0.0
  %1697 = vmatpush.msra.mxu0 0.0
  %1698 = vmatpush.msra.mxu0 0.0
  %1699 = vmatpush.msra.mxu0 0.0
  %1700 = vmatpush.msra.mxu0 0.0
  %1701 = vmatpush.msra.mxu0 %v14
  %1702 = vmatpush.msra.mxu0 %v13
  %1703 = vmatpush.msra.mxu0 %v12
  %1704 = vmatpush.msra.mxu0 %v11
  %1705 = vmatmul.f32.gmra.mxu0 %v1687
  %v1706 = vpop.f32.mrf.mxu0
  %v1707 = vadd.f32 %v15, %v1706
  %1708 = vdwg.mxu0
  %v1709 = vadd.f32 %v1683, %v1707
  %v1710 = vxor.u32 %v1709, 2147483648
  %v1711 = vmul.f32 %v1710, 1.442695
  %v1712 = vpow.pop %v1711
  %v1713 = vadd.f32 %v1712, 1.0
  %v1714 = vrcp.pop %v1713
  %v1715 = vmul.f32 %v1713, %v1714
  %v1716 = vsub.f32 1.0, %v1715
  %v1717 = vmul.f32 %v1714, %v1716
  %v1718 = vadd.f32 %v1714, %v1717
  %vm1719 = vweird.f32 %v1713
  %vm1720 = vweird.f32 %v1714
  %vm1721 = vmor %vm1719, %vm1720
  %v1722 = vsel %vm1721, %v1714, %v1718
  %v1723 = vand.u32 2147483647, %v1713
  %vm1724 = vcmp.eq.f32.partialorder %v1723, 8.507059e+37
  %v1725 = vand.u32 %v1713, 2147483648
  %v1726 = vor.u32 1.1754944e-38, %v1725
  %v1727 = vsel %vm1724, %v1726, %v1722
  %v1728 = vmul.f32 1.0, %v1727
  %1730 = vrot.lane.b32.xlu0 %v1707, 64
  %v1731 = vpop.permute.xlu0 %1730
  %v1733 = vmul.f32 %v1728, %v1731
  %1735 = vrot.lane.b32.xlu0 %v1733, 64
  %v1736 = vpop.permute.xlu0 %1735
  %v1738 = vadd.f32 %v1683, %v1736
  %v1739 = vtanh.pop %v1738
  %v1740 = vsub.f32 1.0, %v1728
  %1742 = vrot.lane.b32.xlu0 %v1739, 96
  %v1743 = vpop.permute.xlu0 %1742
  %v1745 = vmul.f32 %v1740, %v1743
  %v1746 = vmul.f32 %v1728, %v1680
  %v1747 = vadd.f32 %v1745, %v1746
  %v1748 = vld [vmem:[%s0 + $0x130] sm:$0xff]
  %v1749 = vld [vmem:[%s0 + $0x148] sm:$0xff]
  %v1750 = vadd.f32 %v1748, %v1749
  %1752 = vrot.lane.b32.xlu0 %v1747, 96
  %v1753 = vpop.permute.xlu0 %1752
  %v1754 = vsel %vm26, %v1753, 0
  %1756 = vmatpush.msra.mxu0 0.0
  %1757 = vmatpush.msra.mxu0 0.0
  %1758 = vmatpush.msra.mxu0 0.0
  %1759 = vmatpush.msra.mxu0 0.0
  %1760 = vmatpush.msra.mxu0 0.0
  %1761 = vmatpush.msra.mxu0 0.0
  %1762 = vmatpush.msra.mxu0 0.0
  %1763 = vmatpush.msra.mxu0 0.0
  %1764 = vmatpush.msra.mxu0 0.0
  %1765 = vmatpush.msra.mxu0 0.0
  %1766 = vmatpush.msra.mxu0 0.0
  %1767 = vmatpush.msra.mxu0 0.0
  %1768 = vmatpush.msra.mxu0 %v14
  %1769 = vmatpush.msra.mxu0 %v13
  %1770 = vmatpush.msra.mxu0 %v12
  %1771 = vmatpush.msra.mxu0 %v11
  %1772 = vmatmul.f32.gmra.mxu0 %v1754
  %v1773 = vpop.f32.mrf.mxu0
  %v1774 = vadd.f32 %v15, %v1773
  %1775 = vdwg.mxu0
  %v1776 = vadd.f32 %v1750, %v1774
  %v1777 = vxor.u32 %v1776, 2147483648
  %v1778 = vmul.f32 %v1777, 1.442695
  %v1779 = vpow.pop %v1778
  %v1780 = vadd.f32 %v1779, 1.0
  %v1781 = vrcp.pop %v1780
  %v1782 = vmul.f32 %v1780, %v1781
  %v1783 = vsub.f32 1.0, %v1782
  %v1784 = vmul.f32 %v1781, %v1783
  %v1785 = vadd.f32 %v1781, %v1784
  %vm1786 = vweird.f32 %v1780
  %vm1787 = vweird.f32 %v1781
  %vm1788 = vmor %vm1786, %vm1787
  %v1789 = vsel %vm1788, %v1781, %v1785
  %v1790 = vand.u32 2147483647, %v1780
  %vm1791 = vcmp.eq.f32.partialorder %v1790, 8.507059e+37
  %v1792 = vand.u32 %v1780, 2147483648
  %v1793 = vor.u32 1.1754944e-38, %v1792
  %v1794 = vsel %vm1791, %v1793, %v1789
  %v1795 = vmul.f32 1.0, %v1794
  %1797 = vrot.lane.b32.xlu0 %v1774, 64
  %v1798 = vpop.permute.xlu0 %1797
  %v1800 = vmul.f32 %v1795, %v1798
  %1802 = vrot.lane.b32.xlu0 %v1800, 64
  %v1803 = vpop.permute.xlu0 %1802
  %v1805 = vadd.f32 %v1750, %v1803
  %v1806 = vtanh.pop %v1805
  %v1807 = vsub.f32 1.0, %v1795
  %1809 = vrot.lane.b32.xlu0 %v1806, 96
  %v1810 = vpop.permute.xlu0 %1809
  %v1812 = vmul.f32 %v1807, %v1810
  %v1813 = vmul.f32 %v1795, %v1747
  %v1814 = vadd.f32 %v1812, %v1813
  %v1815 = vld [vmem:[%s0 + $0x140] sm:$0xff]
  %v1816 = vld [vmem:[%s0 + $0x138] sm:$0xff]
  %v1817 = vadd.f32 %v1815, %v1816
  %1819 = vrot.lane.b32.xlu0 %v1814, 96
  %v1820 = vpop.permute.xlu0 %1819
  %v1821 = vsel %vm26, %v1820, 0
  %1823 = vmatpush.msra.mxu0 0.0
  %1824 = vmatpush.msra.mxu0 0.0
  %1825 = vmatpush.msra.mxu0 0.0
  %1826 = vmatpush.msra.mxu0 0.0
  %1827 = vmatpush.msra.mxu0 0.0
  %1828 = vmatpush.msra.mxu0 0.0
  %1829 = vmatpush.msra.mxu0 0.0
  %1830 = vmatpush.msra.mxu0 0.0
  %1831 = vmatpush.msra.mxu0 0.0
  %1832 = vmatpush.msra.mxu0 0.0
  %1833 = vmatpush.msra.mxu0 0.0
  %1834 = vmatpush.msra.mxu0 0.0
  %1835 = vmatpush.msra.mxu0 %v14
  %1836 = vmatpush.msra.mxu0 %v13
  %1837 = vmatpush.msra.mxu0 %v12
  %1838 = vmatpush.msra.mxu0 %v11
  %1839 = vmatmul.f32.gmra.mxu0 %v1821
  %v1840 = vpop.f32.mrf.mxu0
  %v1841 = vadd.f32 %v15, %v1840
  %1842 = vdwg.mxu0
  %v1843 = vadd.f32 %v1817, %v1841
  %v1844 = vxor.u32 %v1843, 2147483648
  %v1845 = vmul.f32 %v1844, 1.442695
  %v1846 = vpow.pop %v1845
  %v1847 = vadd.f32 %v1846, 1.0
  %v1848 = vrcp.pop %v1847
  %v1849 = vmul.f32 %v1847, %v1848
  %v1850 = vsub.f32 1.0, %v1849
  %v1851 = vmul.f32 %v1848, %v1850
  %v1852 = vadd.f32 %v1848, %v1851
  %vm1853 = vweird.f32 %v1847
  %vm1854 = vweird.f32 %v1848
  %vm1855 = vmor %vm1853, %vm1854
  %v1856 = vsel %vm1855, %v1848, %v1852
  %v1857 = vand.u32 2147483647, %v1847
  %vm1858 = vcmp.eq.f32.partialorder %v1857, 8.507059e+37
  %v1859 = vand.u32 %v1847, 2147483648
  %v1860 = vor.u32 1.1754944e-38, %v1859
  %v1861 = vsel %vm1858, %v1860, %v1856
  %v1862 = vmul.f32 1.0, %v1861
  %1864 = vrot.lane.b32.xlu0 %v1841, 64
  %v1865 = vpop.permute.xlu0 %1864
  %v1867 = vmul.f32 %v1862, %v1865
  %1869 = vrot.lane.b32.xlu0 %v1867, 64
  %v1870 = vpop.permute.xlu0 %1869
  %v1872 = vadd.f32 %v1817, %v1870
  %v1873 = vtanh.pop %v1872
  %v1874 = vsub.f32 1.0, %v1862
  %1876 = vrot.lane.b32.xlu0 %v1873, 96
  %v1877 = vpop.permute.xlu0 %1876
  %v1879 = vmul.f32 %v1874, %v1877
  %v1880 = vmul.f32 %v1862, %v1814
  %v1881 = vadd.f32 %v1879, %v1880
  %v1882 = vld [vmem:[%s0 + $0x150] sm:$0xff]
  %v1883 = vld [vmem:[%s0 + $0x128] sm:$0xff]
  %v1884 = vadd.f32 %v1882, %v1883
  %1886 = vrot.lane.b32.xlu0 %v1881, 96
  %v1887 = vpop.permute.xlu0 %1886
  %v1888 = vsel %vm26, %v1887, 0
  %1890 = vmatpush.msra.mxu0 0.0
  %1891 = vmatpush.msra.mxu0 0.0
  %1892 = vmatpush.msra.mxu0 0.0
  %1893 = vmatpush.msra.mxu0 0.0
  %1894 = vmatpush.msra.mxu0 0.0
  %1895 = vmatpush.msra.mxu0 0.0
  %1896 = vmatpush.msra.mxu0 0.0
  %1897 = vmatpush.msra.mxu0 0.0
  %1898 = vmatpush.msra.mxu0 0.0
  %1899 = vmatpush.msra.mxu0 0.0
  %1900 = vmatpush.msra.mxu0 0.0
  %1901 = vmatpush.msra.mxu0 0.0
  %1902 = vmatpush.msra.mxu0 %v14
  %1903 = vmatpush.msra.mxu0 %v13
  %1904 = vmatpush.msra.mxu0 %v12
  %1905 = vmatpush.msra.mxu0 %v11
  %1906 = vmatmul.f32.gmra.mxu0 %v1888
  %v1907 = vpop.f32.mrf.mxu0
  %v1908 = vadd.f32 %v15, %v1907
  %1909 = vdwg.mxu0
  %v1910 = vadd.f32 %v1884, %v1908
  %v1911 = vxor.u32 %v1910, 2147483648
  %v1912 = vmul.f32 %v1911, 1.442695
  %v1913 = vpow.pop %v1912
  %v1914 = vadd.f32 %v1913, 1.0
  %v1915 = vrcp.pop %v1914
  %v1916 = vmul.f32 %v1914, %v1915
  %v1917 = vsub.f32 1.0, %v1916
  %v1918 = vmul.f32 %v1915, %v1917
  %v1919 = vadd.f32 %v1915, %v1918
  %vm1920 = vweird.f32 %v1914
  %vm1921 = vweird.f32 %v1915
  %vm1922 = vmor %vm1920, %vm1921
  %v1923 = vsel %vm1922, %v1915, %v1919
  %v1924 = vand.u32 2147483647, %v1914
  %vm1925 = vcmp.eq.f32.partialorder %v1924, 8.507059e+37
  %v1926 = vand.u32 %v1914, 2147483648
  %v1927 = vor.u32 1.1754944e-38, %v1926
  %v1928 = vsel %vm1925, %v1927, %v1923
  %v1929 = vmul.f32 1.0, %v1928
  %1931 = vrot.lane.b32.xlu0 %v1908, 64
  %v1932 = vpop.permute.xlu0 %1931
  %v1934 = vmul.f32 %v1929, %v1932
  %1936 = vrot.lane.b32.xlu0 %v1934, 64
  %v1937 = vpop.permute.xlu0 %1936
  %v1939 = vadd.f32 %v1884, %v1937
  %v1940 = vtanh.pop %v1939
  %v1941 = vsub.f32 1.0, %v1929
  %1943 = vrot.lane.b32.xlu0 %v1940, 96
  %v1944 = vpop.permute.xlu0 %1943
  %v1946 = vmul.f32 %v1941, %v1944
  %v1947 = vmul.f32 %v1929, %v1881
  %v1948 = vadd.f32 %v1946, %v1947
  %v1949 = vld [vmem:[%s0 + $0x160] sm:$0xff]
  %v1950 = vld [vmem:[%s0 + $0x118] sm:$0xff]
  %v1951 = vadd.f32 %v1949, %v1950
  %1953 = vrot.lane.b32.xlu0 %v1948, 96
  %v1954 = vpop.permute.xlu0 %1953
  %v1955 = vsel %vm26, %v1954, 0
  %1957 = vmatpush.msra.mxu0 0.0
  %1958 = vmatpush.msra.mxu0 0.0
  %1959 = vmatpush.msra.mxu0 0.0
  %1960 = vmatpush.msra.mxu0 0.0
  %1961 = vmatpush.msra.mxu0 0.0
  %1962 = vmatpush.msra.mxu0 0.0
  %1963 = vmatpush.msra.mxu0 0.0
  %1964 = vmatpush.msra.mxu0 0.0
  %1965 = vmatpush.msra.mxu0 0.0
  %1966 = vmatpush.msra.mxu0 0.0
  %1967 = vmatpush.msra.mxu0 0.0
  %1968 = vmatpush.msra.mxu0 0.0
  %1969 = vmatpush.msra.mxu0 %v14
  %1970 = vmatpush.msra.mxu0 %v13
  %1971 = vmatpush.msra.mxu0 %v12
  %1972 = vmatpush.msra.mxu0 %v11
  %1973 = vmatmul.f32.gmra.mxu0 %v1955
  %v1974 = vpop.f32.mrf.mxu0
  %v1975 = vadd.f32 %v15, %v1974
  %1976 = vdwg.mxu0
  %v1977 = vadd.f32 %v1951, %v1975
  %v1978 = vxor.u32 %v1977, 2147483648
  %v1979 = vmul.f32 %v1978, 1.442695
  %v1980 = vpow.pop %v1979
  %v1981 = vadd.f32 %v1980, 1.0
  %v1982 = vrcp.pop %v1981
  %v1983 = vmul.f32 %v1981, %v1982
  %v1984 = vsub.f32 1.0, %v1983
  %v1985 = vmul.f32 %v1982, %v1984
  %v1986 = vadd.f32 %v1982, %v1985
  %vm1987 = vweird.f32 %v1981
  %vm1988 = vweird.f32 %v1982
  %vm1989 = vmor %vm1987, %vm1988
  %v1990 = vsel %vm1989, %v1982, %v1986
  %v1991 = vand.u32 2147483647, %v1981
  %vm1992 = vcmp.eq.f32.partialorder %v1991, 8.507059e+37
  %v1993 = vand.u32 %v1981, 2147483648
  %v1994 = vor.u32 1.1754944e-38, %v1993
  %v1995 = vsel %vm1992, %v1994, %v1990
  %v1996 = vmul.f32 1.0, %v1995
  %1998 = vrot.lane.b32.xlu0 %v1975, 64
  %v1999 = vpop.permute.xlu0 %1998
  %v2001 = vmul.f32 %v1996, %v1999
  %2003 = vrot.lane.b32.xlu0 %v2001, 64
  %v2004 = vpop.permute.xlu0 %2003
  %v2006 = vadd.f32 %v1951, %v2004
  %v2007 = vtanh.pop %v2006
  %v2008 = vsub.f32 1.0, %v1996
  %2010 = vrot.lane.b32.xlu0 %v2007, 96
  %v2011 = vpop.permute.xlu0 %2010
  %v2013 = vmul.f32 %v2008, %v2011
  %v2014 = vmul.f32 %v1996, %v1948
  %v2015 = vadd.f32 %v2013, %v2014
  %v2016 = vld [vmem:[%s0 + $0x170] sm:$0xff]
  %v2017 = vld [vmem:[%s0 + $0x108] sm:$0xff]
  %v2018 = vadd.f32 %v2016, %v2017
  %2020 = vrot.lane.b32.xlu0 %v2015, 96
  %v2021 = vpop.permute.xlu0 %2020
  %v2022 = vsel %vm26, %v2021, 0
  %2024 = vmatpush.msra.mxu0 0.0
  %2025 = vmatpush.msra.mxu0 0.0
  %2026 = vmatpush.msra.mxu0 0.0
  %2027 = vmatpush.msra.mxu0 0.0
  %2028 = vmatpush.msra.mxu0 0.0
  %2029 = vmatpush.msra.mxu0 0.0
  %2030 = vmatpush.msra.mxu0 0.0
  %2031 = vmatpush.msra.mxu0 0.0
  %2032 = vmatpush.msra.mxu0 0.0
  %2033 = vmatpush.msra.mxu0 0.0
  %2034 = vmatpush.msra.mxu0 0.0
  %2035 = vmatpush.msra.mxu0 0.0
  %2036 = vmatpush.msra.mxu0 %v14
  %2037 = vmatpush.msra.mxu0 %v13
  %2038 = vmatpush.msra.mxu0 %v12
  %2039 = vmatpush.msra.mxu0 %v11
  %2040 = vmatmul.f32.gmra.mxu0 %v2022
  %v2041 = vpop.f32.mrf.mxu0
  %v2042 = vadd.f32 %v15, %v2041
  %2043 = vdwg.mxu0
  %v2044 = vadd.f32 %v2018, %v2042
  %v2045 = vxor.u32 %v2044, 2147483648
  %v2046 = vmul.f32 %v2045, 1.442695
  %v2047 = vpow.pop %v2046
  %v2048 = vadd.f32 %v2047, 1.0
  %v2049 = vrcp.pop %v2048
  %v2050 = vmul.f32 %v2048, %v2049
  %v2051 = vsub.f32 1.0, %v2050
  %v2052 = vmul.f32 %v2049, %v2051
  %v2053 = vadd.f32 %v2049, %v2052
  %vm2054 = vweird.f32 %v2048
  %vm2055 = vweird.f32 %v2049
  %vm2056 = vmor %vm2054, %vm2055
  %v2057 = vsel %vm2056, %v2049, %v2053
  %v2058 = vand.u32 2147483647, %v2048
  %vm2059 = vcmp.eq.f32.partialorder %v2058, 8.507059e+37
  %v2060 = vand.u32 %v2048, 2147483648
  %v2061 = vor.u32 1.1754944e-38, %v2060
  %v2062 = vsel %vm2059, %v2061, %v2057
  %v2063 = vmul.f32 1.0, %v2062
  %2065 = vrot.lane.b32.xlu0 %v2042, 64
  %v2066 = vpop.permute.xlu0 %2065
  %v2068 = vmul.f32 %v2063, %v2066
  %2070 = vrot.lane.b32.xlu0 %v2068, 64
  %v2071 = vpop.permute.xlu0 %2070
  %v2073 = vadd.f32 %v2018, %v2071
  %v2074 = vtanh.pop %v2073
  %v2075 = vsub.f32 1.0, %v2063
  %2077 = vrot.lane.b32.xlu0 %v2074, 96
  %v2078 = vpop.permute.xlu0 %2077
  %v2080 = vmul.f32 %v2075, %v2078
  %v2081 = vmul.f32 %v2063, %v2015
  %v2082 = vadd.f32 %v2080, %v2081
  %2085 = vrot.lane.b32.xlu0 %v2082, 96
  %v2086 = vpop.permute.xlu0 %2085
  %v2088 = vsel %vm563, %v1619, %v2086
  %v2091 = vsel %vm563, %v1686, %v2021
  %v2094 = vsel %vm563, %v1753, %v1954
  %v2097 = vsel %vm563, %v1820, %v1887
  %v2098 = vsel %vm563, %v1887, %v1820
  %v2099 = vsel %vm563, %v1954, %v1753
  %v2100 = vsel %vm563, %v2021, %v1686
  %v2101 = vsel %vm563, %v2086, %v1619
  %v2103 = vsel %vm26, %v2088, 0
  %v2106 = vsel %vm26, %v2091, 0
  %v2109 = vsel %vm26, %v2094, 0
  %v2112 = vsel %vm26, %v2097, 0
  %v2115 = vsel %vm26, %v2098, 0
  %v2118 = vsel %vm26, %v2099, 0
  %v2121 = vsel %vm26, %v2100, 0
  %v2124 = vsel %vm26, %v2101, 0
  %2126 = vmatpush.msra.mxu0 0.0
  %2127 = vmatpush.msra.mxu0 0.0
  %2128 = vmatpush.msra.mxu0 0.0
  %2129 = vmatpush.msra.mxu0 0.0
  %2130 = vmatpush.msra.mxu0 0.0
  %2131 = vmatpush.msra.mxu0 0.0
  %2132 = vmatpush.msra.mxu0 0.0
  %2133 = vmatpush.msra.mxu0 0.0
  %2134 = vmatpush.msra.mxu0 0.0
  %2135 = vmatpush.msra.mxu0 0.0
  %2136 = vmatpush.msra.mxu0 0.0
  %2137 = vmatpush.msra.mxu0 0.0
  %2138 = vmatpush.msra.mxu0 %v19
  %2139 = vmatpush.msra.mxu0 %v18
  %2140 = vmatpush.msra.mxu0 %v17
  %2141 = vmatpush.msra.mxu0 %v16
  %2142 = vmatmul.f32.gmra.mxu0 %v2103
  %v2143 = vpop.f32.mrf.mxu0
  %v2144 = vadd.f32 %v20, %v2143
  %2145 = vmatmul.f32.gmra.mxu0 %v2106
  %v2146 = vpop.f32.mrf.mxu0
  %v2147 = vadd.f32 %v20, %v2146
  %2148 = vmatmul.f32.gmra.mxu0 %v2109
  %v2149 = vpop.f32.mrf.mxu0
  %v2150 = vadd.f32 %v20, %v2149
  %2151 = vmatmul.f32.gmra.mxu0 %v2112
  %v2152 = vpop.f32.mrf.mxu0
  %v2153 = vadd.f32 %v20, %v2152
  %2154 = vmatmul.f32.gmra.mxu0 %v2115
  %v2155 = vpop.f32.mrf.mxu0
  %v2156 = vadd.f32 %v20, %v2155
  %2157 = vmatmul.f32.gmra.mxu0 %v2118
  %v2158 = vpop.f32.mrf.mxu0
  %v2159 = vadd.f32 %v20, %v2158
  %2160 = vmatmul.f32.gmra.mxu0 %v2121
  %v2161 = vpop.f32.mrf.mxu0
  %v2162 = vadd.f32 %v20, %v2161
  %2163 = vmatmul.f32.gmra.mxu0 %v2124
  %v2164 = vpop.f32.mrf.mxu0
  %v2165 = vadd.f32 %v20, %v2164
  %2166 = vdwg.mxu0
  %v2167 = vtanh.pop %v2144
  %v2168 = vtanh.pop %v2147
  %v2169 = vtanh.pop %v2150
  %v2170 = vtanh.pop %v2153
  %v2171 = vtanh.pop %v2156
  %v2172 = vtanh.pop %v2159
  %v2173 = vtanh.pop %v2162
  %v2174 = vtanh.pop %v2165
  %v2175 = vmul.f32 %v2167, %v21
  %v2176 = vmul.f32 %v2168, %v21
  %v2177 = vmul.f32 %v2169, %v21
  %v2178 = vmul.f32 %v2170, %v21
  %v2179 = vmul.f32 %v2171, %v21
  %v2180 = vmul.f32 %v2172, %v21
  %v2181 = vmul.f32 %v2173, %v21
  %v2182 = vmul.f32 %v2174, %v21
  %v2183 = vsel %vm26, %v2175, 0.0
  %2184 = vadd.xlane.f32.xlu0 %v2183
  %v2185 = vpop.xlane.xlu0 %2184
  %v2186 = vsel %vm26, %v2176, 0.0
  %2187 = vadd.xlane.f32.xlu0 %v2186
  %v2188 = vpop.xlane.xlu0 %2187
  %v2189 = vsel %vm26, %v2177, 0.0
  %2190 = vadd.xlane.f32.xlu0 %v2189
  %v2191 = vpop.xlane.xlu0 %2190
  %v2192 = vsel %vm26, %v2178, 0.0
  %2193 = vadd.xlane.f32.xlu0 %v2192
  %v2194 = vpop.xlane.xlu0 %2193
  %v2195 = vsel %vm26, %v2179, 0.0
  %2196 = vadd.xlane.f32.xlu0 %v2195
  %v2197 = vpop.xlane.xlu0 %2196
  %v2198 = vsel %vm26, %v2180, 0.0
  %2199 = vadd.xlane.f32.xlu0 %v2198
  %v2200 = vpop.xlane.xlu0 %2199
  %v2201 = vsel %vm26, %v2181, 0.0
  %2202 = vadd.xlane.f32.xlu0 %v2201
  %v2203 = vpop.xlane.xlu0 %2202
  %v2204 = vsel %vm26, %v2182, 0.0
  %2205 = vadd.xlane.f32.xlu0 %v2204
  %v2206 = vpop.xlane.xlu0 %2205
  %v2207 = vtanh.pop %v2185
  %v2208 = vtanh.pop %v2188
  %v2209 = vtanh.pop %v2191
  %v2210 = vtanh.pop %v2194
  %v2211 = vtanh.pop %v2197
  %v2212 = vtanh.pop %v2200
  %v2213 = vtanh.pop %v2203
  %v2214 = vtanh.pop %v2206
  %v2215 = vmax.f32 %v2207, %v2211
  %v2216 = vmax.f32 %v2208, %v2212
  %v2217 = vmax.f32 %v2209, %v2213
  %v2218 = vmax.f32 %v2210, %v2214
  %v2219 = vmax.f32 %v2215, %v2216
  %v2220 = vmax.f32 %v2217, %v2218
  %v2221 = vmax.f32 %v2219, %v2220
  %v2222 = vrot.slane %v2221, 4
  %v2223 = vmax.f32 %v2221, %v2222
  %v2224 = vrot.slane %v2223, 2
  %v2225 = vmax.f32 %v2223, %v2224
  %v2226 = vrot.slane %v2225, 1
  %v2227 = vmax.f32 %v2225, %v2226
  %s2228 = vtos %v2227
  %v2229 = vstv %s2228
  %v2230 = vsub.f32 %v2207, %v2229
  %v2231 = vsub.f32 %v2208, %v2229
  %v2232 = vsub.f32 %v2209, %v2229
  %v2233 = vsub.f32 %v2210, %v2229
  %v2234 = vsub.f32 %v2211, %v2229
  %v2235 = vsub.f32 %v2212, %v2229
  %v2236 = vsub.f32 %v2213, %v2229
  %v2237 = vsub.f32 %v2214, %v2229
  %v2238 = vmul.f32 %v2230, 1.442695
  %v2239 = vpow.pop %v2238
  %v2240 = vmul.f32 %v2231, 1.442695
  %v2241 = vpow.pop %v2240
  %v2242 = vmul.f32 %v2232, 1.442695
  %v2243 = vpow.pop %v2242
  %v2244 = vmul.f32 %v2233, 1.442695
  %v2245 = vpow.pop %v2244
  %v2246 = vmul.f32 %v2234, 1.442695
  %v2247 = vpow.pop %v2246
  %v2248 = vmul.f32 %v2235, 1.442695
  %v2249 = vpow.pop %v2248
  %v2250 = vmul.f32 %v2236, 1.442695
  %v2251 = vpow.pop %v2250
  %v2252 = vmul.f32 %v2237, 1.442695
  %v2253 = vpow.pop %v2252
  %v2254 = vmul.f32 %v2239, %v2088
  %v2255 = vmul.f32 %v2241, %v2091
  %v2256 = vmul.f32 %v2243, %v2094
  %v2257 = vmul.f32 %v2245, %v2097
  %v2258 = vmul.f32 %v2247, %v2098
  %v2259 = vmul.f32 %v2249, %v2099
  %v2260 = vmul.f32 %v2251, %v2100
  %v2261 = vmul.f32 %v2253, %v2101
  %v2262 = vsel %vm26, %v2254, %v2239
  %v2263 = vsel %vm26, %v2255, %v2241
  %v2264 = vsel %vm26, %v2256, %v2243
  %v2265 = vsel %vm26, %v2257, %v2245
  %v2266 = vsel %vm26, %v2258, %v2247
  %v2267 = vsel %vm26, %v2259, %v2249
  %v2268 = vsel %vm26, %v2260, %v2251
  %v2269 = vsel %vm26, %v2261, %v2253
  %2270 = vmatpush.msra.mxu0 0.0
  %2271 = vmatpush.msra.mxu0 0.0
  %2272 = vmatpush.msra.mxu0 0.0
  %2273 = vmatpush.msra.mxu0 0.0
  %2274 = vmatpush.msra.mxu0 0.0
  %2275 = vmatpush.msra.mxu0 0.0
  %2276 = vmatpush.msra.mxu0 0.0
  %2277 = vmatpush.msra.mxu0 0.0
  %2278 = vmatpush.msra.mxu0 %v2269
  %2279 = vmatpush.msra.mxu0 %v2268
  %2280 = vmatpush.msra.mxu0 %v2267
  %2281 = vmatpush.msra.mxu0 %v2266
  %2282 = vmatpush.msra.mxu0 %v2265
  %2283 = vmatpush.msra.mxu0 %v2264
  %2284 = vmatpush.msra.mxu0 %v2263
  %2285 = vmatpush.msra.mxu0 %v2262
  %2286 = vmatmul.f32.gmra.mxu0 %v748
  %v2287 = vpop.f32.mrf.mxu0
  %v2288 = vadd.f32 0.0, %v2287
  %2289 = vdwg.mxu0
  %2291 = vset.pattern.permute.xlu0 32
  %2292 = vperm.xlu0 %2291, %v2288
  %v2293 = vpop.permute.xlu0 %2292
  %v2295 = vrcp.pop %v2293
  %v2296 = vmul.f32 %v2293, %v2295
  %v2297 = vsub.f32 1.0, %v2296
  %v2298 = vmul.f32 %v2295, %v2297
  %v2299 = vadd.f32 %v2295, %v2298
  %vm2300 = vweird.f32 %v2293
  %vm2301 = vweird.f32 %v2295
  %vm2302 = vmor %vm2300, %vm2301
  %v2303 = vsel %vm2302, %v2295, %v2299
  %v2304 = vand.u32 2147483647, %v2293
  %vm2305 = vcmp.eq.f32.partialorder %v2304, 8.507059e+37
  %v2306 = vand.u32 %v2293, 2147483648
  %v2307 = vor.u32 1.1754944e-38, %v2306
  %v2308 = vsel %vm2305, %v2307, %v2303
  %v2309 = vmul.f32 %v2288, %v2308
  %v2310 = vld [vmem:[%s0 + $0x180] sm:$0xff]
  %v2311 = vld [vmem:[%s0 + $0x1f8] sm:$0xff]
  %v2312 = vadd.f32 %v2310, %v2311
  %v2313 = vsel %vm26, %v2086, 0
  %2315 = vmatpush.msra.mxu0 0.0
  %2316 = vmatpush.msra.mxu0 0.0
  %2317 = vmatpush.msra.mxu0 0.0
  %2318 = vmatpush.msra.mxu0 0.0
  %2319 = vmatpush.msra.mxu0 0.0
  %2320 = vmatpush.msra.mxu0 0.0
  %2321 = vmatpush.msra.mxu0 0.0
  %2322 = vmatpush.msra.mxu0 0.0
  %2323 = vmatpush.msra.mxu0 0.0
  %2324 = vmatpush.msra.mxu0 0.0
  %2325 = vmatpush.msra.mxu0 0.0
  %2326 = vmatpush.msra.mxu0 0.0
  %2327 = vmatpush.msra.mxu0 %v14
  %2328 = vmatpush.msra.mxu0 %v13
  %2329 = vmatpush.msra.mxu0 %v12
  %2330 = vmatpush.msra.mxu0 %v11
  %2331 = vmatmul.f32.gmra.mxu0 %v2313
  %v2332 = vpop.f32.mrf.mxu0
  %v2333 = vadd.f32 %v15, %v2332
  %2334 = vdwg.mxu0
  %v2335 = vadd.f32 %v2312, %v2333
  %v2336 = vxor.u32 %v2335, 2147483648
  %v2337 = vmul.f32 %v2336, 1.442695
  %v2338 = vpow.pop %v2337
  %v2339 = vadd.f32 %v2338, 1.0
  %v2340 = vrcp.pop %v2339
  %v2341 = vmul.f32 %v2339, %v2340
  %v2342 = vsub.f32 1.0, %v2341
  %v2343 = vmul.f32 %v2340, %v2342
  %v2344 = vadd.f32 %v2340, %v2343
  %vm2345 = vweird.f32 %v2339
  %vm2346 = vweird.f32 %v2340
  %vm2347 = vmor %vm2345, %vm2346
  %v2348 = vsel %vm2347, %v2340, %v2344
  %v2349 = vand.u32 2147483647, %v2339
  %vm2350 = vcmp.eq.f32.partialorder %v2349, 8.507059e+37
  %v2351 = vand.u32 %v2339, 2147483648
  %v2352 = vor.u32 1.1754944e-38, %v2351
  %v2353 = vsel %vm2350, %v2352, %v2348
  %v2354 = vmul.f32 1.0, %v2353
  %2356 = vrot.lane.b32.xlu0 %v2333, 64
  %v2357 = vpop.permute.xlu0 %2356
  %v2359 = vmul.f32 %v2354, %v2357
  %2361 = vrot.lane.b32.xlu0 %v2359, 64
  %v2362 = vpop.permute.xlu0 %2361
  %v2364 = vadd.f32 %v2312, %v2362
  %v2365 = vtanh.pop %v2364
  %v2366 = vsub.f32 1.0, %v2354
  %2368 = vrot.lane.b32.xlu0 %v2365, 96
  %v2369 = vpop.permute.xlu0 %2368
  %v2371 = vmul.f32 %v2366, %v2369
  %v2372 = vmul.f32 %v2354, %v2082
  %v2373 = vadd.f32 %v2371, %v2372
  %v2374 = vld [vmem:[%s0 + $0x190] sm:$0xff]
  %v2375 = vld [vmem:[%s0 + $0x1e8] sm:$0xff]
  %v2376 = vadd.f32 %v2374, %v2375
  %2378 = vrot.lane.b32.xlu0 %v2373, 96
  %v2379 = vpop.permute.xlu0 %2378
  %v2380 = vsel %vm26, %v2379, 0
  %2382 = vmatpush.msra.mxu0 0.0
  %2383 = vmatpush.msra.mxu0 0.0
  %2384 = vmatpush.msra.mxu0 0.0
  %2385 = vmatpush.msra.mxu0 0.0
  %2386 = vmatpush.msra.mxu0 0.0
  %2387 = vmatpush.msra.mxu0 0.0
  %2388 = vmatpush.msra.mxu0 0.0
  %2389 = vmatpush.msra.mxu0 0.0
  %2390 = vmatpush.msra.mxu0 0.0
  %2391 = vmatpush.msra.mxu0 0.0
  %2392 = vmatpush.msra.mxu0 0.0
  %2393 = vmatpush.msra.mxu0 0.0
  %2394 = vmatpush.msra.mxu0 %v14
  %2395 = vmatpush.msra.mxu0 %v13
  %2396 = vmatpush.msra.mxu0 %v12
  %2397 = vmatpush.msra.mxu0 %v11
  %2398 = vmatmul.f32.gmra.mxu0 %v2380
  %v2399 = vpop.f32.mrf.mxu0
  %v2400 = vadd.f32 %v15, %v2399
  %2401 = vdwg.mxu0
  %v2402 = vadd.f32 %v2376, %v2400
  %v2403 = vxor.u32 %v2402, 2147483648
  %v2404 = vmul.f32 %v2403, 1.442695
  %v2405 = vpow.pop %v2404
  %v2406 = vadd.f32 %v2405, 1.0
  %v2407 = vrcp.pop %v2406
  %v2408 = vmul.f32 %v2406, %v2407
  %v2409 = vsub.f32 1.0, %v2408
  %v2410 = vmul.f32 %v2407, %v2409
  %v2411 = vadd.f32 %v2407, %v2410
  %vm2412 = vweird.f32 %v2406
  %vm2413 = vweird.f32 %v2407
  %vm2414 = vmor %vm2412, %vm2413
  %v2415 = vsel %vm2414, %v2407, %v2411
  %v2416 = vand.u32 2147483647, %v2406
  %vm2417 = vcmp.eq.f32.partialorder %v2416, 8.507059e+37
  %v2418 = vand.u32 %v2406, 2147483648
  %v2419 = vor.u32 1.1754944e-38, %v2418
  %v2420 = vsel %vm2417, %v2419, %v2415
  %v2421 = vmul.f32 1.0, %v2420
  %2423 = vrot.lane.b32.xlu0 %v2400, 64
  %v2424 = vpop.permute.xlu0 %2423
  %v2426 = vmul.f32 %v2421, %v2424
  %2428 = vrot.lane.b32.xlu0 %v2426, 64
  %v2429 = vpop.permute.xlu0 %2428
  %v2431 = vadd.f32 %v2376, %v2429
  %v2432 = vtanh.pop %v2431
  %v2433 = vsub.f32 1.0, %v2421
  %2435 = vrot.lane.b32.xlu0 %v2432, 96
  %v2436 = vpop.permute.xlu0 %2435
  %v2438 = vmul.f32 %v2433, %v2436
  %v2439 = vmul.f32 %v2421, %v2373
  %v2440 = vadd.f32 %v2438, %v2439
  %v2441 = vld [vmem:[%s0 + $0x1a0] sm:$0xff]
  %v2442 = vld [vmem:[%s0 + $0x1d8] sm:$0xff]
  %v2443 = vadd.f32 %v2441, %v2442
  %2445 = vrot.lane.b32.xlu0 %v2440, 96
  %v2446 = vpop.permute.xlu0 %2445
  %v2447 = vsel %vm26, %v2446, 0
  %2449 = vmatpush.msra.mxu0 0.0
  %2450 = vmatpush.msra.mxu0 0.0
  %2451 = vmatpush.msra.mxu0 0.0
  %2452 = vmatpush.msra.mxu0 0.0
  %2453 = vmatpush.msra.mxu0 0.0
  %2454 = vmatpush.msra.mxu0 0.0
  %2455 = vmatpush.msra.mxu0 0.0
  %2456 = vmatpush.msra.mxu0 0.0
  %2457 = vmatpush.msra.mxu0 0.0
  %2458 = vmatpush.msra.mxu0 0.0
  %2459 = vmatpush.msra.mxu0 0.0
  %2460 = vmatpush.msra.mxu0 0.0
  %2461 = vmatpush.msra.mxu0 %v14
  %2462 = vmatpush.msra.mxu0 %v13
  %2463 = vmatpush.msra.mxu0 %v12
  %2464 = vmatpush.msra.mxu0 %v11
  %2465 = vmatmul.f32.gmra.mxu0 %v2447
  %v2466 = vpop.f32.mrf.mxu0
  %v2467 = vadd.f32 %v15, %v2466
  %2468 = vdwg.mxu0
  %v2469 = vadd.f32 %v2443, %v2467
  %v2470 = vxor.u32 %v2469, 2147483648
  %v2471 = vmul.f32 %v2470, 1.442695
  %v2472 = vpow.pop %v2471
  %v2473 = vadd.f32 %v2472, 1.0
  %v2474 = vrcp.pop %v2473
  %v2475 = vmul.f32 %v2473, %v2474
  %v2476 = vsub.f32 1.0, %v2475
  %v2477 = vmul.f32 %v2474, %v2476
  %v2478 = vadd.f32 %v2474, %v2477
  %vm2479 = vweird.f32 %v2473
  %vm2480 = vweird.f32 %v2474
  %vm2481 = vmor %vm2479, %vm2480
  %v2482 = vsel %vm2481, %v2474, %v2478
  %v2483 = vand.u32 2147483647, %v2473
  %vm2484 = vcmp.eq.f32.partialorder %v2483, 8.507059e+37
  %v2485 = vand.u32 %v2473, 2147483648
  %v2486 = vor.u32 1.1754944e-38, %v2485
  %v2487 = vsel %vm2484, %v2486, %v2482
  %v2488 = vmul.f32 1.0, %v2487
  %2490 = vrot.lane.b32.xlu0 %v2467, 64
  %v2491 = vpop.permute.xlu0 %2490
  %v2493 = vmul.f32 %v2488, %v2491
  %2495 = vrot.lane.b32.xlu0 %v2493, 64
  %v2496 = vpop.permute.xlu0 %2495
  %v2498 = vadd.f32 %v2443, %v2496
  %v2499 = vtanh.pop %v2498
  %v2500 = vsub.f32 1.0, %v2488
  %2502 = vrot.lane.b32.xlu0 %v2499, 96
  %v2503 = vpop.permute.xlu0 %2502
  %v2505 = vmul.f32 %v2500, %v2503
  %v2506 = vmul.f32 %v2488, %v2440
  %v2507 = vadd.f32 %v2505, %v2506
  %v2508 = vld [vmem:[%s0 + $0x1b0] sm:$0xff]
  %v2509 = vld [vmem:[%s0 + $0x1c8] sm:$0xff]
  %v2510 = vadd.f32 %v2508, %v2509
  %2512 = vrot.lane.b32.xlu0 %v2507, 96
  %v2513 = vpop.permute.xlu0 %2512
  %v2514 = vsel %vm26, %v2513, 0
  %2516 = vmatpush.msra.mxu0 0.0
  %2517 = vmatpush.msra.mxu0 0.0
  %2518 = vmatpush.msra.mxu0 0.0
  %2519 = vmatpush.msra.mxu0 0.0
  %2520 = vmatpush.msra.mxu0 0.0
  %2521 = vmatpush.msra.mxu0 0.0
  %2522 = vmatpush.msra.mxu0 0.0
  %2523 = vmatpush.msra.mxu0 0.0
  %2524 = vmatpush.msra.mxu0 0.0
  %2525 = vmatpush.msra.mxu0 0.0
  %2526 = vmatpush.msra.mxu0 0.0
  %2527 = vmatpush.msra.mxu0 0.0
  %2528 = vmatpush.msra.mxu0 %v14
  %2529 = vmatpush.msra.mxu0 %v13
  %2530 = vmatpush.msra.mxu0 %v12
  %2531 = vmatpush.msra.mxu0 %v11
  %2532 = vmatmul.f32.gmra.mxu0 %v2514
  %v2533 = vpop.f32.mrf.mxu0
  %v2534 = vadd.f32 %v15, %v2533
  %2535 = vdwg.mxu0
  %v2536 = vadd.f32 %v2510, %v2534
  %v2537 = vxor.u32 %v2536, 2147483648
  %v2538 = vmul.f32 %v2537, 1.442695
  %v2539 = vpow.pop %v2538
  %v2540 = vadd.f32 %v2539, 1.0
  %v2541 = vrcp.pop %v2540
  %v2542 = vmul.f32 %v2540, %v2541
  %v2543 = vsub.f32 1.0, %v2542
  %v2544 = vmul.f32 %v2541, %v2543
  %v2545 = vadd.f32 %v2541, %v2544
  %vm2546 = vweird.f32 %v2540
  %vm2547 = vweird.f32 %v2541
  %vm2548 = vmor %vm2546, %vm2547
  %v2549 = vsel %vm2548, %v2541, %v2545
  %v2550 = vand.u32 2147483647, %v2540
  %vm2551 = vcmp.eq.f32.partialorder %v2550, 8.507059e+37
  %v2552 = vand.u32 %v2540, 2147483648
  %v2553 = vor.u32 1.1754944e-38, %v2552
  %v2554 = vsel %vm2551, %v2553, %v2549
  %v2555 = vmul.f32 1.0, %v2554
  %2557 = vrot.lane.b32.xlu0 %v2534, 64
  %v2558 = vpop.permute.xlu0 %2557
  %v2560 = vmul.f32 %v2555, %v2558
  %2562 = vrot.lane.b32.xlu0 %v2560, 64
  %v2563 = vpop.permute.xlu0 %2562
  %v2565 = vadd.f32 %v2510, %v2563
  %v2566 = vtanh.pop %v2565
  %v2567 = vsub.f32 1.0, %v2555
  %2569 = vrot.lane.b32.xlu0 %v2566, 96
  %v2570 = vpop.permute.xlu0 %2569
  %v2572 = vmul.f32 %v2567, %v2570
  %v2573 = vmul.f32 %v2555, %v2507
  %v2574 = vadd.f32 %v2572, %v2573
  %v2575 = vld [vmem:[%s0 + $0x1c0] sm:$0xff]
  %v2576 = vld [vmem:[%s0 + $0x1b8] sm:$0xff]
  %v2577 = vadd.f32 %v2575, %v2576
  %2579 = vrot.lane.b32.xlu0 %v2574, 96
  %v2580 = vpop.permute.xlu0 %2579
  %v2581 = vsel %vm26, %v2580, 0
  %2583 = vmatpush.msra.mxu0 0.0
  %2584 = vmatpush.msra.mxu0 0.0
  %2585 = vmatpush.msra.mxu0 0.0
  %2586 = vmatpush.msra.mxu0 0.0
  %2587 = vmatpush.msra.mxu0 0.0
  %2588 = vmatpush.msra.mxu0 0.0
  %2589 = vmatpush.msra.mxu0 0.0
  %2590 = vmatpush.msra.mxu0 0.0
  %2591 = vmatpush.msra.mxu0 0.0
  %2592 = vmatpush.msra.mxu0 0.0
  %2593 = vmatpush.msra.mxu0 0.0
  %2594 = vmatpush.msra.mxu0 0.0
  %2595 = vmatpush.msra.mxu0 %v14
  %2596 = vmatpush.msra.mxu0 %v13
  %2597 = vmatpush.msra.mxu0 %v12
  %2598 = vmatpush.msra.mxu0 %v11
  %2599 = vmatmul.f32.gmra.mxu0 %v2581
  %v2600 = vpop.f32.mrf.mxu0
  %v2601 = vadd.f32 %v15, %v2600
  %2602 = vdwg.mxu0
  %v2603 = vadd.f32 %v2577, %v2601
  %v2604 = vxor.u32 %v2603, 2147483648
  %v2605 = vmul.f32 %v2604, 1.442695
  %v2606 = vpow.pop %v2605
  %v2607 = vadd.f32 %v2606, 1.0
  %v2608 = vrcp.pop %v2607
  %v2609 = vmul.f32 %v2607, %v2608
  %v2610 = vsub.f32 1.0, %v2609
  %v2611 = vmul.f32 %v2608, %v2610
  %v2612 = vadd.f32 %v2608, %v2611
  %vm2613 = vweird.f32 %v2607
  %vm2614 = vweird.f32 %v2608
  %vm2615 = vmor %vm2613, %vm2614
  %v2616 = vsel %vm2615, %v2608, %v2612
  %v2617 = vand.u32 2147483647, %v2607
  %vm2618 = vcmp.eq.f32.partialorder %v2617, 8.507059e+37
  %v2619 = vand.u32 %v2607, 2147483648
  %v2620 = vor.u32 1.1754944e-38, %v2619
  %v2621 = vsel %vm2618, %v2620, %v2616
  %v2622 = vmul.f32 1.0, %v2621
  %2624 = vrot.lane.b32.xlu0 %v2601, 64
  %v2625 = vpop.permute.xlu0 %2624
  %v2627 = vmul.f32 %v2622, %v2625
  %2629 = vrot.lane.b32.xlu0 %v2627, 64
  %v2630 = vpop.permute.xlu0 %2629
  %v2632 = vadd.f32 %v2577, %v2630
  %v2633 = vtanh.pop %v2632
  %v2634 = vsub.f32 1.0, %v2622
  %2636 = vrot.lane.b32.xlu0 %v2633, 96
  %v2637 = vpop.permute.xlu0 %2636
  %v2639 = vmul.f32 %v2634, %v2637
  %v2640 = vmul.f32 %v2622, %v2574
  %v2641 = vadd.f32 %v2639, %v2640
  %v2642 = vld [vmem:[%s0 + $0x1d0] sm:$0xff]
  %v2643 = vld [vmem:[%s0 + $0x1a8] sm:$0xff]
  %v2644 = vadd.f32 %v2642, %v2643
  %2646 = vrot.lane.b32.xlu0 %v2641, 96
  %v2647 = vpop.permute.xlu0 %2646
  %v2648 = vsel %vm26, %v2647, 0
  %2650 = vmatpush.msra.mxu0 0.0
  %2651 = vmatpush.msra.mxu0 0.0
  %2652 = vmatpush.msra.mxu0 0.0
  %2653 = vmatpush.msra.mxu0 0.0
  %2654 = vmatpush.msra.mxu0 0.0
  %2655 = vmatpush.msra.mxu0 0.0
  %2656 = vmatpush.msra.mxu0 0.0
  %2657 = vmatpush.msra.mxu0 0.0
  %2658 = vmatpush.msra.mxu0 0.0
  %2659 = vmatpush.msra.mxu0 0.0
  %2660 = vmatpush.msra.mxu0 0.0
  %2661 = vmatpush.msra.mxu0 0.0
  %2662 = vmatpush.msra.mxu0 %v14
  %2663 = vmatpush.msra.mxu0 %v13
  %2664 = vmatpush.msra.mxu0 %v12
  %2665 = vmatpush.msra.mxu0 %v11
  %2666 = vmatmul.f32.gmra.mxu0 %v2648
  %v2667 = vpop.f32.mrf.mxu0
  %v2668 = vadd.f32 %v15, %v2667
  %2669 = vdwg.mxu0
  %v2670 = vadd.f32 %v2644, %v2668
  %v2671 = vxor.u32 %v2670, 2147483648
  %v2672 = vmul.f32 %v2671, 1.442695
  %v2673 = vpow.pop %v2672
  %v2674 = vadd.f32 %v2673, 1.0
  %v2675 = vrcp.pop %v2674
  %v2676 = vmul.f32 %v2674, %v2675
  %v2677 = vsub.f32 1.0, %v2676
  %v2678 = vmul.f32 %v2675, %v2677
  %v2679 = vadd.f32 %v2675, %v2678
  %vm2680 = vweird.f32 %v2674
  %vm2681 = vweird.f32 %v2675
  %vm2682 = vmor %vm2680, %vm2681
  %v2683 = vsel %vm2682, %v2675, %v2679
  %v2684 = vand.u32 2147483647, %v2674
  %vm2685 = vcmp.eq.f32.partialorder %v2684, 8.507059e+37
  %v2686 = vand.u32 %v2674, 2147483648
  %v2687 = vor.u32 1.1754944e-38, %v2686
  %v2688 = vsel %vm2685, %v2687, %v2683
  %v2689 = vmul.f32 1.0, %v2688
  %2691 = vrot.lane.b32.xlu0 %v2668, 64
  %v2692 = vpop.permute.xlu0 %2691
  %v2694 = vmul.f32 %v2689, %v2692
  %2696 = vrot.lane.b32.xlu0 %v2694, 64
  %v2697 = vpop.permute.xlu0 %2696
  %v2699 = vadd.f32 %v2644, %v2697
  %v2700 = vtanh.pop %v2699
  %v2701 = vsub.f32 1.0, %v2689
  %2703 = vrot.lane.b32.xlu0 %v2700, 96
  %v2704 = vpop.permute.xlu0 %2703
  %v2706 = vmul.f32 %v2701, %v2704
  %v2707 = vmul.f32 %v2689, %v2641
  %v2708 = vadd.f32 %v2706, %v2707
  %v2709 = vld [vmem:[%s0 + $0x1e0] sm:$0xff]
  %v2710 = vld [vmem:[%s0 + $0x198] sm:$0xff]
  %v2711 = vadd.f32 %v2709, %v2710
  %2713 = vrot.lane.b32.xlu0 %v2708, 96
  %v2714 = vpop.permute.xlu0 %2713
  %v2715 = vsel %vm26, %v2714, 0
  %2717 = vmatpush.msra.mxu0 0.0
  %2718 = vmatpush.msra.mxu0 0.0
  %2719 = vmatpush.msra.mxu0 0.0
  %2720 = vmatpush.msra.mxu0 0.0
  %2721 = vmatpush.msra.mxu0 0.0
  %2722 = vmatpush.msra.mxu0 0.0
  %2723 = vmatpush.msra.mxu0 0.0
  %2724 = vmatpush.msra.mxu0 0.0
  %2725 = vmatpush.msra.mxu0 0.0
  %2726 = vmatpush.msra.mxu0 0.0
  %2727 = vmatpush.msra.mxu0 0.0
  %2728 = vmatpush.msra.mxu0 0.0
  %2729 = vmatpush.msra.mxu0 %v14
  %2730 = vmatpush.msra.mxu0 %v13
  %2731 = vmatpush.msra.mxu0 %v12
  %2732 = vmatpush.msra.mxu0 %v11
  %2733 = vmatmul.f32.gmra.mxu0 %v2715
  %v2734 = vpop.f32.mrf.mxu0
  %v2735 = vadd.f32 %v15, %v2734
  %2736 = vdwg.mxu0
  %v2737 = vadd.f32 %v2711, %v2735
  %v2738 = vxor.u32 %v2737, 2147483648
  %v2739 = vmul.f32 %v2738, 1.442695
  %v2740 = vpow.pop %v2739
  %v2741 = vadd.f32 %v2740, 1.0
  %v2742 = vrcp.pop %v2741
  %v2743 = vmul.f32 %v2741, %v2742
  %v2744 = vsub.f32 1.0, %v2743
  %v2745 = vmul.f32 %v2742, %v2744
  %v2746 = vadd.f32 %v2742, %v2745
  %vm2747 = vweird.f32 %v2741
  %vm2748 = vweird.f32 %v2742
  %vm2749 = vmor %vm2747, %vm2748
  %v2750 = vsel %vm2749, %v2742, %v2746
  %v2751 = vand.u32 2147483647, %v2741
  %vm2752 = vcmp.eq.f32.partialorder %v2751, 8.507059e+37
  %v2753 = vand.u32 %v2741, 2147483648
  %v2754 = vor.u32 1.1754944e-38, %v2753
  %v2755 = vsel %vm2752, %v2754, %v2750
  %v2756 = vmul.f32 1.0, %v2755
  %2758 = vrot.lane.b32.xlu0 %v2735, 64
  %v2759 = vpop.permute.xlu0 %2758
  %v2761 = vmul.f32 %v2756, %v2759
  %2763 = vrot.lane.b32.xlu0 %v2761, 64
  %v2764 = vpop.permute.xlu0 %2763
  %v2766 = vadd.f32 %v2711, %v2764
  %v2767 = vtanh.pop %v2766
  %v2768 = vsub.f32 1.0, %v2756
  %2770 = vrot.lane.b32.xlu0 %v2767, 96
  %v2771 = vpop.permute.xlu0 %2770
  %v2773 = vmul.f32 %v2768, %v2771
  %v2774 = vmul.f32 %v2756, %v2708
  %v2775 = vadd.f32 %v2773, %v2774
  %v2776 = vld [vmem:[%s0 + $0x1f0] sm:$0xff]
  %v2777 = vld [vmem:[%s0 + $0x188] sm:$0xff]
  %v2778 = vadd.f32 %v2776, %v2777
  %2780 = vrot.lane.b32.xlu0 %v2775, 96
  %v2781 = vpop.permute.xlu0 %2780
  %v2782 = vsel %vm26, %v2781, 0
  %2784 = vmatpush.msra.mxu0 0.0
  %2785 = vmatpush.msra.mxu0 0.0
  %2786 = vmatpush.msra.mxu0 0.0
  %2787 = vmatpush.msra.mxu0 0.0
  %2788 = vmatpush.msra.mxu0 0.0
  %2789 = vmatpush.msra.mxu0 0.0
  %2790 = vmatpush.msra.mxu0 0.0
  %2791 = vmatpush.msra.mxu0 0.0
  %2792 = vmatpush.msra.mxu0 0.0
  %2793 = vmatpush.msra.mxu0 0.0
  %2794 = vmatpush.msra.mxu0 0.0
  %2795 = vmatpush.msra.mxu0 0.0
  %2796 = vmatpush.msra.mxu0 %v14
  %2797 = vmatpush.msra.mxu0 %v13
  %2798 = vmatpush.msra.mxu0 %v12
  %2799 = vmatpush.msra.mxu0 %v11
  %2800 = vmatmul.f32.gmra.mxu0 %v2782
  %v2801 = vpop.f32.mrf.mxu0
  %v2802 = vadd.f32 %v15, %v2801
  %2803 = vdwg.mxu0
  %v2804 = vadd.f32 %v2778, %v2802
  %v2805 = vxor.u32 %v2804, 2147483648
  %v2806 = vmul.f32 %v2805, 1.442695
  %v2807 = vpow.pop %v2806
  %v2808 = vadd.f32 %v2807, 1.0
  %v2809 = vrcp.pop %v2808
  %v2810 = vmul.f32 %v2808, %v2809
  %v2811 = vsub.f32 1.0, %v2810
  %v2812 = vmul.f32 %v2809, %v2811
  %v2813 = vadd.f32 %v2809, %v2812
  %vm2814 = vweird.f32 %v2808
  %vm2815 = vweird.f32 %v2809
  %vm2816 = vmor %vm2814, %vm2815
  %v2817 = vsel %vm2816, %v2809, %v2813
  %v2818 = vand.u32 2147483647, %v2808
  %vm2819 = vcmp.eq.f32.partialorder %v2818, 8.507059e+37
  %v2820 = vand.u32 %v2808, 2147483648
  %v2821 = vor.u32 1.1754944e-38, %v2820
  %v2822 = vsel %vm2819, %v2821, %v2817
  %v2823 = vmul.f32 1.0, %v2822
  %2825 = vrot.lane.b32.xlu0 %v2802, 64
  %v2826 = vpop.permute.xlu0 %2825
  %v2828 = vmul.f32 %v2823, %v2826
  %2830 = vrot.lane.b32.xlu0 %v2828, 64
  %v2831 = vpop.permute.xlu0 %2830
  %v2833 = vadd.f32 %v2778, %v2831
  %v2834 = vtanh.pop %v2833
  %v2835 = vsub.f32 1.0, %v2823
  %2837 = vrot.lane.b32.xlu0 %v2834, 96
  %v2838 = vpop.permute.xlu0 %2837
  %v2840 = vmul.f32 %v2835, %v2838
  %v2841 = vmul.f32 %v2823, %v2775
  %v2842 = vadd.f32 %v2840, %v2841
  %2845 = vrot.lane.b32.xlu0 %v2842, 96
  %v2846 = vpop.permute.xlu0 %2845
  %v2848 = vsel %vm563, %v2379, %v2846
  %v2851 = vsel %vm563, %v2446, %v2781
  %v2854 = vsel %vm563, %v2513, %v2714
  %v2857 = vsel %vm563, %v2580, %v2647
  %v2858 = vsel %vm563, %v2647, %v2580
  %v2859 = vsel %vm563, %v2714, %v2513
  %v2860 = vsel %vm563, %v2781, %v2446
  %v2861 = vsel %vm563, %v2846, %v2379
  %v2863 = vsel %vm26, %v2848, 0
  %v2866 = vsel %vm26, %v2851, 0
  %v2869 = vsel %vm26, %v2854, 0
  %v2872 = vsel %vm26, %v2857, 0
  %v2875 = vsel %vm26, %v2858, 0
  %v2878 = vsel %vm26, %v2859, 0
  %v2881 = vsel %vm26, %v2860, 0
  %v2884 = vsel %vm26, %v2861, 0
  %2886 = vmatpush.msra.mxu0 0.0
  %2887 = vmatpush.msra.mxu0 0.0
  %2888 = vmatpush.msra.mxu0 0.0
  %2889 = vmatpush.msra.mxu0 0.0
  %2890 = vmatpush.msra.mxu0 0.0
  %2891 = vmatpush.msra.mxu0 0.0
  %2892 = vmatpush.msra.mxu0 0.0
  %2893 = vmatpush.msra.mxu0 0.0
  %2894 = vmatpush.msra.mxu0 0.0
  %2895 = vmatpush.msra.mxu0 0.0
  %2896 = vmatpush.msra.mxu0 0.0
  %2897 = vmatpush.msra.mxu0 0.0
  %2898 = vmatpush.msra.mxu0 %v19
  %2899 = vmatpush.msra.mxu0 %v18
  %2900 = vmatpush.msra.mxu0 %v17
  %2901 = vmatpush.msra.mxu0 %v16
  %2902 = vmatmul.f32.gmra.mxu0 %v2863
  %v2903 = vpop.f32.mrf.mxu0
  %v2904 = vadd.f32 %v20, %v2903
  %2905 = vmatmul.f32.gmra.mxu0 %v2866
  %v2906 = vpop.f32.mrf.mxu0
  %v2907 = vadd.f32 %v20, %v2906
  %2908 = vmatmul.f32.gmra.mxu0 %v2869
  %v2909 = vpop.f32.mrf.mxu0
  %v2910 = vadd.f32 %v20, %v2909
  %2911 = vmatmul.f32.gmra.mxu0 %v2872
  %v2912 = vpop.f32.mrf.mxu0
  %v2913 = vadd.f32 %v20, %v2912
  %2914 = vmatmul.f32.gmra.mxu0 %v2875
  %v2915 = vpop.f32.mrf.mxu0
  %v2916 = vadd.f32 %v20, %v2915
  %2917 = vmatmul.f32.gmra.mxu0 %v2878
  %v2918 = vpop.f32.mrf.mxu0
  %v2919 = vadd.f32 %v20, %v2918
  %2920 = vmatmul.f32.gmra.mxu0 %v2881
  %v2921 = vpop.f32.mrf.mxu0
  %v2922 = vadd.f32 %v20, %v2921
  %2923 = vmatmul.f32.gmra.mxu0 %v2884
  %v2924 = vpop.f32.mrf.mxu0
  %v2925 = vadd.f32 %v20, %v2924
  %2926 = vdwg.mxu0
  %v2927 = vtanh.pop %v2904
  %v2928 = vtanh.pop %v2907
  %v2929 = vtanh.pop %v2910
  %v2930 = vtanh.pop %v2913
  %v2931 = vtanh.pop %v2916
  %v2932 = vtanh.pop %v2919
  %v2933 = vtanh.pop %v2922
  %v2934 = vtanh.pop %v2925
  %v2935 = vmul.f32 %v2927, %v21
  %v2936 = vmul.f32 %v2928, %v21
  %v2937 = vmul.f32 %v2929, %v21
  %v2938 = vmul.f32 %v2930, %v21
  %v2939 = vmul.f32 %v2931, %v21
  %v2940 = vmul.f32 %v2932, %v21
  %v2941 = vmul.f32 %v2933, %v21
  %v2942 = vmul.f32 %v2934, %v21
  %v2943 = vsel %vm26, %v2935, 0.0
  %2944 = vadd.xlane.f32.xlu0 %v2943
  %v2945 = vpop.xlane.xlu0 %2944
  %v2946 = vsel %vm26, %v2936, 0.0
  %2947 = vadd.xlane.f32.xlu0 %v2946
  %v2948 = vpop.xlane.xlu0 %2947
  %v2949 = vsel %vm26, %v2937, 0.0
  %2950 = vadd.xlane.f32.xlu0 %v2949
  %v2951 = vpop.xlane.xlu0 %2950
  %v2952 = vsel %vm26, %v2938, 0.0
  %2953 = vadd.xlane.f32.xlu0 %v2952
  %v2954 = vpop.xlane.xlu0 %2953
  %v2955 = vsel %vm26, %v2939, 0.0
  %2956 = vadd.xlane.f32.xlu0 %v2955
  %v2957 = vpop.xlane.xlu0 %2956
  %v2958 = vsel %vm26, %v2940, 0.0
  %2959 = vadd.xlane.f32.xlu0 %v2958
  %v2960 = vpop.xlane.xlu0 %2959
  %v2961 = vsel %vm26, %v2941, 0.0
  %2962 = vadd.xlane.f32.xlu0 %v2961
  %v2963 = vpop.xlane.xlu0 %2962
  %v2964 = vsel %vm26, %v2942, 0.0
  %2965 = vadd.xlane.f32.xlu0 %v2964
  %v2966 = vpop.xlane.xlu0 %2965
  %v2967 = vtanh.pop %v2945
  %v2968 = vtanh.pop %v2948
  %v2969 = vtanh.pop %v2951
  %v2970 = vtanh.pop %v2954
  %v2971 = vtanh.pop %v2957
  %v2972 = vtanh.pop %v2960
  %v2973 = vtanh.pop %v2963
  %v2974 = vtanh.pop %v2966
  %v2975 = vmax.f32 %v2967, %v2971
  %v2976 = vmax.f32 %v2968, %v2972
  %v2977 = vmax.f32 %v2969, %v2973
  %v2978 = vmax.f32 %v2970, %v2974
  %v2979 = vmax.f32 %v2975, %v2976
  %v2980 = vmax.f32 %v2977, %v2978
  %v2981 = vmax.f32 %v2979, %v2980
  %v2982 = vrot.slane %v2981, 4
  %v2983 = vmax.f32 %v2981, %v2982
  %v2984 = vrot.slane %v2983, 2
  %v2985 = vmax.f32 %v2983, %v2984
  %v2986 = vrot.slane %v2985, 1
  %v2987 = vmax.f32 %v2985, %v2986
  %s2988 = vtos %v2987
  %v2989 = vstv %s2988
  %v2990 = vsub.f32 %v2967, %v2989
  %v2991 = vsub.f32 %v2968, %v2989
  %v2992 = vsub.f32 %v2969, %v2989
  %v2993 = vsub.f32 %v2970, %v2989
  %v2994 = vsub.f32 %v2971, %v2989
  %v2995 = vsub.f32 %v2972, %v2989
  %v2996 = vsub.f32 %v2973, %v2989
  %v2997 = vsub.f32 %v2974, %v2989
  %v2998 = vmul.f32 %v2990, 1.442695
  %v2999 = vpow.pop %v2998
  %v3000 = vmul.f32 %v2991, 1.442695
  %v3001 = vpow.pop %v3000
  %v3002 = vmul.f32 %v2992, 1.442695
  %v3003 = vpow.pop %v3002
  %v3004 = vmul.f32 %v2993, 1.442695
  %v3005 = vpow.pop %v3004
  %v3006 = vmul.f32 %v2994, 1.442695
  %v3007 = vpow.pop %v3006
  %v3008 = vmul.f32 %v2995, 1.442695
  %v3009 = vpow.pop %v3008
  %v3010 = vmul.f32 %v2996, 1.442695
  %v3011 = vpow.pop %v3010
  %v3012 = vmul.f32 %v2997, 1.442695
  %v3013 = vpow.pop %v3012
  %v3014 = vmul.f32 %v2999, %v2848
  %v3015 = vmul.f32 %v3001, %v2851
  %v3016 = vmul.f32 %v3003, %v2854
  %v3017 = vmul.f32 %v3005, %v2857
  %v3018 = vmul.f32 %v3007, %v2858
  %v3019 = vmul.f32 %v3009, %v2859
  %v3020 = vmul.f32 %v3011, %v2860
  %v3021 = vmul.f32 %v3013, %v2861
  %v3022 = vsel %vm26, %v3014, %v2999
  %v3023 = vsel %vm26, %v3015, %v3001
  %v3024 = vsel %vm26, %v3016, %v3003
  %v3025 = vsel %vm26, %v3017, %v3005
  %v3026 = vsel %vm26, %v3018, %v3007
  %v3027 = vsel %vm26, %v3019, %v3009
  %v3028 = vsel %vm26, %v3020, %v3011
  %v3029 = vsel %vm26, %v3021, %v3013
  %3030 = vmatpush.msra.mxu0 0.0
  %3031 = vmatpush.msra.mxu0 0.0
  %3032 = vmatpush.msra.mxu0 0.0
  %3033 = vmatpush.msra.mxu0 0.0
  %3034 = vmatpush.msra.mxu0 0.0
  %3035 = vmatpush.msra.mxu0 0.0
  %3036 = vmatpush.msra.mxu0 0.0
  %3037 = vmatpush.msra.mxu0 0.0
  %3038 = vmatpush.msra.mxu0 %v3029
  %3039 = vmatpush.msra.mxu0 %v3028
  %3040 = vmatpush.msra.mxu0 %v3027
  %3041 = vmatpush.msra.mxu0 %v3026
  %3042 = vmatpush.msra.mxu0 %v3025
  %3043 = vmatpush.msra.mxu0 %v3024
  %3044 = vmatpush.msra.mxu0 %v3023
  %3045 = vmatpush.msra.mxu0 %v3022
  %3046 = vmatmul.f32.gmra.mxu0 %v748
  %v3047 = vpop.f32.mrf.mxu0
  %v3048 = vadd.f32 0.0, %v3047
  %3049 = vdwg.mxu0
  %3051 = vset.pattern.permute.xlu0 32
  %3052 = vperm.xlu0 %3051, %v3048
  %v3053 = vpop.permute.xlu0 %3052
  %v3055 = vrcp.pop %v3053
  %v3056 = vmul.f32 %v3053, %v3055
  %v3057 = vsub.f32 1.0, %v3056
  %v3058 = vmul.f32 %v3055, %v3057
  %v3059 = vadd.f32 %v3055, %v3058
  %vm3060 = vweird.f32 %v3053
  %vm3061 = vweird.f32 %v3055
  %vm3062 = vmor %vm3060, %vm3061
  %v3063 = vsel %vm3062, %v3055, %v3059
  %v3064 = vand.u32 2147483647, %v3053
  %vm3065 = vcmp.eq.f32.partialorder %v3064, 8.507059e+37
  %v3066 = vand.u32 %v3053, 2147483648
  %v3067 = vor.u32 1.1754944e-38, %v3066
  %v3068 = vsel %vm3065, %v3067, %v3063
  %v3069 = vmul.f32 %v3048, %v3068
  %v3070 = vld [vmem:[%s1 + $0xc0] sm:$0xff]
  %v3071 = vld [vmem:[%s1 + $0xc8] sm:$0xff]
  %v3072 = vld [vmem:[%s1 + $0xd0] sm:$0xff]
  %v3073 = vld [vmem:[%s1 + $0xd8] sm:$0xff]
  %v3074 = vld [vmem:[%s1 + $0xe0] sm:$0xff]
  %v3075 = vld [vmem:[%s1 + $0xe8] sm:$0xff]
  %v3076 = vld [vmem:[%s1 + $0xf0] sm:$0xff]
  %v3077 = vld [vmem:[%s1 + $0xf8] sm:$0xff]
  %s3078 = scalar_lea.vmem %s1, 256
  %v3079 = vld [vmem:[%s3078] ss:$8 sm:$0x3]
  %v3081 = vperm.slane %v3079, 0
  %v3082 = vperm.slane %v3079, 1
  %v3086 = vsel %vm26, %v789, 0
  %v3089 = vsel %vm26, %v1549, 0
  %v3092 = vsel %vm26, %v2309, 0
  %v3095 = vsel %vm26, %v3069, 0
  %3097 = vmatpush.msra.mxu0 0.0
  %3098 = vmatpush.msra.mxu0 0.0
  %3099 = vmatpush.msra.mxu0 0.0
  %3100 = vmatpush.msra.mxu0 0.0
  %3101 = vmatpush.msra.mxu0 0.0
  %3102 = vmatpush.msra.mxu0 0.0
  %3103 = vmatpush.msra.mxu0 0.0
  %3104 = vmatpush.msra.mxu0 0.0
  %3105 = vmatpush.msra.mxu0 0.0
  %3106 = vmatpush.msra.mxu0 0.0
  %3107 = vmatpush.msra.mxu0 0.0
  %3108 = vmatpush.msra.mxu0 0.0
  %3109 = vmatpush.msra.mxu0 %v3076
  %3110 = vmatpush.msra.mxu0 %v3074
  %3111 = vmatpush.msra.mxu0 %v3072
  %3112 = vmatpush.msra.mxu0 %v3070
  %3113 = vmatmul.f32.gmra.mxu0 %v3086
  %v3114 = vpop.f32.mrf.mxu0
  %v3115 = vadd.f32 %v3081, %v3114
  %3116 = vmatmul.f32.gmra.mxu0 %v3089
  %v3117 = vpop.f32.mrf.mxu0
  %v3118 = vadd.f32 %v3081, %v3117
  %3119 = vmatmul.f32.gmra.mxu0 %v3092
  %v3120 = vpop.f32.mrf.mxu0
  %v3121 = vadd.f32 %v3081, %v3120
  %3122 = vmatmul.f32.gmra.mxu0 %v3095
  %v3123 = vpop.f32.mrf.mxu0
  %v3124 = vadd.f32 %v3081, %v3123
  %3125 = vdwg.mxu0
  %3126 = vmatpush.msra.mxu0 0.0
  %3127 = vmatpush.msra.mxu0 0.0
  %3128 = vmatpush.msra.mxu0 0.0
  %3129 = vmatpush.msra.mxu0 0.0
  %3130 = vmatpush.msra.mxu0 0.0
  %3131 = vmatpush.msra.mxu0 0.0
  %3132 = vmatpush.msra.mxu0 0.0
  %3133 = vmatpush.msra.mxu0 0.0
  %3134 = vmatpush.msra.mxu0 0.0
  %3135 = vmatpush.msra.mxu0 0.0
  %3136 = vmatpush.msra.mxu0 0.0
  %3137 = vmatpush.msra.mxu0 0.0
  %3138 = vmatpush.msra.mxu0 %v3077
  %3139 = vmatpush.msra.mxu0 %v3075
  %3140 = vmatpush.msra.mxu0 %v3073
  %3141 = vmatpush.msra.mxu0 %v3071
  %3142 = vmatmul.f32.gmra.mxu0 %v3086
  %v3143 = vpop.f32.mrf.mxu0
  %v3144 = vadd.f32 %v3082, %v3143
  %3145 = vmatmul.f32.gmra.mxu0 %v3089
  %v3146 = vpop.f32.mrf.mxu0
  %v3147 = vadd.f32 %v3082, %v3146
  %3148 = vmatmul.f32.gmra.mxu0 %v3092
  %v3149 = vpop.f32.mrf.mxu0
  %v3150 = vadd.f32 %v3082, %v3149
  %3151 = vmatmul.f32.gmra.mxu0 %v3095
  %v3152 = vpop.f32.mrf.mxu0
  %v3153 = vadd.f32 %v3082, %v3152
  %3154 = vdwg.mxu0
  %v3155 = vld [vmem:[%s1 + $0x110] sm:$0xff]
  %v3156 = vld [vmem:[%s1 + $0x120] sm:$0xff]
  %v3157 = vld [vmem:[%s1 + $0x130] sm:$0xff]
  %v3158 = vld [vmem:[%s1 + $0x140] sm:$0xff]
  %v3159 = vld [vmem:[%s1 + $0x150] ss:$0 sm:$0xff]
  %v3160 = vadd.f32 %v3115, %v3153
  %3161 = vmatpush.msra.mxu0 0.0
  %3162 = vmatpush.msra.mxu0 0.0
  %3163 = vmatpush.msra.mxu0 0.0
  %3164 = vmatpush.msra.mxu0 0.0
  %3165 = vmatpush.msra.mxu0 0.0
  %3166 = vmatpush.msra.mxu0 0.0
  %3167 = vmatpush.msra.mxu0 0.0
  %3168 = vmatpush.msra.mxu0 0.0
  %3169 = vmatpush.msra.mxu0 0.0
  %3170 = vmatpush.msra.mxu0 0.0
  %3171 = vmatpush.msra.mxu0 0.0
  %3172 = vmatpush.msra.mxu0 0.0
  %3173 = vmatpush.msra.mxu0 %v3158
  %3174 = vmatpush.msra.mxu0 %v3157
  %3175 = vmatpush.msra.mxu0 %v3156
  %3176 = vmatpush.msra.mxu0 %v3155
  %3177 = vmatmul.f32.gmra.mxu0 %v28
  %v3178 = vpop.f32.mrf.mxu0
  %v3179 = vadd.f32 %v3159, %v3178
  %3180 = vdwg.mxu0
  %v3181 = vadd.f32 %v3160, %v3179
  %v3182 = vxor.u32 %v3181, 2147483648
  %v3183 = vmul.f32 %v3182, 1.442695
  %v3184 = vpow.pop %v3183
  %v3185 = vadd.f32 %v3184, 1.0
  %v3186 = vrcp.pop %v3185
  %v3187 = vmul.f32 %v3185, %v3186
  %v3188 = vsub.f32 1.0, %v3187
  %v3189 = vmul.f32 %v3186, %v3188
  %v3190 = vadd.f32 %v3186, %v3189
  %vm3191 = vweird.f32 %v3185
  %vm3192 = vweird.f32 %v3186
  %vm3193 = vmor %vm3191, %vm3192
  %v3194 = vsel %vm3193, %v3186, %v3190
  %v3195 = vand.u32 2147483647, %v3185
  %vm3196 = vcmp.eq.f32.partialorder %v3195, 8.507059e+37
  %v3197 = vand.u32 %v3185, 2147483648
  %v3198 = vor.u32 1.1754944e-38, %v3197
  %v3199 = vsel %vm3196, %v3198, %v3194
  %v3200 = vmul.f32 1.0, %v3199
  %3202 = vrot.lane.b32.xlu0 %v3179, 64
  %v3203 = vpop.permute.xlu0 %3202
  %v3205 = vmul.f32 %v3200, %v3203
  %3207 = vrot.lane.b32.xlu0 %v3205, 64
  %v3208 = vpop.permute.xlu0 %3207
  %v3210 = vadd.f32 %v3160, %v3208
  %v3211 = vtanh.pop %v3210
  %v3212 = vsub.f32 1.0, %v3200
  %3214 = vrot.lane.b32.xlu0 %v3211, 96
  %v3215 = vpop.permute.xlu0 %3214
  %v3217 = vmul.f32 %v3212, %v3215
  %v3218 = vmul.f32 %v3200, 0.0
  %v3219 = vadd.f32 %v3217, %v3218
  %v3220 = vadd.f32 %v3118, %v3150
  %3222 = vrot.lane.b32.xlu0 %v3219, 96
  %v3223 = vpop.permute.xlu0 %3222
  %v3224 = vsel %vm26, %v3223, 0
  %3226 = vmatpush.msra.mxu0 0.0
  %3227 = vmatpush.msra.mxu0 0.0
  %3228 = vmatpush.msra.mxu0 0.0
  %3229 = vmatpush.msra.mxu0 0.0
  %3230 = vmatpush.msra.mxu0 0.0
  %3231 = vmatpush.msra.mxu0 0.0
  %3232 = vmatpush.msra.mxu0 0.0
  %3233 = vmatpush.msra.mxu0 0.0
  %3234 = vmatpush.msra.mxu0 0.0
  %3235 = vmatpush.msra.mxu0 0.0
  %3236 = vmatpush.msra.mxu0 0.0
  %3237 = vmatpush.msra.mxu0 0.0
  %3238 = vmatpush.msra.mxu0 %v3158
  %3239 = vmatpush.msra.mxu0 %v3157
  %3240 = vmatpush.msra.mxu0 %v3156
  %3241 = vmatpush.msra.mxu0 %v3155
  %3242 = vmatmul.f32.gmra.mxu0 %v3224
  %v3243 = vpop.f32.mrf.mxu0
  %v3244 = vadd.f32 %v3159, %v3243
  %3245 = vdwg.mxu0
  %v3246 = vadd.f32 %v3220, %v3244
  %v3247 = vxor.u32 %v3246, 2147483648
  %v3248 = vmul.f32 %v3247, 1.442695
  %v3249 = vpow.pop %v3248
  %v3250 = vadd.f32 %v3249, 1.0
  %v3251 = vrcp.pop %v3250
  %v3252 = vmul.f32 %v3250, %v3251
  %v3253 = vsub.f32 1.0, %v3252
  %v3254 = vmul.f32 %v3251, %v3253
  %v3255 = vadd.f32 %v3251, %v3254
  %vm3256 = vweird.f32 %v3250
  %vm3257 = vweird.f32 %v3251
  %vm3258 = vmor %vm3256, %vm3257
  %v3259 = vsel %vm3258, %v3251, %v3255
  %v3260 = vand.u32 2147483647, %v3250
  %vm3261 = vcmp.eq.f32.partialorder %v3260, 8.507059e+37
  %v3262 = vand.u32 %v3250, 2147483648
  %v3263 = vor.u32 1.1754944e-38, %v3262
  %v3264 = vsel %vm3261, %v3263, %v3259
  %v3265 = vmul.f32 1.0, %v3264
  %3267 = vrot.lane.b32.xlu0 %v3244, 64
  %v3268 = vpop.permute.xlu0 %3267
  %v3270 = vmul.f32 %v3265, %v3268
  %3272 = vrot.lane.b32.xlu0 %v3270, 64
  %v3273 = vpop.permute.xlu0 %3272
  %v3275 = vadd.f32 %v3220, %v3273
  %v3276 = vtanh.pop %v3275
  %v3277 = vsub.f32 1.0, %v3265
  %3279 = vrot.lane.b32.xlu0 %v3276, 96
  %v3280 = vpop.permute.xlu0 %3279
  %v3282 = vmul.f32 %v3277, %v3280
  %v3283 = vmul.f32 %v3265, %v3219
  %v3284 = vadd.f32 %v3282, %v3283
  %v3285 = vadd.f32 %v3121, %v3147
  %3287 = vrot.lane.b32.xlu0 %v3284, 96
  %v3288 = vpop.permute.xlu0 %3287
  %v3289 = vsel %vm26, %v3288, 0
  %3291 = vmatpush.msra.mxu0 0.0
  %3292 = vmatpush.msra.mxu0 0.0
  %3293 = vmatpush.msra.mxu0 0.0
  %3294 = vmatpush.msra.mxu0 0.0
  %3295 = vmatpush.msra.mxu0 0.0
  %3296 = vmatpush.msra.mxu0 0.0
  %3297 = vmatpush.msra.mxu0 0.0
  %3298 = vmatpush.msra.mxu0 0.0
  %3299 = vmatpush.msra.mxu0 0.0
  %3300 = vmatpush.msra.mxu0 0.0
  %3301 = vmatpush.msra.mxu0 0.0
  %3302 = vmatpush.msra.mxu0 0.0
  %3303 = vmatpush.msra.mxu0 %v3158
  %3304 = vmatpush.msra.mxu0 %v3157
  %3305 = vmatpush.msra.mxu0 %v3156
  %3306 = vmatpush.msra.mxu0 %v3155
  %3307 = vmatmul.f32.gmra.mxu0 %v3289
  %v3308 = vpop.f32.mrf.mxu0
  %v3309 = vadd.f32 %v3159, %v3308
  %3310 = vdwg.mxu0
  %v3311 = vadd.f32 %v3285, %v3309
  %v3312 = vxor.u32 %v3311, 2147483648
  %v3313 = vmul.f32 %v3312, 1.442695
  %v3314 = vpow.pop %v3313
  %v3315 = vadd.f32 %v3314, 1.0
  %v3316 = vrcp.pop %v3315
  %v3317 = vmul.f32 %v3315, %v3316
  %v3318 = vsub.f32 1.0, %v3317
  %v3319 = vmul.f32 %v3316, %v3318
  %v3320 = vadd.f32 %v3316, %v3319
  %vm3321 = vweird.f32 %v3315
  %vm3322 = vweird.f32 %v3316
  %vm3323 = vmor %vm3321, %vm3322
  %v3324 = vsel %vm3323, %v3316, %v3320
  %v3325 = vand.u32 2147483647, %v3315
  %vm3326 = vcmp.eq.f32.partialorder %v3325, 8.507059e+37
  %v3327 = vand.u32 %v3315, 2147483648
  %v3328 = vor.u32 1.1754944e-38, %v3327
  %v3329 = vsel %vm3326, %v3328, %v3324
  %v3330 = vmul.f32 1.0, %v3329
  %3332 = vrot.lane.b32.xlu0 %v3309, 64
  %v3333 = vpop.permute.xlu0 %3332
  %v3335 = vmul.f32 %v3330, %v3333
  %3337 = vrot.lane.b32.xlu0 %v3335, 64
  %v3338 = vpop.permute.xlu0 %3337
  %v3340 = vadd.f32 %v3285, %v3338
  %v3341 = vtanh.pop %v3340
  %v3342 = vsub.f32 1.0, %v3330
  %3344 = vrot.lane.b32.xlu0 %v3341, 96
  %v3345 = vpop.permute.xlu0 %3344
  %v3347 = vmul.f32 %v3342, %v3345
  %v3348 = vmul.f32 %v3330, %v3284
  %v3349 = vadd.f32 %v3347, %v3348
  %v3350 = vadd.f32 %v3124, %v3144
  %3352 = vrot.lane.b32.xlu0 %v3349, 96
  %v3353 = vpop.permute.xlu0 %3352
  %v3354 = vsel %vm26, %v3353, 0
  %3356 = vmatpush.msra.mxu0 0.0
  %3357 = vmatpush.msra.mxu0 0.0
  %3358 = vmatpush.msra.mxu0 0.0
  %3359 = vmatpush.msra.mxu0 0.0
  %3360 = vmatpush.msra.mxu0 0.0
  %3361 = vmatpush.msra.mxu0 0.0
  %3362 = vmatpush.msra.mxu0 0.0
  %3363 = vmatpush.msra.mxu0 0.0
  %3364 = vmatpush.msra.mxu0 0.0
  %3365 = vmatpush.msra.mxu0 0.0
  %3366 = vmatpush.msra.mxu0 0.0
  %3367 = vmatpush.msra.mxu0 0.0
  %3368 = vmatpush.msra.mxu0 %v3158
  %3369 = vmatpush.msra.mxu0 %v3157
  %3370 = vmatpush.msra.mxu0 %v3156
  %3371 = vmatpush.msra.mxu0 %v3155
  %3372 = vmatmul.f32.gmra.mxu0 %v3354
  %v3373 = vpop.f32.mrf.mxu0
  %v3374 = vadd.f32 %v3159, %v3373
  %3375 = vdwg.mxu0
  %v3376 = vadd.f32 %v3350, %v3374
  %v3377 = vxor.u32 %v3376, 2147483648
  %v3378 = vmul.f32 %v3377, 1.442695
  %v3379 = vpow.pop %v3378
  %v3380 = vadd.f32 %v3379, 1.0
  %v3381 = vrcp.pop %v3380
  %v3382 = vmul.f32 %v3380, %v3381
  %v3383 = vsub.f32 1.0, %v3382
  %v3384 = vmul.f32 %v3381, %v3383
  %v3385 = vadd.f32 %v3381, %v3384
  %vm3386 = vweird.f32 %v3380
  %vm3387 = vweird.f32 %v3381
  %vm3388 = vmor %vm3386, %vm3387
  %v3389 = vsel %vm3388, %v3381, %v3385
  %v3390 = vand.u32 2147483647, %v3380
  %vm3391 = vcmp.eq.f32.partialorder %v3390, 8.507059e+37
  %v3392 = vand.u32 %v3380, 2147483648
  %v3393 = vor.u32 1.1754944e-38, %v3392
  %v3394 = vsel %vm3391, %v3393, %v3389
  %v3395 = vmul.f32 1.0, %v3394
  %3397 = vrot.lane.b32.xlu0 %v3374, 64
  %v3398 = vpop.permute.xlu0 %3397
  %v3400 = vmul.f32 %v3395, %v3398
  %3402 = vrot.lane.b32.xlu0 %v3400, 64
  %v3403 = vpop.permute.xlu0 %3402
  %v3405 = vadd.f32 %v3350, %v3403
  %v3406 = vtanh.pop %v3405
  %v3407 = vsub.f32 1.0, %v3395
  %3409 = vrot.lane.b32.xlu0 %v3406, 96
  %v3410 = vpop.permute.xlu0 %3409
  %v3412 = vmul.f32 %v3407, %v3410
  %v3413 = vmul.f32 %v3395, %v3349
  %v3414 = vadd.f32 %v3412, %v3413
  %3417 = vrot.lane.b32.xlu0 %v3414, 96
  %v3418 = vpop.permute.xlu0 %3417
  %v3420 = vsel %vm563, %v3223, %v3418
  %v3423 = vsel %vm563, %v3288, %v3353
  %v3424 = vsel %vm563, %v3353, %v3288
  %v3425 = vsel %vm563, %v3418, %v3223
  %v3426 = vld [vmem:[%s1 + $0x160] sm:$0xff]
  %v3427 = vld [vmem:[%s1 + $0x170] sm:$0xff]
  %v3428 = vld [vmem:[%s1 + $0x180] sm:$0xff]
  %v3429 = vld [vmem:[%s1 + $0x190] sm:$0xff]
  %v3430 = vld [vmem:[%s1 + $0x1a0] ss:$0 sm:$0xff]
  %v3431 = vld [vmem:[%s1 + $0x1b0] ss:$0 sm:$0xff]
  %v3432 = vld [vmem:[%s1 + $0x1c0] sm:$0xff]
  %v3434 = vsel %vm26, %v3420, 0
  %v3437 = vsel %vm26, %v3423, 0
  %v3440 = vsel %vm26, %v3424, 0
  %v3443 = vsel %vm26, %v3425, 0
  %3445 = vmatpush.msra.mxu0 0.0
  %3446 = vmatpush.msra.mxu0 0.0
  %3447 = vmatpush.msra.mxu0 0.0
  %3448 = vmatpush.msra.mxu0 0.0
  %3449 = vmatpush.msra.mxu0 0.0
  %3450 = vmatpush.msra.mxu0 0.0
  %3451 = vmatpush.msra.mxu0 0.0
  %3452 = vmatpush.msra.mxu0 0.0
  %3453 = vmatpush.msra.mxu0 0.0
  %3454 = vmatpush.msra.mxu0 0.0
  %3455 = vmatpush.msra.mxu0 0.0
  %3456 = vmatpush.msra.mxu0 0.0
  %3457 = vmatpush.msra.mxu0 %v3429
  %3458 = vmatpush.msra.mxu0 %v3428
  %3459 = vmatpush.msra.mxu0 %v3427
  %3460 = vmatpush.msra.mxu0 %v3426
  %3461 = vmatmul.f32.gmra.mxu0 %v3434
  %v3462 = vpop.f32.mrf.mxu0
  %v3463 = vadd.f32 %v3430, %v3462
  %3464 = vmatmul.f32.gmra.mxu0 %v3437
  %v3465 = vpop.f32.mrf.mxu0
  %v3466 = vadd.f32 %v3430, %v3465
  %3467 = vmatmul.f32.gmra.mxu0 %v3440
  %v3468 = vpop.f32.mrf.mxu0
  %v3469 = vadd.f32 %v3430, %v3468
  %3470 = vmatmul.f32.gmra.mxu0 %v3443
  %v3471 = vpop.f32.mrf.mxu0
  %v3472 = vadd.f32 %v3430, %v3471
  %3473 = vdwg.mxu0
  %v3474 = vtanh.pop %v3463
  %v3475 = vtanh.pop %v3466
  %v3476 = vtanh.pop %v3469
  %v3477 = vtanh.pop %v3472
  %v3478 = vmul.f32 %v3474, %v3431
  %v3479 = vmul.f32 %v3475, %v3431
  %v3480 = vmul.f32 %v3476, %v3431
  %v3481 = vmul.f32 %v3477, %v3431
  %v3482 = vsel %vm26, %v3478, 0.0
  %3483 = vadd.xlane.f32.xlu0 %v3482
  %v3484 = vpop.xlane.xlu0 %3483
  %v3485 = vsel %vm26, %v3479, 0.0
  %3486 = vadd.xlane.f32.xlu0 %v3485
  %v3487 = vpop.xlane.xlu0 %3486
  %v3488 = vsel %vm26, %v3480, 0.0
  %3489 = vadd.xlane.f32.xlu0 %v3488
  %v3490 = vpop.xlane.xlu0 %3489
  %v3491 = vsel %vm26, %v3481, 0.0
  %3492 = vadd.xlane.f32.xlu0 %v3491
  %v3493 = vpop.xlane.xlu0 %3492
  %v3494 = vtanh.pop %v3484
  %v3495 = vtanh.pop %v3487
  %v3496 = vtanh.pop %v3490
  %v3497 = vtanh.pop %v3493
  %v3498 = vmax.f32 %v3494, %v3495
  %v3499 = vmax.f32 %v3496, %v3497
  %v3500 = vmax.f32 %v3498, %v3499
  %v3501 = vrot.slane %v3500, 4
  %v3502 = vmax.f32 %v3500, %v3501
  %v3503 = vrot.slane %v3502, 2
  %v3504 = vmax.f32 %v3502, %v3503
  %v3505 = vrot.slane %v3504, 1
  %v3506 = vmax.f32 %v3504, %v3505
  %s3507 = vtos %v3506
  %v3508 = vstv %s3507
  %v3509 = vsub.f32 %v3494, %v3508
  %v3510 = vsub.f32 %v3495, %v3508
  %v3511 = vsub.f32 %v3496, %v3508
  %v3512 = vsub.f32 %v3497, %v3508
  %v3513 = vmul.f32 %v3509, 1.442695
  %v3514 = vpow.pop %v3513
  %v3515 = vmul.f32 %v3510, 1.442695
  %v3516 = vpow.pop %v3515
  %v3517 = vmul.f32 %v3511, 1.442695
  %v3518 = vpow.pop %v3517
  %v3519 = vmul.f32 %v3512, 1.442695
  %v3520 = vpow.pop %v3519
  %v3521 = vmul.f32 %v3514, %v3420
  %v3522 = vmul.f32 %v3516, %v3423
  %v3523 = vmul.f32 %v3518, %v3424
  %v3524 = vmul.f32 %v3520, %v3425
  %v3525 = vsel %vm26, %v3521, %v3514
  %v3526 = vsel %vm26, %v3522, %v3516
  %v3527 = vsel %vm26, %v3523, %v3518
  %v3528 = vsel %vm26, %v3524, %v3520
  %v3530 = vsel %vm26, %v3432, 0
  %3532 = vmatpush.msra.mxu0 0.0
  %3533 = vmatpush.msra.mxu0 0.0
  %3534 = vmatpush.msra.mxu0 0.0
  %3535 = vmatpush.msra.mxu0 0.0
  %3536 = vmatpush.msra.mxu0 0.0
  %3537 = vmatpush.msra.mxu0 0.0
  %3538 = vmatpush.msra.mxu0 0.0
  %3539 = vmatpush.msra.mxu0 0.0
  %3540 = vmatpush.msra.mxu0 0.0
  %3541 = vmatpush.msra.mxu0 0.0
  %3542 = vmatpush.msra.mxu0 0.0
  %3543 = vmatpush.msra.mxu0 0.0
  %3544 = vmatpush.msra.mxu0 %v3528
  %3545 = vmatpush.msra.mxu0 %v3527
  %3546 = vmatpush.msra.mxu0 %v3526
  %3547 = vmatpush.msra.mxu0 %v3525
  %3548 = vmatmul.f32.gmra.mxu0 %v3530
  %v3549 = vpop.f32.mrf.mxu0
  %v3550 = vadd.f32 0.0, %v3549
  %3551 = vdwg.mxu0
  %3553 = vset.pattern.permute.xlu0 32
  %3554 = vperm.xlu0 %3553, %v3550
  %v3555 = vpop.permute.xlu0 %3554
  %v3557 = vrcp.pop %v3555
  %v3558 = vmul.f32 %v3555, %v3557
  %v3559 = vsub.f32 1.0, %v3558
  %v3560 = vmul.f32 %v3557, %v3559
  %v3561 = vadd.f32 %v3557, %v3560
  %vm3562 = vweird.f32 %v3555
  %vm3563 = vweird.f32 %v3557
  %vm3564 = vmor %vm3562, %vm3563
  %v3565 = vsel %vm3564, %v3557, %v3561
  %v3566 = vand.u32 2147483647, %v3555
  %vm3567 = vcmp.eq.f32.partialorder %v3566, 8.507059e+37
  %v3568 = vand.u32 %v3555, 2147483648
  %v3569 = vor.u32 1.1754944e-38, %v3568
  %v3570 = vsel %vm3567, %v3569, %v3565
  %v3571 = vmul.f32 %v3550, %v3570
  %v3572 = vld [vmem:[%s1 + $0x1d0] sm:$0xff]
  %v3573 = vld [vmem:[%s1 + $0x1e0] sm:$0xff]
  %v3574 = vld [vmem:[%s1 + $0x1f0] sm:$0xff]
  %v3575 = vld [vmem:[%s1 + $0x200] sm:$0xff]
  %v3576 = vld [vmem:[%s1 + $0x210] ss:$0 sm:$0xff]
  %v3578 = vsel %vm26, %v3571, 0
  %3580 = vmatpush.msra.mxu0 0.0
  %3581 = vmatpush.msra.mxu0 0.0
  %3582 = vmatpush.msra.mxu0 0.0
  %3583 = vmatpush.msra.mxu0 0.0
  %3584 = vmatpush.msra.mxu0 0.0
  %3585 = vmatpush.msra.mxu0 0.0
  %3586 = vmatpush.msra.mxu0 0.0
  %3587 = vmatpush.msra.mxu0 0.0
  %3588 = vmatpush.msra.mxu0 0.0
  %3589 = vmatpush.msra.mxu0 0.0
  %3590 = vmatpush.msra.mxu0 0.0
  %3591 = vmatpush.msra.mxu0 0.0
  %3592 = vmatpush.msra.mxu0 %v3575
  %3593 = vmatpush.msra.mxu0 %v3574
  %3594 = vmatpush.msra.mxu0 %v3573
  %3595 = vmatpush.msra.mxu0 %v3572
  %3596 = vmatmul.f32.gmra.mxu0 %v3578
  %v3597 = vpop.f32.mrf.mxu0
  %v3598 = vadd.f32 %v3576, %v3597
  %3599 = vdwg.mxu0
  %vm3600 = vcmask 39936
  %3601 = vst.msk [vmem:[%s2] sm:$0xff] %vm3600, %v3598
  // Predicated region
  $region10: #{hier_att_net.1} parent=0 // pred_check
    _
  $region11: #{hier_att_net.1} parent=0 // pred_check_branch
    %3603 = sbr.rel (0) target = $region13
  $region12: #{hier_att_net.1} parent=0 // pred_region
    _
  $region13: #{hier_att_net.1} parent=0 // pred_fallthru
    _
  // Predicated region
  $region14: #{hier_att_net.1} parent=0 // pred_check
    _
  $region15: #{hier_att_net.1} parent=0 // pred_check_branch
    %3605 = sbr.rel (0) target = $region17
  $region16: #{hier_att_net.1} parent=0 // pred_region
    _
  $region17: #{hier_att_net.1} parent=0 // pred_fallthru
    _

</llo_original>
